<compile_context>
chip_gen: v7x
topology: tpu7x:2x2x1
jax: 0.10.0
libtpu: 0.0.40
codegen_flags: <defaults>
</compile_context>

<pallas_src>
import functools

import jax
import jax.numpy as jnp
from jax.experimental import pallas as pl
from jax.experimental.pallas import tpu as pltpu


# ------------------------------ fused kernel -------------------------------

def _mha_fused_kernel(xq_ref, xk_ref, xv_ref,
                      wq_ref, wk_ref, wv_ref,
                      bq_ref, bk_ref, bv_ref,
                      mask_ref,
                      ctx_ref, prob_ref, *, scale):
    """Fused QKV projection + scaled-dot-product attention.

    xq_ref/xk_ref/xv_ref : (B*S, D)      token inputs (query / key / value)
    w*_ref               : (H, D, dh)    per-head projection weights (x @ W)
    b*_ref               : (H, 1, dh)    per-head biases
    mask_ref             : (B, 1, Sk)    float mask, 1.0 == masked key position
    ctx_ref              : (B, H, Sq, dh)
    prob_ref             : (B, H, Sq, Sk)
    """
    B, H, Sq, dh = ctx_ref.shape
    Sk = prob_ref.shape[-1]

    # Hoist full-input loads; everything below stays in vregs/VMEM.
    xq = xq_ref[...]                      # (B*Sq, D)
    xk = xk_ref[...]                      # (B*Sk, D)
    xv = xv_ref[...]                      # (B*Sk, D)

    for h in range(H):                    # unrolled: H=4
        # Project all batches for head h in one MXU pass each: (B*S, D) @ (D, dh)
        q_all = (jnp.dot(xq, wq_ref[h], preferred_element_type=jnp.float32)
                 + bq_ref[h]) * scale     # PyTorch scales the projected query
        k_all = jnp.dot(xk, wk_ref[h], preferred_element_type=jnp.float32) + bk_ref[h]
        v_all = jnp.dot(xv, wv_ref[h], preferred_element_type=jnp.float32) + bv_ref[h]

        for b in range(B):                # unrolled: B=2
            # Sublane-aligned row slices (Sq, Sk are multiples of 8).
            q = q_all[b * Sq:(b + 1) * Sq, :]      # (Sq, dh)
            k = k_all[b * Sk:(b + 1) * Sk, :]      # (Sk, dh)
            v = v_all[b * Sk:(b + 1) * Sk, :]      # (Sk, dh)

            # scores = q @ k^T, contracting last dims (no transpose materialized)
            s = jax.lax.dot_general(q, k, (((1,), (1,)), ((), ())),
                                    preferred_element_type=jnp.float32)  # (Sq, Sk)

            # masked_fill_(attn_mask, -10000.0)
            s = jnp.where(mask_ref[b] > 0.0, jnp.float32(-10000.0), s)

            # softmax(dim=-1), numerically stabilized
            s = s - jnp.max(s, axis=-1, keepdims=True)
            e = jnp.exp(s)
            denom = jnp.sum(e, axis=-1, keepdims=True)
            p = e * pl.reciprocal(denom, approx=False)   # exact; approx=True would
                                                         # use the EUP (noise here)

            prob_ref[b, h] = p
            ctx_ref[b, h] = jnp.dot(p, v, preferred_element_type=jnp.float32)


def _mha_forward(query, key, value, mask_f,
                 wq_h, wk_h, wv_h, bq_h, bk_h, bv_h, *, scale):
    """Jitted wrapper: one pallas_call for the whole forward pass."""
    B, Sq, D = query.shape
    Sk = key.shape[1]
    H, _, dh = wq_h.shape

    kernel = functools.partial(_mha_fused_kernel, scale=scale)
    vmem = pl.BlockSpec(memory_space=pltpu.MemorySpace.VMEM)

    ctx, prob = pl.pallas_call(
        kernel,
        out_shape=(
            jax.ShapeDtypeStruct((B, H, Sq, dh), jnp.float32),
            jax.ShapeDtypeStruct((B, H, Sq, Sk), jnp.float32),
        ),
        in_specs=[vmem] * 10,
        out_specs=(vmem, vmem),
    )(query.reshape(B * Sq, D), key.reshape(B * Sk, D), value.reshape(B * Sk, D),
      wq_h, wk_h, wv_h, bq_h, bk_h, bv_h, mask_f)

    # (B, H, Sq, dh) -> (B, Sq, H*dh); tiny (4 KiB) layout op, fused by XLA/jit.
    context = ctx.transpose(0, 2, 1, 3).reshape(B, Sq, H * dh)
    return context, prob


# --------------------------- MultiHeadAttention -----------------------------

class MultiHeadAttentionPallas:
    def __init__(self, d_model, num_att_heads, key):
        assert d_model % num_att_heads == 0
        self.d_model = d_model
        self.num_att_heads = num_att_heads
        self.d_head = d_model // num_att_heads
        self.scale = float(self.d_head) ** (-0.5)
        H, dh = self.num_att_heads, self.d_head

        k1, k2, k3, k4, k5, k6 = jax.random.split(key, 6)
        std = 0.02
        # nn.Linear weights are (out, in); store transposed (in, out) for x @ W.
        self.wq = jax.random.normal(k1, (d_model, d_model), jnp.float32) * std
        self.bq = jax.random.normal(k2, (1, d_model), jnp.float32) * std
        self.wk = jax.random.normal(k3, (d_model, d_model), jnp.float32) * std
        self.bk = jax.random.normal(k4, (1, d_model), jnp.float32) * std
        self.wv = jax.random.normal(k5, (d_model, d_model), jnp.float32) * std
        self.bv = jax.random.normal(k6, (1, d_model), jnp.float32) * std

        # Per-head layouts for the fused kernel: (H, D, dh) weights, (H, 1, dh) bias.
        self.wq_heads = self.wq.reshape(d_model, H, dh).transpose(1, 0, 2)
        self.wk_heads = self.wk.reshape(d_model, H, dh).transpose(1, 0, 2)
        self.wv_heads = self.wv.reshape(d_model, H, dh).transpose(1, 0, 2)
        self.bq_heads = self.bq.reshape(H, 1, dh)
        self.bk_heads = self.bk.reshape(H, 1, dh)
        self.bv_heads = self.bv.reshape(H, 1, dh)

        self._fwd = jax.jit(functools.partial(_mha_forward, scale=self.scale))

    def __call__(self, query, key, value, attn_mask=None):
        B = query.shape[0]
        Sk = key.shape[1]
        if attn_mask is None:
            mask_f = jnp.zeros((B, 1, Sk), jnp.float32)
        else:
            # PyTorch: attn_mask.unsqueeze(1).unsqueeze(2) -> (B, 1, 1, Sk)
            mask_f = attn_mask.astype(jnp.float32).reshape(B, 1, Sk)
        return self._fwd(query, key, value, mask_f,
                         self.wq_heads, self.wk_heads, self.wv_heads,
                         self.bq_heads, self.bk_heads, self.bv_heads)


# ------------------------------ reference ----------------------------------

def reference_forward(mha, query, key, value, attn_mask):
    B, Sq, D = query.shape
    Sk = key.shape[1]
    H, dh = mha.num_att_heads, mha.d_head
    q = (query.reshape(-1, D) @ mha.wq + mha.bq).reshape(B, Sq, H, dh).transpose(0, 2, 1, 3)
    k = (key.reshape(-1, D) @ mha.wk + mha.bk).reshape(B, Sk, H, dh).transpose(0, 2, 1, 3)
    v = (value.reshape(-1, D) @ mha.wv + mha.bv).reshape(B, Sk, H, dh).transpose(0, 2, 1, 3)
    scores = jnp.einsum("bhqd,bhkd->bhqk", q * mha.scale, k)
    if attn_mask is not None:
        scores = jnp.where(attn_mask.reshape(B, 1, 1, Sk), -10000.0, scores)
    prob = jax.nn.softmax(scores, axis=-1)
    ctx = jnp.einsum("bhqk,bhkd->bhqd", prob, v)
    ctx = ctx.transpose(0, 2, 1, 3).reshape(B, Sq, H * dh)
    return ctx, prob


# --------------------------------- main -------------------------------------

if __name__ == "__main__":
    B, S, d_model, heads = 2, 8, 32, 4
    key0 = jax.random.PRNGKey(0)
    k_q, k_k, k_v, k_w, k_m = jax.random.split(key0, 5)

    query = jax.random.normal(k_q, (B, S, d_model), jnp.float32)
    key_in = jax.random.normal(k_k, (B, S, d_model), jnp.float32)
    value = jax.random.normal(k_v, (B, S, d_model), jnp.float32)
    # Boolean padding mask over key positions (True = masked), like PyTorch.
    attn_mask = jax.random.bernoulli(k_m, 0.25, (B, S))

    mha = MultiHeadAttentionPallas(d_model, heads, k_w)

    # masked path
    context, attn_prob = mha(query, key_in, value, attn_mask)
    context = jax.block_until_ready(context)
    attn_prob = jax.block_until_ready(attn_prob)
    ctx_ref, prob_ref = reference_forward(mha, query, key_in, value, attn_mask)
    assert context.shape == (B, S, d_model)
    assert attn_prob.shape == (B, heads, S, S)
    assert jnp.allclose(context, ctx_ref, atol=1e-5, rtol=1e-5)
    assert jnp.allclose(attn_prob, prob_ref, atol=1e-5, rtol=1e-5)

    # unmasked path (attn_mask=None)
    context2, attn_prob2 = mha(query, key_in, value, None)
    context2 = jax.block_until_ready(context2)
    attn_prob2 = jax.block_until_ready(attn_prob2)
    ctx_ref2, prob_ref2 = reference_forward(mha, query, key_in, value, None)
    assert jnp.allclose(context2, ctx_ref2, atol=1e-5, rtol=1e-5)
    assert jnp.allclose(attn_prob2, prob_ref2, atol=1e-5, rtol=1e-5)

    print("KERNEL_OK")
</pallas_src>

<mosaic_0001>
module attributes {stable_mosaic.version = 11 : i64} {
  func.func @_mha_fused_kernel(%arg0: memref<16x32xf32, #tpu.memory_space<vmem>>, %arg1: memref<16x32xf32, #tpu.memory_space<vmem>>, %arg2: memref<16x32xf32, #tpu.memory_space<vmem>>, %arg3: memref<4x32x8xf32, #tpu.memory_space<vmem>>, %arg4: memref<4x32x8xf32, #tpu.memory_space<vmem>>, %arg5: memref<4x32x8xf32, #tpu.memory_space<vmem>>, %arg6: memref<4x1x8xf32, #tpu.memory_space<vmem>>, %arg7: memref<4x1x8xf32, #tpu.memory_space<vmem>>, %arg8: memref<4x1x8xf32, #tpu.memory_space<vmem>>, %arg9: memref<2x1x8xf32, #tpu.memory_space<vmem>>, %arg10: memref<2x4x8x8xf32, #tpu.memory_space<vmem>>, %arg11: memref<2x4x8x8xf32, #tpu.memory_space<vmem>>) attributes {dimension_semantics = [], scalar_prefetch = 0 : i64, scratch_operands = 0 : i64, tpu.core_type = #tpu.core_type<tc>} {
    %c0 = arith.constant 0 : index
    %c0_0 = arith.constant 0 : index
    %0 = vector.load %arg0[%c0, %c0_0] : memref<16x32xf32, #tpu.memory_space<vmem>>, vector<16x32xf32>
    %c0_1 = arith.constant 0 : index
    %c0_2 = arith.constant 0 : index
    %1 = vector.load %arg1[%c0_1, %c0_2] : memref<16x32xf32, #tpu.memory_space<vmem>>, vector<16x32xf32>
    %c0_3 = arith.constant 0 : index
    %c0_4 = arith.constant 0 : index
    %2 = vector.load %arg2[%c0_3, %c0_4] : memref<16x32xf32, #tpu.memory_space<vmem>>, vector<16x32xf32>
    %c0_5 = arith.constant 0 : index
    %c0_6 = arith.constant 0 : index
    %c0_7 = arith.constant 0 : index
    %3 = vector.load %arg3[%c0_5, %c0_6, %c0_7] : memref<4x32x8xf32, #tpu.memory_space<vmem>>, vector<1x32x8xf32>
    %4 = vector.shape_cast %3 : vector<1x32x8xf32> to vector<32x8xf32>
    %cst = arith.constant dense<0.000000e+00> : vector<16x8xf32>
    %5 = tpu.matmul %0, %4, %cst {dimension_numbers = #tpu.dot_dimension_numbers<[1], [0], [0], [1], [0, 0, 1, 1], [], []>} : vector<16x32xf32>, vector<32x8xf32>, vector<16x8xf32> -> vector<16x8xf32>
    %c0_8 = arith.constant 0 : index
    %c0_9 = arith.constant 0 : index
    %c0_10 = arith.constant 0 : index
    %6 = vector.load %arg6[%c0_8, %c0_9, %c0_10] : memref<4x1x8xf32, #tpu.memory_space<vmem>>, vector<1x1x8xf32>
    %7 = vector.shape_cast %6 : vector<1x1x8xf32> to vector<1x8xf32>
    %8 = vector.broadcast %7 : vector<1x8xf32> to vector<16x8xf32>
    %9 = arith.addf %5, %8 : vector<16x8xf32>
    %cst_11 = arith.constant 0.353553385 : f32
    %10 = vector.broadcast %cst_11 : f32 to vector<16x8xf32>
    %11 = arith.mulf %9, %10 : vector<16x8xf32>
    %c0_12 = arith.constant 0 : index
    %c0_13 = arith.constant 0 : index
    %c0_14 = arith.constant 0 : index
    %12 = vector.load %arg4[%c0_12, %c0_13, %c0_14] : memref<4x32x8xf32, #tpu.memory_space<vmem>>, vector<1x32x8xf32>
    %13 = vector.shape_cast %12 : vector<1x32x8xf32> to vector<32x8xf32>
    %cst_15 = arith.constant dense<0.000000e+00> : vector<16x8xf32>
    %14 = tpu.matmul %1, %13, %cst_15 {dimension_numbers = #tpu.dot_dimension_numbers<[1], [0], [0], [1], [0, 0, 1, 1], [], []>} : vector<16x32xf32>, vector<32x8xf32>, vector<16x8xf32> -> vector<16x8xf32>
    %c0_16 = arith.constant 0 : index
    %c0_17 = arith.constant 0 : index
    %c0_18 = arith.constant 0 : index
    %15 = vector.load %arg7[%c0_16, %c0_17, %c0_18] : memref<4x1x8xf32, #tpu.memory_space<vmem>>, vector<1x1x8xf32>
    %16 = vector.shape_cast %15 : vector<1x1x8xf32> to vector<1x8xf32>
    %17 = vector.broadcast %16 : vector<1x8xf32> to vector<16x8xf32>
    %18 = arith.addf %14, %17 : vector<16x8xf32>
    %c0_19 = arith.constant 0 : index
    %c0_20 = arith.constant 0 : index
    %c0_21 = arith.constant 0 : index
    %19 = vector.load %arg5[%c0_19, %c0_20, %c0_21] : memref<4x32x8xf32, #tpu.memory_space<vmem>>, vector<1x32x8xf32>
    %20 = vector.shape_cast %19 : vector<1x32x8xf32> to vector<32x8xf32>
    %cst_22 = arith.constant dense<0.000000e+00> : vector<16x8xf32>
    %21 = tpu.matmul %2, %20, %cst_22 {dimension_numbers = #tpu.dot_dimension_numbers<[1], [0], [0], [1], [0, 0, 1, 1], [], []>} : vector<16x32xf32>, vector<32x8xf32>, vector<16x8xf32> -> vector<16x8xf32>
    %c0_23 = arith.constant 0 : index
    %c0_24 = arith.constant 0 : index
    %c0_25 = arith.constant 0 : index
    %22 = vector.load %arg8[%c0_23, %c0_24, %c0_25] : memref<4x1x8xf32, #tpu.memory_space<vmem>>, vector<1x1x8xf32>
    %23 = vector.shape_cast %22 : vector<1x1x8xf32> to vector<1x8xf32>
    %24 = vector.broadcast %23 : vector<1x8xf32> to vector<16x8xf32>
    %25 = arith.addf %21, %24 : vector<16x8xf32>
    %26 = vector.extract_strided_slice %11 {offsets = [0, 0], sizes = [8, 8], strides = [1, 1]} : vector<16x8xf32> to vector<8x8xf32>
    %27 = vector.extract_strided_slice %18 {offsets = [0, 0], sizes = [8, 8], strides = [1, 1]} : vector<16x8xf32> to vector<8x8xf32>
    %28 = vector.extract_strided_slice %25 {offsets = [0, 0], sizes = [8, 8], strides = [1, 1]} : vector<16x8xf32> to vector<8x8xf32>
    %cst_26 = arith.constant dense<0.000000e+00> : vector<8x8xf32>
    %29 = tpu.matmul %26, %27, %cst_26 {dimension_numbers = #tpu.dot_dimension_numbers<[1], [1], [0], [0], [0, 0, 1, 0], [], []>} : vector<8x8xf32>, vector<8x8xf32>, vector<8x8xf32> -> vector<8x8xf32>
    %c0_27 = arith.constant 0 : index
    %c0_28 = arith.constant 0 : index
    %c0_29 = arith.constant 0 : index
    %30 = vector.load %arg9[%c0_27, %c0_28, %c0_29] : memref<2x1x8xf32, #tpu.memory_space<vmem>>, vector<1x1x8xf32>
    %31 = vector.shape_cast %30 : vector<1x1x8xf32> to vector<1x8xf32>
    %cst_30 = arith.constant 0.000000e+00 : f32
    %32 = vector.broadcast %cst_30 : f32 to vector<1x8xf32>
    %33 = arith.cmpf ogt, %31, %32 : vector<1x8xf32>
    %cst_31 = arith.constant -1.000000e+04 : f32
    %34 = vector.shape_cast %33 : vector<1x8xi1> to vector<1x8xi1>
    %35 = vector.broadcast %34 : vector<1x8xi1> to vector<8x8xi1>
    %36 = vector.broadcast %cst_31 : f32 to vector<8x8xf32>
    %37 = arith.select %35, %36, %29 : vector<8x8xi1>, vector<8x8xf32>
    %cst_32 = arith.constant dense<0xFF800000> : vector<8xf32>
    %38 = vector.multi_reduction <maximumf>, %37, %cst_32 [1] : vector<8x8xf32> to vector<8xf32>
    %39 = vector.shape_cast %38 : vector<8xf32> to vector<8x1xf32>
    %40 = vector.broadcast %39 : vector<8x1xf32> to vector<8x8xf32>
    %41 = arith.subf %37, %40 : vector<8x8xf32>
    %42 = math.exp %41 : vector<8x8xf32>
    %cst_33 = arith.constant dense<0.000000e+00> : vector<8xf32>
    %43 = vector.multi_reduction <add>, %42, %cst_33 [1] : vector<8x8xf32> to vector<8xf32>
    %44 = vector.shape_cast %43 : vector<8xf32> to vector<8x1xf32>
    %45 = tpu.reciprocal %44 : vector<8x1xf32> -> vector<8x1xf32>
    %46 = vector.broadcast %45 : vector<8x1xf32> to vector<8x8xf32>
    %47 = arith.mulf %42, %46 : vector<8x8xf32>
    %c0_34 = arith.constant 0 : index
    %c0_35 = arith.constant 0 : index
    %c0_36 = arith.constant 0 : index
    %c0_37 = arith.constant 0 : index
    %48 = vector.load %arg11[%c0_34, %c0_35, %c0_36, %c0_37] : memref<2x4x8x8xf32, #tpu.memory_space<vmem>>, vector<1x1x8x8xf32>
    %49 = vector.shape_cast %48 : vector<1x1x8x8xf32> to vector<8x8xf32>
    %50 = vector.shape_cast %47 : vector<8x8xf32> to vector<1x1x8x8xf32>
    tpu.vector_store %arg11[%c0_34, %c0_35, %c0_36, %c0_37], %50 {strides = array<i32>} : memref<2x4x8x8xf32, #tpu.memory_space<vmem>>, vector<1x1x8x8xf32>,
    %cst_38 = arith.constant dense<0.000000e+00> : vector<8x8xf32>
    %51 = tpu.matmul %47, %28, %cst_38 {dimension_numbers = #tpu.dot_dimension_numbers<[1], [0], [0], [1], [0, 0, 1, 1], [], []>} : vector<8x8xf32>, vector<8x8xf32>, vector<8x8xf32> -> vector<8x8xf32>
    %c0_39 = arith.constant 0 : index
    %c0_40 = arith.constant 0 : index
    %c0_41 = arith.constant 0 : index
    %c0_42 = arith.constant 0 : index
    %52 = vector.load %arg10[%c0_39, %c0_40, %c0_41, %c0_42] : memref<2x4x8x8xf32, #tpu.memory_space<vmem>>, vector<1x1x8x8xf32>
    %53 = vector.shape_cast %52 : vector<1x1x8x8xf32> to vector<8x8xf32>
    %54 = vector.shape_cast %51 : vector<8x8xf32> to vector<1x1x8x8xf32>
    tpu.vector_store %arg10[%c0_39, %c0_40, %c0_41, %c0_42], %54 {strides = array<i32>} : memref<2x4x8x8xf32, #tpu.memory_space<vmem>>, vector<1x1x8x8xf32>,
    %55 = vector.extract_strided_slice %11 {offsets = [8, 0], sizes = [8, 8], strides = [1, 1]} : vector<16x8xf32> to vector<8x8xf32>
    %56 = vector.extract_strided_slice %18 {offsets = [8, 0], sizes = [8, 8], strides = [1, 1]} : vector<16x8xf32> to vector<8x8xf32>
    %57 = vector.extract_strided_slice %25 {offsets = [8, 0], sizes = [8, 8], strides = [1, 1]} : vector<16x8xf32> to vector<8x8xf32>
    %cst_43 = arith.constant dense<0.000000e+00> : vector<8x8xf32>
    %58 = tpu.matmul %55, %56, %cst_43 {dimension_numbers = #tpu.dot_dimension_numbers<[1], [1], [0], [0], [0, 0, 1, 0], [], []>} : vector<8x8xf32>, vector<8x8xf32>, vector<8x8xf32> -> vector<8x8xf32>
    %c1 = arith.constant 1 : index
    %c0_44 = arith.constant 0 : index
    %c0_45 = arith.constant 0 : index
    %59 = vector.load %arg9[%c1, %c0_44, %c0_45] : memref<2x1x8xf32, #tpu.memory_space<vmem>>, vector<1x1x8xf32>
    %60 = vector.shape_cast %59 : vector<1x1x8xf32> to vector<1x8xf32>
    %cst_46 = arith.constant 0.000000e+00 : f32
    %61 = vector.broadcast %cst_46 : f32 to vector<1x8xf32>
    %62 = arith.cmpf ogt, %60, %61 : vector<1x8xf32>
    %cst_47 = arith.constant -1.000000e+04 : f32
    %63 = vector.shape_cast %62 : vector<1x8xi1> to vector<1x8xi1>
    %64 = vector.broadcast %63 : vector<1x8xi1> to vector<8x8xi1>
    %65 = vector.broadcast %cst_47 : f32 to vector<8x8xf32>
    %66 = arith.select %64, %65, %58 : vector<8x8xi1>, vector<8x8xf32>
    %cst_48 = arith.constant dense<0xFF800000> : vector<8xf32>
    %67 = vector.multi_reduction <maximumf>, %66, %cst_48 [1] : vector<8x8xf32> to vector<8xf32>
    %68 = vector.shape_cast %67 : vector<8xf32> to vector<8x1xf32>
    %69 = vector.broadcast %68 : vector<8x1xf32> to vector<8x8xf32>
    %70 = arith.subf %66, %69 : vector<8x8xf32>
    %71 = math.exp %70 : vector<8x8xf32>
    %cst_49 = arith.constant dense<0.000000e+00> : vector<8xf32>
    %72 = vector.multi_reduction <add>, %71, %cst_49 [1] : vector<8x8xf32> to vector<8xf32>
    %73 = vector.shape_cast %72 : vector<8xf32> to vector<8x1xf32>
    %74 = tpu.reciprocal %73 : vector<8x1xf32> -> vector<8x1xf32>
    %75 = vector.broadcast %74 : vector<8x1xf32> to vector<8x8xf32>
    %76 = arith.mulf %71, %75 : vector<8x8xf32>
    %c1_50 = arith.constant 1 : index
    %c0_51 = arith.constant 0 : index
    %c0_52 = arith.constant 0 : index
    %c0_53 = arith.constant 0 : index
    %77 = vector.load %arg11[%c1_50, %c0_51, %c0_52, %c0_53] : memref<2x4x8x8xf32, #tpu.memory_space<vmem>>, vector<1x1x8x8xf32>
    %78 = vector.shape_cast %77 : vector<1x1x8x8xf32> to vector<8x8xf32>
    %79 = vector.shape_cast %76 : vector<8x8xf32> to vector<1x1x8x8xf32>
    tpu.vector_store %arg11[%c1_50, %c0_51, %c0_52, %c0_53], %79 {strides = array<i32>} : memref<2x4x8x8xf32, #tpu.memory_space<vmem>>, vector<1x1x8x8xf32>,
    %cst_54 = arith.constant dense<0.000000e+00> : vector<8x8xf32>
    %80 = tpu.matmul %76, %57, %cst_54 {dimension_numbers = #tpu.dot_dimension_numbers<[1], [0], [0], [1], [0, 0, 1, 1], [], []>} : vector<8x8xf32>, vector<8x8xf32>, vector<8x8xf32> -> vector<8x8xf32>
    %c1_55 = arith.constant 1 : index
    %c0_56 = arith.constant 0 : index
    %c0_57 = arith.constant 0 : index
    %c0_58 = arith.constant 0 : index
    %81 = vector.load %arg10[%c1_55, %c0_56, %c0_57, %c0_58] : memref<2x4x8x8xf32, #tpu.memory_space<vmem>>, vector<1x1x8x8xf32>
    %82 = vector.shape_cast %81 : vector<1x1x8x8xf32> to vector<8x8xf32>
    %83 = vector.shape_cast %80 : vector<8x8xf32> to vector<1x1x8x8xf32>
    tpu.vector_store %arg10[%c1_55, %c0_56, %c0_57, %c0_58], %83 {strides = array<i32>} : memref<2x4x8x8xf32, #tpu.memory_space<vmem>>, vector<1x1x8x8xf32>,
    %c1_59 = arith.constant 1 : index
    %c0_60 = arith.constant 0 : index
    %c0_61 = arith.constant 0 : index
    %84 = vector.load %arg3[%c1_59, %c0_60, %c0_61] : memref<4x32x8xf32, #tpu.memory_space<vmem>>, vector<1x32x8xf32>
    %85 = vector.shape_cast %84 : vector<1x32x8xf32> to vector<32x8xf32>
    %cst_62 = arith.constant dense<0.000000e+00> : vector<16x8xf32>
    %86 = tpu.matmul %0, %85, %cst_62 {dimension_numbers = #tpu.dot_dimension_numbers<[1], [0], [0], [1], [0, 0, 1, 1], [], []>} : vector<16x32xf32>, vector<32x8xf32>, vector<16x8xf32> -> vector<16x8xf32>
    %c1_63 = arith.constant 1 : index
    %c0_64 = arith.constant 0 : index
    %c0_65 = arith.constant 0 : index
    %87 = vector.load %arg6[%c1_63, %c0_64, %c0_65] : memref<4x1x8xf32, #tpu.memory_space<vmem>>, vector<1x1x8xf32>
    %88 = vector.shape_cast %87 : vector<1x1x8xf32> to vector<1x8xf32>
    %89 = vector.broadcast %88 : vector<1x8xf32> to vector<16x8xf32>
    %90 = arith.addf %86, %89 : vector<16x8xf32>
    %cst_66 = arith.constant 0.353553385 : f32
    %91 = vector.broadcast %cst_66 : f32 to vector<16x8xf32>
    %92 = arith.mulf %90, %91 : vector<16x8xf32>
    %c1_67 = arith.constant 1 : index
    %c0_68 = arith.constant 0 : index
    %c0_69 = arith.constant 0 : index
    %93 = vector.load %arg4[%c1_67, %c0_68, %c0_69] : memref<4x32x8xf32, #tpu.memory_space<vmem>>, vector<1x32x8xf32>
    %94 = vector.shape_cast %93 : vector<1x32x8xf32> to vector<32x8xf32>
    %cst_70 = arith.constant dense<0.000000e+00> : vector<16x8xf32>
    %95 = tpu.matmul %1, %94, %cst_70 {dimension_numbers = #tpu.dot_dimension_numbers<[1], [0], [0], [1], [0, 0, 1, 1], [], []>} : vector<16x32xf32>, vector<32x8xf32>, vector<16x8xf32> -> vector<16x8xf32>
    %c1_71 = arith.constant 1 : index
    %c0_72 = arith.constant 0 : index
    %c0_73 = arith.constant 0 : index
    %96 = vector.load %arg7[%c1_71, %c0_72, %c0_73] : memref<4x1x8xf32, #tpu.memory_space<vmem>>, vector<1x1x8xf32>
    %97 = vector.shape_cast %96 : vector<1x1x8xf32> to vector<1x8xf32>
    %98 = vector.broadcast %97 : vector<1x8xf32> to vector<16x8xf32>
    %99 = arith.addf %95, %98 : vector<16x8xf32>
    %c1_74 = arith.constant 1 : index
    %c0_75 = arith.constant 0 : index
    %c0_76 = arith.constant 0 : index
    %100 = vector.load %arg5[%c1_74, %c0_75, %c0_76] : memref<4x32x8xf32, #tpu.memory_space<vmem>>, vector<1x32x8xf32>
    %101 = vector.shape_cast %100 : vector<1x32x8xf32> to vector<32x8xf32>
    %cst_77 = arith.constant dense<0.000000e+00> : vector<16x8xf32>
    %102 = tpu.matmul %2, %101, %cst_77 {dimension_numbers = #tpu.dot_dimension_numbers<[1], [0], [0], [1], [0, 0, 1, 1], [], []>} : vector<16x32xf32>, vector<32x8xf32>, vector<16x8xf32> -> vector<16x8xf32>
    %c1_78 = arith.constant 1 : index
    %c0_79 = arith.constant 0 : index
    %c0_80 = arith.constant 0 : index
    %103 = vector.load %arg8[%c1_78, %c0_79, %c0_80] : memref<4x1x8xf32, #tpu.memory_space<vmem>>, vector<1x1x8xf32>
    %104 = vector.shape_cast %103 : vector<1x1x8xf32> to vector<1x8xf32>
    %105 = vector.broadcast %104 : vector<1x8xf32> to vector<16x8xf32>
    %106 = arith.addf %102, %105 : vector<16x8xf32>
    %107 = vector.extract_strided_slice %92 {offsets = [0, 0], sizes = [8, 8], strides = [1, 1]} : vector<16x8xf32> to vector<8x8xf32>
    %108 = vector.extract_strided_slice %99 {offsets = [0, 0], sizes = [8, 8], strides = [1, 1]} : vector<16x8xf32> to vector<8x8xf32>
    %109 = vector.extract_strided_slice %106 {offsets = [0, 0], sizes = [8, 8], strides = [1, 1]} : vector<16x8xf32> to vector<8x8xf32>
    %cst_81 = arith.constant dense<0.000000e+00> : vector<8x8xf32>
    %110 = tpu.matmul %107, %108, %cst_81 {dimension_numbers = #tpu.dot_dimension_numbers<[1], [1], [0], [0], [0, 0, 1, 0], [], []>} : vector<8x8xf32>, vector<8x8xf32>, vector<8x8xf32> -> vector<8x8xf32>
    %c0_82 = arith.constant 0 : index
    %c0_83 = arith.constant 0 : index
    %c0_84 = arith.constant 0 : index
    %111 = vector.load %arg9[%c0_82, %c0_83, %c0_84] : memref<2x1x8xf32, #tpu.memory_space<vmem>>, vector<1x1x8xf32>
    %112 = vector.shape_cast %111 : vector<1x1x8xf32> to vector<1x8xf32>
    %cst_85 = arith.constant 0.000000e+00 : f32
    %113 = vector.broadcast %cst_85 : f32 to vector<1x8xf32>
    %114 = arith.cmpf ogt, %112, %113 : vector<1x8xf32>
    %cst_86 = arith.constant -1.000000e+04 : f32
    %115 = vector.shape_cast %114 : vector<1x8xi1> to vector<1x8xi1>
    %116 = vector.broadcast %115 : vector<1x8xi1> to vector<8x8xi1>
    %117 = vector.broadcast %cst_86 : f32 to vector<8x8xf32>
    %118 = arith.select %116, %117, %110 : vector<8x8xi1>, vector<8x8xf32>
    %cst_87 = arith.constant dense<0xFF800000> : vector<8xf32>
    %119 = vector.multi_reduction <maximumf>, %118, %cst_87 [1] : vector<8x8xf32> to vector<8xf32>
    %120 = vector.shape_cast %119 : vector<8xf32> to vector<8x1xf32>
    %121 = vector.broadcast %120 : vector<8x1xf32> to vector<8x8xf32>
    %122 = arith.subf %118, %121 : vector<8x8xf32>
    %123 = math.exp %122 : vector<8x8xf32>
    %cst_88 = arith.constant dense<0.000000e+00> : vector<8xf32>
    %124 = vector.multi_reduction <add>, %123, %cst_88 [1] : vector<8x8xf32> to vector<8xf32>
    %125 = vector.shape_cast %124 : vector<8xf32> to vector<8x1xf32>
    %126 = tpu.reciprocal %125 : vector<8x1xf32> -> vector<8x1xf32>
    %127 = vector.broadcast %126 : vector<8x1xf32> to vector<8x8xf32>
    %128 = arith.mulf %123, %127 : vector<8x8xf32>
    %c0_89 = arith.constant 0 : index
    %c1_90 = arith.constant 1 : index
    %c0_91 = arith.constant 0 : index
    %c0_92 = arith.constant 0 : index
    %129 = vector.load %arg11[%c0_89, %c1_90, %c0_91, %c0_92] : memref<2x4x8x8xf32, #tpu.memory_space<vmem>>, vector<1x1x8x8xf32>
    %130 = vector.shape_cast %129 : vector<1x1x8x8xf32> to vector<8x8xf32>
    %131 = vector.shape_cast %128 : vector<8x8xf32> to vector<1x1x8x8xf32>
    tpu.vector_store %arg11[%c0_89, %c1_90, %c0_91, %c0_92], %131 {strides = array<i32>} : memref<2x4x8x8xf32, #tpu.memory_space<vmem>>, vector<1x1x8x8xf32>,
    %cst_93 = arith.constant dense<0.000000e+00> : vector<8x8xf32>
    %132 = tpu.matmul %128, %109, %cst_93 {dimension_numbers = #tpu.dot_dimension_numbers<[1], [0], [0], [1], [0, 0, 1, 1], [], []>} : vector<8x8xf32>, vector<8x8xf32>, vector<8x8xf32> -> vector<8x8xf32>
    %c0_94 = arith.constant 0 : index
    %c1_95 = arith.constant 1 : index
    %c0_96 = arith.constant 0 : index
    %c0_97 = arith.constant 0 : index
    %133 = vector.load %arg10[%c0_94, %c1_95, %c0_96, %c0_97] : memref<2x4x8x8xf32, #tpu.memory_space<vmem>>, vector<1x1x8x8xf32>
    %134 = vector.shape_cast %133 : vector<1x1x8x8xf32> to vector<8x8xf32>
    %135 = vector.shape_cast %132 : vector<8x8xf32> to vector<1x1x8x8xf32>
    tpu.vector_store %arg10[%c0_94, %c1_95, %c0_96, %c0_97], %135 {strides = array<i32>} : memref<2x4x8x8xf32, #tpu.memory_space<vmem>>, vector<1x1x8x8xf32>,
    %136 = vector.extract_strided_slice %92 {offsets = [8, 0], sizes = [8, 8], strides = [1, 1]} : vector<16x8xf32> to vector<8x8xf32>
    %137 = vector.extract_strided_slice %99 {offsets = [8, 0], sizes = [8, 8], strides = [1, 1]} : vector<16x8xf32> to vector<8x8xf32>
    %138 = vector.extract_strided_slice %106 {offsets = [8, 0], sizes = [8, 8], strides = [1, 1]} : vector<16x8xf32> to vector<8x8xf32>
    %cst_98 = arith.constant dense<0.000000e+00> : vector<8x8xf32>
    %139 = tpu.matmul %136, %137, %cst_98 {dimension_numbers = #tpu.dot_dimension_numbers<[1], [1], [0], [0], [0, 0, 1, 0], [], []>} : vector<8x8xf32>, vector<8x8xf32>, vector<8x8xf32> -> vector<8x8xf32>
    %c1_99 = arith.constant 1 : index
    %c0_100 = arith.constant 0 : index
    %c0_101 = arith.constant 0 : index
    %140 = vector.load %arg9[%c1_99, %c0_100, %c0_101] : memref<2x1x8xf32, #tpu.memory_space<vmem>>, vector<1x1x8xf32>
    %141 = vector.shape_cast %140 : vector<1x1x8xf32> to vector<1x8xf32>
    %cst_102 = arith.constant 0.000000e+00 : f32
    %142 = vector.broadcast %cst_102 : f32 to vector<1x8xf32>
    %143 = arith.cmpf ogt, %141, %142 : vector<1x8xf32>
    %cst_103 = arith.constant -1.000000e+04 : f32
    %144 = vector.shape_cast %143 : vector<1x8xi1> to vector<1x8xi1>
    %145 = vector.broadcast %144 : vector<1x8xi1> to vector<8x8xi1>
    %146 = vector.broadcast %cst_103 : f32 to vector<8x8xf32>
    %147 = arith.select %145, %146, %139 : vector<8x8xi1>, vector<8x8xf32>
    %cst_104 = arith.constant dense<0xFF800000> : vector<8xf32>
    %148 = vector.multi_reduction <maximumf>, %147, %cst_104 [1] : vector<8x8xf32> to vector<8xf32>
    %149 = vector.shape_cast %148 : vector<8xf32> to vector<8x1xf32>
    %150 = vector.broadcast %149 : vector<8x1xf32> to vector<8x8xf32>
    %151 = arith.subf %147, %150 : vector<8x8xf32>
    %152 = math.exp %151 : vector<8x8xf32>
    %cst_105 = arith.constant dense<0.000000e+00> : vector<8xf32>
    %153 = vector.multi_reduction <add>, %152, %cst_105 [1] : vector<8x8xf32> to vector<8xf32>
    %154 = vector.shape_cast %153 : vector<8xf32> to vector<8x1xf32>
    %155 = tpu.reciprocal %154 : vector<8x1xf32> -> vector<8x1xf32>
    %156 = vector.broadcast %155 : vector<8x1xf32> to vector<8x8xf32>
    %157 = arith.mulf %152, %156 : vector<8x8xf32>
    %c1_106 = arith.constant 1 : index
    %c1_107 = arith.constant 1 : index
    %c0_108 = arith.constant 0 : index
    %c0_109 = arith.constant 0 : index
    %158 = vector.load %arg11[%c1_106, %c1_107, %c0_108, %c0_109] : memref<2x4x8x8xf32, #tpu.memory_space<vmem>>, vector<1x1x8x8xf32>
    %159 = vector.shape_cast %158 : vector<1x1x8x8xf32> to vector<8x8xf32>
    %160 = vector.shape_cast %157 : vector<8x8xf32> to vector<1x1x8x8xf32>
    tpu.vector_store %arg11[%c1_106, %c1_107, %c0_108, %c0_109], %160 {strides = array<i32>} : memref<2x4x8x8xf32, #tpu.memory_space<vmem>>, vector<1x1x8x8xf32>,
    %cst_110 = arith.constant dense<0.000000e+00> : vector<8x8xf32>
    %161 = tpu.matmul %157, %138, %cst_110 {dimension_numbers = #tpu.dot_dimension_numbers<[1], [0], [0], [1], [0, 0, 1, 1], [], []>} : vector<8x8xf32>, vector<8x8xf32>, vector<8x8xf32> -> vector<8x8xf32>
    %c1_111 = arith.constant 1 : index
    %c1_112 = arith.constant 1 : index
    %c0_113 = arith.constant 0 : index
    %c0_114 = arith.constant 0 : index
    %162 = vector.load %arg10[%c1_111, %c1_112, %c0_113, %c0_114] : memref<2x4x8x8xf32, #tpu.memory_space<vmem>>, vector<1x1x8x8xf32>
    %163 = vector.shape_cast %162 : vector<1x1x8x8xf32> to vector<8x8xf32>
    %164 = vector.shape_cast %161 : vector<8x8xf32> to vector<1x1x8x8xf32>
    tpu.vector_store %arg10[%c1_111, %c1_112, %c0_113, %c0_114], %164 {strides = array<i32>} : memref<2x4x8x8xf32, #tpu.memory_space<vmem>>, vector<1x1x8x8xf32>,
    %c2 = arith.constant 2 : index
    %c0_115 = arith.constant 0 : index
    %c0_116 = arith.constant 0 : index
    %165 = vector.load %arg3[%c2, %c0_115, %c0_116] : memref<4x32x8xf32, #tpu.memory_space<vmem>>, vector<1x32x8xf32>
    %166 = vector.shape_cast %165 : vector<1x32x8xf32> to vector<32x8xf32>
    %cst_117 = arith.constant dense<0.000000e+00> : vector<16x8xf32>
    %167 = tpu.matmul %0, %166, %cst_117 {dimension_numbers = #tpu.dot_dimension_numbers<[1], [0], [0], [1], [0, 0, 1, 1], [], []>} : vector<16x32xf32>, vector<32x8xf32>, vector<16x8xf32> -> vector<16x8xf32>
    %c2_118 = arith.constant 2 : index
    %c0_119 = arith.constant 0 : index
    %c0_120 = arith.constant 0 : index
    %168 = vector.load %arg6[%c2_118, %c0_119, %c0_120] : memref<4x1x8xf32, #tpu.memory_space<vmem>>, vector<1x1x8xf32>
    %169 = vector.shape_cast %168 : vector<1x1x8xf32> to vector<1x8xf32>
    %170 = vector.broadcast %169 : vector<1x8xf32> to vector<16x8xf32>
    %171 = arith.addf %167, %170 : vector<16x8xf32>
    %cst_121 = arith.constant 0.353553385 : f32
    %172 = vector.broadcast %cst_121 : f32 to vector<16x8xf32>
    %173 = arith.mulf %171, %172 : vector<16x8xf32>
    %c2_122 = arith.constant 2 : index
    %c0_123 = arith.constant 0 : index
    %c0_124 = arith.constant 0 : index
    %174 = vector.load %arg4[%c2_122, %c0_123, %c0_124] : memref<4x32x8xf32, #tpu.memory_space<vmem>>, vector<1x32x8xf32>
    %175 = vector.shape_cast %174 : vector<1x32x8xf32> to vector<32x8xf32>
    %cst_125 = arith.constant dense<0.000000e+00> : vector<16x8xf32>
    %176 = tpu.matmul %1, %175, %cst_125 {dimension_numbers = #tpu.dot_dimension_numbers<[1], [0], [0], [1], [0, 0, 1, 1], [], []>} : vector<16x32xf32>, vector<32x8xf32>, vector<16x8xf32> -> vector<16x8xf32>
    %c2_126 = arith.constant 2 : index
    %c0_127 = arith.constant 0 : index
    %c0_128 = arith.constant 0 : index
    %177 = vector.load %arg7[%c2_126, %c0_127, %c0_128] : memref<4x1x8xf32, #tpu.memory_space<vmem>>, vector<1x1x8xf32>
    %178 = vector.shape_cast %177 : vector<1x1x8xf32> to vector<1x8xf32>
    %179 = vector.broadcast %178 : vector<1x8xf32> to vector<16x8xf32>
    %180 = arith.addf %176, %179 : vector<16x8xf32>
    %c2_129 = arith.constant 2 : index
    %c0_130 = arith.constant 0 : index
    %c0_131 = arith.constant 0 : index
    %181 = vector.load %arg5[%c2_129, %c0_130, %c0_131] : memref<4x32x8xf32, #tpu.memory_space<vmem>>, vector<1x32x8xf32>
    %182 = vector.shape_cast %181 : vector<1x32x8xf32> to vector<32x8xf32>
    %cst_132 = arith.constant dense<0.000000e+00> : vector<16x8xf32>
    %183 = tpu.matmul %2, %182, %cst_132 {dimension_numbers = #tpu.dot_dimension_numbers<[1], [0], [0], [1], [0, 0, 1, 1], [], []>} : vector<16x32xf32>, vector<32x8xf32>, vector<16x8xf32> -> vector<16x8xf32>
    %c2_133 = arith.constant 2 : index
    %c0_134 = arith.constant 0 : index
    %c0_135 = arith.constant 0 : index
    %184 = vector.load %arg8[%c2_133, %c0_134, %c0_135] : memref<4x1x8xf32, #tpu.memory_space<vmem>>, vector<1x1x8xf32>
    %185 = vector.shape_cast %184 : vector<1x1x8xf32> to vector<1x8xf32>
    %186 = vector.broadcast %185 : vector<1x8xf32> to vector<16x8xf32>
    %187 = arith.addf %183, %186 : vector<16x8xf32>
    %188 = vector.extract_strided_slice %173 {offsets = [0, 0], sizes = [8, 8], strides = [1, 1]} : vector<16x8xf32> to vector<8x8xf32>
    %189 = vector.extract_strided_slice %180 {offsets = [0, 0], sizes = [8, 8], strides = [1, 1]} : vector<16x8xf32> to vector<8x8xf32>
    %190 = vector.extract_strided_slice %187 {offsets = [0, 0], sizes = [8, 8], strides = [1, 1]} : vector<16x8xf32> to vector<8x8xf32>
    %cst_136 = arith.constant dense<0.000000e+00> : vector<8x8xf32>
    %191 = tpu.matmul %188, %189, %cst_136 {dimension_numbers = #tpu.dot_dimension_numbers<[1], [1], [0], [0], [0, 0, 1, 0], [], []>} : vector<8x8xf32>, vector<8x8xf32>, vector<8x8xf32> -> vector<8x8xf32>
    %c0_137 = arith.constant 0 : index
    %c0_138 = arith.constant 0 : index
    %c0_139 = arith.constant 0 : index
    %192 = vector.load %arg9[%c0_137, %c0_138, %c0_139] : memref<2x1x8xf32, #tpu.memory_space<vmem>>, vector<1x1x8xf32>
    %193 = vector.shape_cast %192 : vector<1x1x8xf32> to vector<1x8xf32>
    %cst_140 = arith.constant 0.000000e+00 : f32
    %194 = vector.broadcast %cst_140 : f32 to vector<1x8xf32>
    %195 = arith.cmpf ogt, %193, %194 : vector<1x8xf32>
    %cst_141 = arith.constant -1.000000e+04 : f32
    %196 = vector.shape_cast %195 : vector<1x8xi1> to vector<1x8xi1>
    %197 = vector.broadcast %196 : vector<1x8xi1> to vector<8x8xi1>
    %198 = vector.broadcast %cst_141 : f32 to vector<8x8xf32>
    %199 = arith.select %197, %198, %191 : vector<8x8xi1>, vector<8x8xf32>
    %cst_142 = arith.constant dense<0xFF800000> : vector<8xf32>
    %200 = vector.multi_reduction <maximumf>, %199, %cst_142 [1] : vector<8x8xf32> to vector<8xf32>
    %201 = vector.shape_cast %200 : vector<8xf32> to vector<8x1xf32>
    %202 = vector.broadcast %201 : vector<8x1xf32> to vector<8x8xf32>
    %203 = arith.subf %199, %202 : vector<8x8xf32>
    %204 = math.exp %203 : vector<8x8xf32>
    %cst_143 = arith.constant dense<0.000000e+00> : vector<8xf32>
    %205 = vector.multi_reduction <add>, %204, %cst_143 [1] : vector<8x8xf32> to vector<8xf32>
    %206 = vector.shape_cast %205 : vector<8xf32> to vector<8x1xf32>
    %207 = tpu.reciprocal %206 : vector<8x1xf32> -> vector<8x1xf32>
    %208 = vector.broadcast %207 : vector<8x1xf32> to vector<8x8xf32>
    %209 = arith.mulf %204, %208 : vector<8x8xf32>
    %c0_144 = arith.constant 0 : index
    %c2_145 = arith.constant 2 : index
    %c0_146 = arith.constant 0 : index
    %c0_147 = arith.constant 0 : index
    %210 = vector.load %arg11[%c0_144, %c2_145, %c0_146, %c0_147] : memref<2x4x8x8xf32, #tpu.memory_space<vmem>>, vector<1x1x8x8xf32>
    %211 = vector.shape_cast %210 : vector<1x1x8x8xf32> to vector<8x8xf32>
    %212 = vector.shape_cast %209 : vector<8x8xf32> to vector<1x1x8x8xf32>
    tpu.vector_store %arg11[%c0_144, %c2_145, %c0_146, %c0_147], %212 {strides = array<i32>} : memref<2x4x8x8xf32, #tpu.memory_space<vmem>>, vector<1x1x8x8xf32>,
    %cst_148 = arith.constant dense<0.000000e+00> : vector<8x8xf32>
    %213 = tpu.matmul %209, %190, %cst_148 {dimension_numbers = #tpu.dot_dimension_numbers<[1], [0], [0], [1], [0, 0, 1, 1], [], []>} : vector<8x8xf32>, vector<8x8xf32>, vector<8x8xf32> -> vector<8x8xf32>
    %c0_149 = arith.constant 0 : index
    %c2_150 = arith.constant 2 : index
    %c0_151 = arith.constant 0 : index
    %c0_152 = arith.constant 0 : index
    %214 = vector.load %arg10[%c0_149, %c2_150, %c0_151, %c0_152] : memref<2x4x8x8xf32, #tpu.memory_space<vmem>>, vector<1x1x8x8xf32>
    %215 = vector.shape_cast %214 : vector<1x1x8x8xf32> to vector<8x8xf32>
    %216 = vector.shape_cast %213 : vector<8x8xf32> to vector<1x1x8x8xf32>
    tpu.vector_store %arg10[%c0_149, %c2_150, %c0_151, %c0_152], %216 {strides = array<i32>} : memref<2x4x8x8xf32, #tpu.memory_space<vmem>>, vector<1x1x8x8xf32>,
    %217 = vector.extract_strided_slice %173 {offsets = [8, 0], sizes = [8, 8], strides = [1, 1]} : vector<16x8xf32> to vector<8x8xf32>
    %218 = vector.extract_strided_slice %180 {offsets = [8, 0], sizes = [8, 8], strides = [1, 1]} : vector<16x8xf32> to vector<8x8xf32>
    %219 = vector.extract_strided_slice %187 {offsets = [8, 0], sizes = [8, 8], strides = [1, 1]} : vector<16x8xf32> to vector<8x8xf32>
    %cst_153 = arith.constant dense<0.000000e+00> : vector<8x8xf32>
    %220 = tpu.matmul %217, %218, %cst_153 {dimension_numbers = #tpu.dot_dimension_numbers<[1], [1], [0], [0], [0, 0, 1, 0], [], []>} : vector<8x8xf32>, vector<8x8xf32>, vector<8x8xf32> -> vector<8x8xf32>
    %c1_154 = arith.constant 1 : index
    %c0_155 = arith.constant 0 : index
    %c0_156 = arith.constant 0 : index
    %221 = vector.load %arg9[%c1_154, %c0_155, %c0_156] : memref<2x1x8xf32, #tpu.memory_space<vmem>>, vector<1x1x8xf32>
    %222 = vector.shape_cast %221 : vector<1x1x8xf32> to vector<1x8xf32>
    %cst_157 = arith.constant 0.000000e+00 : f32
    %223 = vector.broadcast %cst_157 : f32 to vector<1x8xf32>
    %224 = arith.cmpf ogt, %222, %223 : vector<1x8xf32>
    %cst_158 = arith.constant -1.000000e+04 : f32
    %225 = vector.shape_cast %224 : vector<1x8xi1> to vector<1x8xi1>
    %226 = vector.broadcast %225 : vector<1x8xi1> to vector<8x8xi1>
    %227 = vector.broadcast %cst_158 : f32 to vector<8x8xf32>
    %228 = arith.select %226, %227, %220 : vector<8x8xi1>, vector<8x8xf32>
    %cst_159 = arith.constant dense<0xFF800000> : vector<8xf32>
    %229 = vector.multi_reduction <maximumf>, %228, %cst_159 [1] : vector<8x8xf32> to vector<8xf32>
    %230 = vector.shape_cast %229 : vector<8xf32> to vector<8x1xf32>
    %231 = vector.broadcast %230 : vector<8x1xf32> to vector<8x8xf32>
    %232 = arith.subf %228, %231 : vector<8x8xf32>
    %233 = math.exp %232 : vector<8x8xf32>
    %cst_160 = arith.constant dense<0.000000e+00> : vector<8xf32>
    %234 = vector.multi_reduction <add>, %233, %cst_160 [1] : vector<8x8xf32> to vector<8xf32>
    %235 = vector.shape_cast %234 : vector<8xf32> to vector<8x1xf32>
    %236 = tpu.reciprocal %235 : vector<8x1xf32> -> vector<8x1xf32>
    %237 = vector.broadcast %236 : vector<8x1xf32> to vector<8x8xf32>
    %238 = arith.mulf %233, %237 : vector<8x8xf32>
    %c1_161 = arith.constant 1 : index
    %c2_162 = arith.constant 2 : index
    %c0_163 = arith.constant 0 : index
    %c0_164 = arith.constant 0 : index
    %239 = vector.load %arg11[%c1_161, %c2_162, %c0_163, %c0_164] : memref<2x4x8x8xf32, #tpu.memory_space<vmem>>, vector<1x1x8x8xf32>
    %240 = vector.shape_cast %239 : vector<1x1x8x8xf32> to vector<8x8xf32>
    %241 = vector.shape_cast %238 : vector<8x8xf32> to vector<1x1x8x8xf32>
    tpu.vector_store %arg11[%c1_161, %c2_162, %c0_163, %c0_164], %241 {strides = array<i32>} : memref<2x4x8x8xf32, #tpu.memory_space<vmem>>, vector<1x1x8x8xf32>,
    %cst_165 = arith.constant dense<0.000000e+00> : vector<8x8xf32>
    %242 = tpu.matmul %238, %219, %cst_165 {dimension_numbers = #tpu.dot_dimension_numbers<[1], [0], [0], [1], [0, 0, 1, 1], [], []>} : vector<8x8xf32>, vector<8x8xf32>, vector<8x8xf32> -> vector<8x8xf32>
    %c1_166 = arith.constant 1 : index
    %c2_167 = arith.constant 2 : index
    %c0_168 = arith.constant 0 : index
    %c0_169 = arith.constant 0 : index
    %243 = vector.load %arg10[%c1_166, %c2_167, %c0_168, %c0_169] : memref<2x4x8x8xf32, #tpu.memory_space<vmem>>, vector<1x1x8x8xf32>
    %244 = vector.shape_cast %243 : vector<1x1x8x8xf32> to vector<8x8xf32>
    %245 = vector.shape_cast %242 : vector<8x8xf32> to vector<1x1x8x8xf32>
    tpu.vector_store %arg10[%c1_166, %c2_167, %c0_168, %c0_169], %245 {strides = array<i32>} : memref<2x4x8x8xf32, #tpu.memory_space<vmem>>, vector<1x1x8x8xf32>,
    %c3 = arith.constant 3 : index
    %c0_170 = arith.constant 0 : index
    %c0_171 = arith.constant 0 : index
    %246 = vector.load %arg3[%c3, %c0_170, %c0_171] : memref<4x32x8xf32, #tpu.memory_space<vmem>>, vector<1x32x8xf32>
    %247 = vector.shape_cast %246 : vector<1x32x8xf32> to vector<32x8xf32>
    %cst_172 = arith.constant dense<0.000000e+00> : vector<16x8xf32>
    %248 = tpu.matmul %0, %247, %cst_172 {dimension_numbers = #tpu.dot_dimension_numbers<[1], [0], [0], [1], [0, 0, 1, 1], [], []>} : vector<16x32xf32>, vector<32x8xf32>, vector<16x8xf32> -> vector<16x8xf32>
    %c3_173 = arith.constant 3 : index
    %c0_174 = arith.constant 0 : index
    %c0_175 = arith.constant 0 : index
    %249 = vector.load %arg6[%c3_173, %c0_174, %c0_175] : memref<4x1x8xf32, #tpu.memory_space<vmem>>, vector<1x1x8xf32>
    %250 = vector.shape_cast %249 : vector<1x1x8xf32> to vector<1x8xf32>
    %251 = vector.broadcast %250 : vector<1x8xf32> to vector<16x8xf32>
    %252 = arith.addf %248, %251 : vector<16x8xf32>
    %cst_176 = arith.constant 0.353553385 : f32
    %253 = vector.broadcast %cst_176 : f32 to vector<16x8xf32>
    %254 = arith.mulf %252, %253 : vector<16x8xf32>
    %c3_177 = arith.constant 3 : index
    %c0_178 = arith.constant 0 : index
    %c0_179 = arith.constant 0 : index
    %255 = vector.load %arg4[%c3_177, %c0_178, %c0_179] : memref<4x32x8xf32, #tpu.memory_space<vmem>>, vector<1x32x8xf32>
    %256 = vector.shape_cast %255 : vector<1x32x8xf32> to vector<32x8xf32>
    %cst_180 = arith.constant dense<0.000000e+00> : vector<16x8xf32>
    %257 = tpu.matmul %1, %256, %cst_180 {dimension_numbers = #tpu.dot_dimension_numbers<[1], [0], [0], [1], [0, 0, 1, 1], [], []>} : vector<16x32xf32>, vector<32x8xf32>, vector<16x8xf32> -> vector<16x8xf32>
    %c3_181 = arith.constant 3 : index
    %c0_182 = arith.constant 0 : index
    %c0_183 = arith.constant 0 : index
    %258 = vector.load %arg7[%c3_181, %c0_182, %c0_183] : memref<4x1x8xf32, #tpu.memory_space<vmem>>, vector<1x1x8xf32>
    %259 = vector.shape_cast %258 : vector<1x1x8xf32> to vector<1x8xf32>
    %260 = vector.broadcast %259 : vector<1x8xf32> to vector<16x8xf32>
    %261 = arith.addf %257, %260 : vector<16x8xf32>
    %c3_184 = arith.constant 3 : index
    %c0_185 = arith.constant 0 : index
    %c0_186 = arith.constant 0 : index
    %262 = vector.load %arg5[%c3_184, %c0_185, %c0_186] : memref<4x32x8xf32, #tpu.memory_space<vmem>>, vector<1x32x8xf32>
    %263 = vector.shape_cast %262 : vector<1x32x8xf32> to vector<32x8xf32>
    %cst_187 = arith.constant dense<0.000000e+00> : vector<16x8xf32>
    %264 = tpu.matmul %2, %263, %cst_187 {dimension_numbers = #tpu.dot_dimension_numbers<[1], [0], [0], [1], [0, 0, 1, 1], [], []>} : vector<16x32xf32>, vector<32x8xf32>, vector<16x8xf32> -> vector<16x8xf32>
    %c3_188 = arith.constant 3 : index
    %c0_189 = arith.constant 0 : index
    %c0_190 = arith.constant 0 : index
    %265 = vector.load %arg8[%c3_188, %c0_189, %c0_190] : memref<4x1x8xf32, #tpu.memory_space<vmem>>, vector<1x1x8xf32>
    %266 = vector.shape_cast %265 : vector<1x1x8xf32> to vector<1x8xf32>
    %267 = vector.broadcast %266 : vector<1x8xf32> to vector<16x8xf32>
    %268 = arith.addf %264, %267 : vector<16x8xf32>
    %269 = vector.extract_strided_slice %254 {offsets = [0, 0], sizes = [8, 8], strides = [1, 1]} : vector<16x8xf32> to vector<8x8xf32>
    %270 = vector.extract_strided_slice %261 {offsets = [0, 0], sizes = [8, 8], strides = [1, 1]} : vector<16x8xf32> to vector<8x8xf32>
    %271 = vector.extract_strided_slice %268 {offsets = [0, 0], sizes = [8, 8], strides = [1, 1]} : vector<16x8xf32> to vector<8x8xf32>
    %cst_191 = arith.constant dense<0.000000e+00> : vector<8x8xf32>
    %272 = tpu.matmul %269, %270, %cst_191 {dimension_numbers = #tpu.dot_dimension_numbers<[1], [1], [0], [0], [0, 0, 1, 0], [], []>} : vector<8x8xf32>, vector<8x8xf32>, vector<8x8xf32> -> vector<8x8xf32>
    %c0_192 = arith.constant 0 : index
    %c0_193 = arith.constant 0 : index
    %c0_194 = arith.constant 0 : index
    %273 = vector.load %arg9[%c0_192, %c0_193, %c0_194] : memref<2x1x8xf32, #tpu.memory_space<vmem>>, vector<1x1x8xf32>
    %274 = vector.shape_cast %273 : vector<1x1x8xf32> to vector<1x8xf32>
    %cst_195 = arith.constant 0.000000e+00 : f32
    %275 = vector.broadcast %cst_195 : f32 to vector<1x8xf32>
    %276 = arith.cmpf ogt, %274, %275 : vector<1x8xf32>
    %cst_196 = arith.constant -1.000000e+04 : f32
    %277 = vector.shape_cast %276 : vector<1x8xi1> to vector<1x8xi1>
    %278 = vector.broadcast %277 : vector<1x8xi1> to vector<8x8xi1>
    %279 = vector.broadcast %cst_196 : f32 to vector<8x8xf32>
    %280 = arith.select %278, %279, %272 : vector<8x8xi1>, vector<8x8xf32>
    %cst_197 = arith.constant dense<0xFF800000> : vector<8xf32>
    %281 = vector.multi_reduction <maximumf>, %280, %cst_197 [1] : vector<8x8xf32> to vector<8xf32>
    %282 = vector.shape_cast %281 : vector<8xf32> to vector<8x1xf32>
    %283 = vector.broadcast %282 : vector<8x1xf32> to vector<8x8xf32>
    %284 = arith.subf %280, %283 : vector<8x8xf32>
    %285 = math.exp %284 : vector<8x8xf32>
    %cst_198 = arith.constant dense<0.000000e+00> : vector<8xf32>
    %286 = vector.multi_reduction <add>, %285, %cst_198 [1] : vector<8x8xf32> to vector<8xf32>
    %287 = vector.shape_cast %286 : vector<8xf32> to vector<8x1xf32>
    %288 = tpu.reciprocal %287 : vector<8x1xf32> -> vector<8x1xf32>
    %289 = vector.broadcast %288 : vector<8x1xf32> to vector<8x8xf32>
    %290 = arith.mulf %285, %289 : vector<8x8xf32>
    %c0_199 = arith.constant 0 : index
    %c3_200 = arith.constant 3 : index
    %c0_201 = arith.constant 0 : index
    %c0_202 = arith.constant 0 : index
    %291 = vector.load %arg11[%c0_199, %c3_200, %c0_201, %c0_202] : memref<2x4x8x8xf32, #tpu.memory_space<vmem>>, vector<1x1x8x8xf32>
    %292 = vector.shape_cast %291 : vector<1x1x8x8xf32> to vector<8x8xf32>
    %293 = vector.shape_cast %290 : vector<8x8xf32> to vector<1x1x8x8xf32>
    tpu.vector_store %arg11[%c0_199, %c3_200, %c0_201, %c0_202], %293 {strides = array<i32>} : memref<2x4x8x8xf32, #tpu.memory_space<vmem>>, vector<1x1x8x8xf32>,
    %cst_203 = arith.constant dense<0.000000e+00> : vector<8x8xf32>
    %294 = tpu.matmul %290, %271, %cst_203 {dimension_numbers = #tpu.dot_dimension_numbers<[1], [0], [0], [1], [0, 0, 1, 1], [], []>} : vector<8x8xf32>, vector<8x8xf32>, vector<8x8xf32> -> vector<8x8xf32>
    %c0_204 = arith.constant 0 : index
    %c3_205 = arith.constant 3 : index
    %c0_206 = arith.constant 0 : index
    %c0_207 = arith.constant 0 : index
    %295 = vector.load %arg10[%c0_204, %c3_205, %c0_206, %c0_207] : memref<2x4x8x8xf32, #tpu.memory_space<vmem>>, vector<1x1x8x8xf32>
    %296 = vector.shape_cast %295 : vector<1x1x8x8xf32> to vector<8x8xf32>
    %297 = vector.shape_cast %294 : vector<8x8xf32> to vector<1x1x8x8xf32>
    tpu.vector_store %arg10[%c0_204, %c3_205, %c0_206, %c0_207], %297 {strides = array<i32>} : memref<2x4x8x8xf32, #tpu.memory_space<vmem>>, vector<1x1x8x8xf32>,
    %298 = vector.extract_strided_slice %254 {offsets = [8, 0], sizes = [8, 8], strides = [1, 1]} : vector<16x8xf32> to vector<8x8xf32>
    %299 = vector.extract_strided_slice %261 {offsets = [8, 0], sizes = [8, 8], strides = [1, 1]} : vector<16x8xf32> to vector<8x8xf32>
    %300 = vector.extract_strided_slice %268 {offsets = [8, 0], sizes = [8, 8], strides = [1, 1]} : vector<16x8xf32> to vector<8x8xf32>
    %cst_208 = arith.constant dense<0.000000e+00> : vector<8x8xf32>
    %301 = tpu.matmul %298, %299, %cst_208 {dimension_numbers = #tpu.dot_dimension_numbers<[1], [1], [0], [0], [0, 0, 1, 0], [], []>} : vector<8x8xf32>, vector<8x8xf32>, vector<8x8xf32> -> vector<8x8xf32>
    %c1_209 = arith.constant 1 : index
    %c0_210 = arith.constant 0 : index
    %c0_211 = arith.constant 0 : index
    %302 = vector.load %arg9[%c1_209, %c0_210, %c0_211] : memref<2x1x8xf32, #tpu.memory_space<vmem>>, vector<1x1x8xf32>
    %303 = vector.shape_cast %302 : vector<1x1x8xf32> to vector<1x8xf32>
    %cst_212 = arith.constant 0.000000e+00 : f32
    %304 = vector.broadcast %cst_212 : f32 to vector<1x8xf32>
    %305 = arith.cmpf ogt, %303, %304 : vector<1x8xf32>
    %cst_213 = arith.constant -1.000000e+04 : f32
    %306 = vector.shape_cast %305 : vector<1x8xi1> to vector<1x8xi1>
    %307 = vector.broadcast %306 : vector<1x8xi1> to vector<8x8xi1>
    %308 = vector.broadcast %cst_213 : f32 to vector<8x8xf32>
    %309 = arith.select %307, %308, %301 : vector<8x8xi1>, vector<8x8xf32>
    %cst_214 = arith.constant dense<0xFF800000> : vector<8xf32>
    %310 = vector.multi_reduction <maximumf>, %309, %cst_214 [1] : vector<8x8xf32> to vector<8xf32>
    %311 = vector.shape_cast %310 : vector<8xf32> to vector<8x1xf32>
    %312 = vector.broadcast %311 : vector<8x1xf32> to vector<8x8xf32>
    %313 = arith.subf %309, %312 : vector<8x8xf32>
    %314 = math.exp %313 : vector<8x8xf32>
    %cst_215 = arith.constant dense<0.000000e+00> : vector<8xf32>
    %315 = vector.multi_reduction <add>, %314, %cst_215 [1] : vector<8x8xf32> to vector<8xf32>
    %316 = vector.shape_cast %315 : vector<8xf32> to vector<8x1xf32>
    %317 = tpu.reciprocal %316 : vector<8x1xf32> -> vector<8x1xf32>
    %318 = vector.broadcast %317 : vector<8x1xf32> to vector<8x8xf32>
    %319 = arith.mulf %314, %318 : vector<8x8xf32>
    %c1_216 = arith.constant 1 : index
    %c3_217 = arith.constant 3 : index
    %c0_218 = arith.constant 0 : index
    %c0_219 = arith.constant 0 : index
    %320 = vector.load %arg11[%c1_216, %c3_217, %c0_218, %c0_219] : memref<2x4x8x8xf32, #tpu.memory_space<vmem>>, vector<1x1x8x8xf32>
    %321 = vector.shape_cast %320 : vector<1x1x8x8xf32> to vector<8x8xf32>
    %322 = vector.shape_cast %319 : vector<8x8xf32> to vector<1x1x8x8xf32>
    tpu.vector_store %arg11[%c1_216, %c3_217, %c0_218, %c0_219], %322 {strides = array<i32>} : memref<2x4x8x8xf32, #tpu.memory_space<vmem>>, vector<1x1x8x8xf32>,
    %cst_220 = arith.constant dense<0.000000e+00> : vector<8x8xf32>
    %323 = tpu.matmul %319, %300, %cst_220 {dimension_numbers = #tpu.dot_dimension_numbers<[1], [0], [0], [1], [0, 0, 1, 1], [], []>} : vector<8x8xf32>, vector<8x8xf32>, vector<8x8xf32> -> vector<8x8xf32>
    %c1_221 = arith.constant 1 : index
    %c3_222 = arith.constant 3 : index
    %c0_223 = arith.constant 0 : index
    %c0_224 = arith.constant 0 : index
    %324 = vector.load %arg10[%c1_221, %c3_222, %c0_223, %c0_224] : memref<2x4x8x8xf32, #tpu.memory_space<vmem>>, vector<1x1x8x8xf32>
    %325 = vector.shape_cast %324 : vector<1x1x8x8xf32> to vector<8x8xf32>
    %326 = vector.shape_cast %323 : vector<8x8xf32> to vector<1x1x8x8xf32>
    tpu.vector_store %arg10[%c1_221, %c3_222, %c0_223, %c0_224], %326 {strides = array<i32>} : memref<2x4x8x8xf32, #tpu.memory_space<vmem>>, vector<1x1x8x8xf32>,
    return
  }
}

</mosaic_0001>

<llo_original>
// kernel: _mha_forward.1
$region0: #{_mha_forward.1}
  #allocation0 [shape = 'u32[]', space=smem, size = 0x4, offset = 0x4, fixed_abs, tag = 'smem constant byte address 0x4 - core index']
  #allocation1 [shape = 'u32[144,128]{1,0:T(1,128)}', space=vmem, size = 0x12000, scoped, tag = 'internal scratch']
  %s0 = inlined_call_operand.vmem [shape: f32[16,32], index: 0, kind: input, shape index: {}]
  %s1 = inlined_call_operand.vmem [shape: f32[16,32], index: 1, kind: input, shape index: {}]
  %s2 = inlined_call_operand.vmem [shape: f32[16,32], index: 2, kind: input, shape index: {}]
  %s3 = inlined_call_operand.vmem [shape: f32[4,32,8], index: 3, kind: input, shape index: {}]
  %s4 = inlined_call_operand.vmem [shape: f32[4,32,8], index: 4, kind: input, shape index: {}]
  %s5 = inlined_call_operand.vmem [shape: f32[4,32,8], index: 5, kind: input, shape index: {}]
  %s6 = inlined_call_operand.vmem [shape: f32[4,1,8], index: 6, kind: input, shape index: {}]
  %s7 = inlined_call_operand.vmem [shape: f32[4,1,8], index: 7, kind: input, shape index: {}]
  %s8 = inlined_call_operand.vmem [shape: f32[4,1,8], index: 8, kind: input, shape index: {}]
  %s9 = inlined_call_operand.vmem [shape: f32[2,1,8], index: 9, kind: input, shape index: {}]
  %s10 = inlined_call_operand.vmem [shape: f32[2,4,8,8], index: 10, kind: output, shape index: {0}]
  %s11 = inlined_call_operand.hbm [shape: f32[2,4,8,8], index: 11, kind: output, shape index: {1}]
  %12 = xla_tuple %s10, %s11
  %s13 = sld [smem:[#allocation0]]
  $region58: #{_mha_forward.1} parent=0
    _
  %s15 = ssub.s32 1, %s13
  %s16 = scalar_select 0, %s15, %s13
  $region1: #{_mha_forward.1} parent=0
    #allocation2 [shape = 'u8[32768]{0}', space=vmem, size = 0x8000, scoped, tag = 'output window, operand 1, single buffered']
    #allocation3 [shape = 's32[1]{0}', space=sflag, size = 0x4, scoped, tag = 'scoped memory for _mha_forward.1']
    %17 = vsyncpa [#allocation3], 0
    // Predicated region
    $region2: #{_mha_forward.1} parent=1 // pred_check
      _
    $region3: #{_mha_forward.1} parent=1 // pred_check_branch
      %19 = sbr.rel (0) target = $region5
    $region4: #{_mha_forward.1} parent=1 // pred_region
      _
    $region5: #{_mha_forward.1} parent=1 // pred_fallthru
      _
    // Predicated region
    $region6: #{_mha_forward.1} parent=1 // pred_check
      _
    $region7: #{_mha_forward.1} parent=1 // pred_check_branch
      %21 = sbr.rel (0) target = $region9
    $region8: #{_mha_forward.1} parent=1 // pred_region
      _
    $region9: #{_mha_forward.1} parent=1 // pred_fallthru
      _
    // Predicated region
    $region10: #{_mha_forward.1} parent=1 // pred_check
      _
    $region11: #{_mha_forward.1} parent=1 // pred_check_branch
      %23 = sbr.rel (0) target = $region13
    $region12: #{_mha_forward.1} parent=1 // pred_region
      _
    $region13: #{_mha_forward.1} parent=1 // pred_fallthru
      _
    // Predicated region
    $region14: #{_mha_forward.1} parent=1 // pred_check
      _
    $region15: #{_mha_forward.1} parent=1 // pred_check_branch
      %25 = sbr.rel (0) target = $region17
    $region16: #{_mha_forward.1} parent=1 // pred_region
      _
    $region17: #{_mha_forward.1} parent=1 // pred_fallthru
      _
    // Predicated region
    $region18: #{_mha_forward.1} parent=1 // pred_check
      _
    $region19: #{_mha_forward.1} parent=1 // pred_check_branch
      %27 = sbr.rel (0) target = $region21
    $region20: #{_mha_forward.1} parent=1 // pred_region
      _
    $region21: #{_mha_forward.1} parent=1 // pred_fallthru
      _
    // Predicated region
    $region22: #{_mha_forward.1} parent=1 // pred_check
      _
    $region23: #{_mha_forward.1} parent=1 // pred_check_branch
      %29 = sbr.rel (0) target = $region25
    $region24: #{_mha_forward.1} parent=1 // pred_region
      _
    $region25: #{_mha_forward.1} parent=1 // pred_fallthru
      _
    // Predicated region
    $region26: #{_mha_forward.1} parent=1 // pred_check
      _
    $region27: #{_mha_forward.1} parent=1 // pred_check_branch
      %31 = sbr.rel (0) target = $region29
    $region28: #{_mha_forward.1} parent=1 // pred_region
      _
    $region29: #{_mha_forward.1} parent=1 // pred_fallthru
      _
    // Predicated region
    $region30: #{_mha_forward.1} parent=1 // pred_check
      _
    $region31: #{_mha_forward.1} parent=1 // pred_check_branch
      %33 = sbr.rel (0) target = $region33
    $region32: #{_mha_forward.1} parent=1 // pred_region
      _
    $region33: #{_mha_forward.1} parent=1 // pred_fallthru
      _
    // Predicated region
    $region34: #{_mha_forward.1} parent=1 // pred_check
      _
    $region35: #{_mha_forward.1} parent=1 // pred_check_branch
      %35 = sbr.rel (0) target = $region37
    $region36: #{_mha_forward.1} parent=1 // pred_region
      _
    $region37: #{_mha_forward.1} parent=1 // pred_fallthru
      _
    // Predicated region
    $region38: #{_mha_forward.1} parent=1 // pred_check
      _
    $region39: #{_mha_forward.1} parent=1 // pred_check_branch
      %37 = sbr.rel (0) target = $region41
    $region40: #{_mha_forward.1} parent=1 // pred_region
      _
    $region41: #{_mha_forward.1} parent=1 // pred_fallthru
      _
    %v38 = vld [vmem:[%s0] sm:$0xff]
    %v39 = vld [vmem:[%s0 + $0x8] sm:$0xff]
    %v40 = vld [vmem:[%s1] sm:$0xff]
    %v41 = vld [vmem:[%s1 + $0x8] sm:$0xff]
    %v42 = vld [vmem:[%s2] sm:$0xff]
    %v43 = vld [vmem:[%s2 + $0x8] sm:$0xff]
    %v44 = vld [vmem:[%s3] sm:$0xff]
    %v45 = vld [vmem:[%s3 + $0x8] sm:$0xff]
    %v46 = vld [vmem:[%s3 + $0x10] sm:$0xff]
    %v47 = vld [vmem:[%s3 + $0x18] sm:$0xff]
    %v48 = vld [vmem:[%s6] sm:$0x1]
    %v50 = vlaneseq
    %v51 = vshrl.u32 %v50, 7
    %v52 = vsub.s32 0, %v51
    %v53 = vrot.slane %v48, %v52
    %vm55 = vcmask 261120
    %v57 = vsel %vm55, %v38, 0
    %v60 = vsel %vm55, %v39, 0
    %62 = vmatprep.subr.mxu0 0.0
    %63 = vmatpush1.msra.mxu0 %v44
    %64 = vmatprep.subr.mxu0 0.0
    %65 = vmatpush1.msra.mxu0 %v45
    %66 = vmatprep.subr.mxu0 0.0
    %67 = vmatpush1.msra.mxu0 %v46
    %68 = vmatprep.subr.mxu0 0.0
    %69 = vmatpush1.msra.mxu0 %v47
    %70 = vmatprep.subr.mxu0 0.0
    %71 = vmatpush1.msra.mxu0 0.0
    %72 = vmatprep.subr.mxu0 0.0
    %73 = vmatpush1.msra.mxu0 0.0
    %74 = vmatprep.subr.mxu0 0.0
    %75 = vmatpush1.msra.mxu0 0.0
    %76 = vmatprep.subr.mxu0 0.0
    %77 = vmatpush1.msra.mxu0 0.0
    %78 = vmatprep.subr.mxu0 0.0
    %79 = vmatpush1.msra.mxu0 0.0
    %80 = vmatprep.subr.mxu0 0.0
    %81 = vmatpush1.msra.mxu0 0.0
    %82 = vmatprep.subr.mxu0 0.0
    %83 = vmatpush1.msra.mxu0 0.0
    %84 = vmatprep.subr.mxu0 0.0
    %85 = vmatpush1.msra.mxu0 0.0
    %86 = vmatprep.subr.mxu0 0.0
    %87 = vmatpush1.msra.mxu0 0.0
    %88 = vmatprep.subr.mxu0 0.0
    %89 = vmatpush1.msra.mxu0 0.0
    %90 = vmatprep.subr.mxu0 0.0
    %91 = vmatpush1.msra.mxu0 0.0
    %92 = vmatprep.subr.mxu0 0.0
    %93 = vmatpush1.msra.mxu0 0.0
    %94 = vmatprep.subr.mxu0 0.0
    %95 = vmatpush1.msra.mxu0 0.0
    %96 = vmatprep.subr.mxu0 0.0
    %97 = vmatpush1.msra.mxu0 0.0
    %98 = vmatprep.subr.mxu0 0.0
    %99 = vmatpush1.msra.mxu0 0.0
    %100 = vmatprep.subr.mxu0 0.0
    %101 = vmatpush1.msra.mxu0 0.0
    %102 = vmatprep.subr.mxu0 0.0
    %103 = vmatpush1.msra.mxu0 0.0
    %104 = vmatprep.subr.mxu0 0.0
    %105 = vmatpush1.msra.mxu0 0.0
    %106 = vmatprep.subr.mxu0 0.0
    %107 = vmatpush1.msra.mxu0 0.0
    %108 = vmatprep.subr.mxu0 0.0
    %109 = vmatpush1.msra.mxu0 0.0
    %110 = vmatprep.subr.mxu0 0.0
    %111 = vmatpush1.msra.mxu0 0.0
    %112 = vmatprep.subr.mxu0 0.0
    %113 = vmatpush1.msra.mxu0 0.0
    %114 = vmatprep.subr.mxu0 0.0
    %115 = vmatpush1.msra.mxu0 0.0
    %116 = vmatprep.subr.mxu0 0.0
    %117 = vmatpush1.msra.mxu0 0.0
    %118 = vmatprep.subr.mxu0 0.0
    %119 = vmatpush1.msra.mxu0 0.0
    %120 = vmatprep.subr.mxu0 0.0
    %121 = vmatpush1.msra.mxu0 0.0
    %122 = vmatprep.subr.mxu0 0.0
    %123 = vmatpush1.msra.mxu0 0.0
    %124 = vmatprep.subr.mxu0 0.0
    %125 = vmatpush1.msra.mxu0 0.0
    %126 = vmatprep.mubr.f32.mxu0 0.0
    %127 = vmatmul.mubr.f32.gmra.mrb[0].mxu0 %v57
    %v128 = vpop.f32.mrb[0].mxu0
    %v129 = vadd.f32 %v53, %v128
    %v130 = vpop.f32.mrb[0].mxu0
    %131 = vmatprep.mubr.f32.mxu0 0.0
    %132 = vmatmul.mubr.f32.gmra.mrb[0].mxu0 %v60
    %v133 = vpop.f32.mrb[0].mxu0
    %v134 = vadd.f32 %v53, %v133
    %v135 = vpop.f32.mrb[0].mxu0
    %136 = vdwg.mxu0
    %v137 = vmul.f32 %v129, 0.35355338
    %v138 = vmul.f32 %v134, 0.35355338
    %v139 = vld [vmem:[%s4] sm:$0xff]
    %v140 = vld [vmem:[%s4 + $0x8] sm:$0xff]
    %v141 = vld [vmem:[%s4 + $0x10] sm:$0xff]
    %v142 = vld [vmem:[%s4 + $0x18] sm:$0xff]
    %v143 = vld [vmem:[%s7] sm:$0x1]
    %v145 = vlaneseq
    %v146 = vshrl.u32 %v145, 7
    %v147 = vsub.s32 0, %v146
    %v148 = vrot.slane %v143, %v147
    %v151 = vsel %vm55, %v40, 0
    %v154 = vsel %vm55, %v41, 0
    %156 = vmatprep.subr.mxu0 0.0
    %157 = vmatpush1.msra.mxu0 %v139
    %158 = vmatprep.subr.mxu0 0.0
    %159 = vmatpush1.msra.mxu0 %v140
    %160 = vmatprep.subr.mxu0 0.0
    %161 = vmatpush1.msra.mxu0 %v141
    %162 = vmatprep.subr.mxu0 0.0
    %163 = vmatpush1.msra.mxu0 %v142
    %164 = vmatprep.subr.mxu0 0.0
    %165 = vmatpush1.msra.mxu0 0.0
    %166 = vmatprep.subr.mxu0 0.0
    %167 = vmatpush1.msra.mxu0 0.0
    %168 = vmatprep.subr.mxu0 0.0
    %169 = vmatpush1.msra.mxu0 0.0
    %170 = vmatprep.subr.mxu0 0.0
    %171 = vmatpush1.msra.mxu0 0.0
    %172 = vmatprep.subr.mxu0 0.0
    %173 = vmatpush1.msra.mxu0 0.0
    %174 = vmatprep.subr.mxu0 0.0
    %175 = vmatpush1.msra.mxu0 0.0
    %176 = vmatprep.subr.mxu0 0.0
    %177 = vmatpush1.msra.mxu0 0.0
    %178 = vmatprep.subr.mxu0 0.0
    %179 = vmatpush1.msra.mxu0 0.0
    %180 = vmatprep.subr.mxu0 0.0
    %181 = vmatpush1.msra.mxu0 0.0
    %182 = vmatprep.subr.mxu0 0.0
    %183 = vmatpush1.msra.mxu0 0.0
    %184 = vmatprep.subr.mxu0 0.0
    %185 = vmatpush1.msra.mxu0 0.0
    %186 = vmatprep.subr.mxu0 0.0
    %187 = vmatpush1.msra.mxu0 0.0
    %188 = vmatprep.subr.mxu0 0.0
    %189 = vmatpush1.msra.mxu0 0.0
    %190 = vmatprep.subr.mxu0 0.0
    %191 = vmatpush1.msra.mxu0 0.0
    %192 = vmatprep.subr.mxu0 0.0
    %193 = vmatpush1.msra.mxu0 0.0
    %194 = vmatprep.subr.mxu0 0.0
    %195 = vmatpush1.msra.mxu0 0.0
    %196 = vmatprep.subr.mxu0 0.0
    %197 = vmatpush1.msra.mxu0 0.0
    %198 = vmatprep.subr.mxu0 0.0
    %199 = vmatpush1.msra.mxu0 0.0
    %200 = vmatprep.subr.mxu0 0.0
    %201 = vmatpush1.msra.mxu0 0.0
    %202 = vmatprep.subr.mxu0 0.0
    %203 = vmatpush1.msra.mxu0 0.0
    %204 = vmatprep.subr.mxu0 0.0
    %205 = vmatpush1.msra.mxu0 0.0
    %206 = vmatprep.subr.mxu0 0.0
    %207 = vmatpush1.msra.mxu0 0.0
    %208 = vmatprep.subr.mxu0 0.0
    %209 = vmatpush1.msra.mxu0 0.0
    %210 = vmatprep.subr.mxu0 0.0
    %211 = vmatpush1.msra.mxu0 0.0
    %212 = vmatprep.subr.mxu0 0.0
    %213 = vmatpush1.msra.mxu0 0.0
    %214 = vmatprep.subr.mxu0 0.0
    %215 = vmatpush1.msra.mxu0 0.0
    %216 = vmatprep.subr.mxu0 0.0
    %217 = vmatpush1.msra.mxu0 0.0
    %218 = vmatprep.subr.mxu0 0.0
    %219 = vmatpush1.msra.mxu0 0.0
    %220 = vmatprep.mubr.f32.mxu0 0.0
    %221 = vmatmul.mubr.f32.gmra.mrb[0].mxu0 %v151
    %v222 = vpop.f32.mrb[0].mxu0
    %v223 = vadd.f32 %v148, %v222
    %v224 = vpop.f32.mrb[0].mxu0
    %225 = vmatprep.mubr.f32.mxu0 0.0
    %226 = vmatmul.mubr.f32.gmra.mrb[0].mxu0 %v154
    %v227 = vpop.f32.mrb[0].mxu0
    %v228 = vadd.f32 %v148, %v227
    %v229 = vpop.f32.mrb[0].mxu0
    %230 = vdwg.mxu0
    %v231 = vld [vmem:[%s5] sm:$0xff]
    %v232 = vld [vmem:[%s5 + $0x8] sm:$0xff]
    %v233 = vld [vmem:[%s5 + $0x10] sm:$0xff]
    %v234 = vld [vmem:[%s5 + $0x18] sm:$0xff]
    %v235 = vld [vmem:[%s8] sm:$0x1]
    %v237 = vlaneseq
    %v238 = vshrl.u32 %v237, 7
    %v239 = vsub.s32 0, %v238
    %v240 = vrot.slane %v235, %v239
    %v243 = vsel %vm55, %v42, 0
    %v246 = vsel %vm55, %v43, 0
    %248 = vmatprep.subr.mxu0 0.0
    %249 = vmatpush1.msra.mxu0 %v231
    %250 = vmatprep.subr.mxu0 0.0
    %251 = vmatpush1.msra.mxu0 %v232
    %252 = vmatprep.subr.mxu0 0.0
    %253 = vmatpush1.msra.mxu0 %v233
    %254 = vmatprep.subr.mxu0 0.0
    %255 = vmatpush1.msra.mxu0 %v234
    %256 = vmatprep.subr.mxu0 0.0
    %257 = vmatpush1.msra.mxu0 0.0
    %258 = vmatprep.subr.mxu0 0.0
    %259 = vmatpush1.msra.mxu0 0.0
    %260 = vmatprep.subr.mxu0 0.0
    %261 = vmatpush1.msra.mxu0 0.0
    %262 = vmatprep.subr.mxu0 0.0
    %263 = vmatpush1.msra.mxu0 0.0
    %264 = vmatprep.subr.mxu0 0.0
    %265 = vmatpush1.msra.mxu0 0.0
    %266 = vmatprep.subr.mxu0 0.0
    %267 = vmatpush1.msra.mxu0 0.0
    %268 = vmatprep.subr.mxu0 0.0
    %269 = vmatpush1.msra.mxu0 0.0
    %270 = vmatprep.subr.mxu0 0.0
    %271 = vmatpush1.msra.mxu0 0.0
    %272 = vmatprep.subr.mxu0 0.0
    %273 = vmatpush1.msra.mxu0 0.0
    %274 = vmatprep.subr.mxu0 0.0
    %275 = vmatpush1.msra.mxu0 0.0
    %276 = vmatprep.subr.mxu0 0.0
    %277 = vmatpush1.msra.mxu0 0.0
    %278 = vmatprep.subr.mxu0 0.0
    %279 = vmatpush1.msra.mxu0 0.0
    %280 = vmatprep.subr.mxu0 0.0
    %281 = vmatpush1.msra.mxu0 0.0
    %282 = vmatprep.subr.mxu0 0.0
    %283 = vmatpush1.msra.mxu0 0.0
    %284 = vmatprep.subr.mxu0 0.0
    %285 = vmatpush1.msra.mxu0 0.0
    %286 = vmatprep.subr.mxu0 0.0
    %287 = vmatpush1.msra.mxu0 0.0
    %288 = vmatprep.subr.mxu0 0.0
    %289 = vmatpush1.msra.mxu0 0.0
    %290 = vmatprep.subr.mxu0 0.0
    %291 = vmatpush1.msra.mxu0 0.0
    %292 = vmatprep.subr.mxu0 0.0
    %293 = vmatpush1.msra.mxu0 0.0
    %294 = vmatprep.subr.mxu0 0.0
    %295 = vmatpush1.msra.mxu0 0.0
    %296 = vmatprep.subr.mxu0 0.0
    %297 = vmatpush1.msra.mxu0 0.0
    %298 = vmatprep.subr.mxu0 0.0
    %299 = vmatpush1.msra.mxu0 0.0
    %300 = vmatprep.subr.mxu0 0.0
    %301 = vmatpush1.msra.mxu0 0.0
    %302 = vmatprep.subr.mxu0 0.0
    %303 = vmatpush1.msra.mxu0 0.0
    %304 = vmatprep.subr.mxu0 0.0
    %305 = vmatpush1.msra.mxu0 0.0
    %306 = vmatprep.subr.mxu0 0.0
    %307 = vmatpush1.msra.mxu0 0.0
    %308 = vmatprep.subr.mxu0 0.0
    %309 = vmatpush1.msra.mxu0 0.0
    %310 = vmatprep.subr.mxu0 0.0
    %311 = vmatpush1.msra.mxu0 0.0
    %312 = vmatprep.mubr.f32.mxu0 0.0
    %313 = vmatmul.mubr.f32.gmra.mrb[0].mxu0 %v243
    %v314 = vpop.f32.mrb[0].mxu0
    %v315 = vadd.f32 %v240, %v314
    %v316 = vpop.f32.mrb[0].mxu0
    %317 = vmatprep.mubr.f32.mxu0 0.0
    %318 = vmatmul.mubr.f32.gmra.mrb[0].mxu0 %v246
    %v319 = vpop.f32.mrb[0].mxu0
    %v320 = vadd.f32 %v240, %v319
    %v321 = vpop.f32.mrb[0].mxu0
    %322 = vdwg.mxu0
    %vm323 = vcmask 64512
    %v325 = vsel %vm323, %v137, 0
    %v328 = vsel %vm323, %v223, 0
    %330 = vmatprep.subr.mxu0 0.0
    %331 = vmatpush1.xpose.msra.mxu0 %v328
    %332 = vmatprep.subr.mxu0 0.0
    %333 = vmatpush1.xpose.msra.mxu0 0.0
    %334 = vmatprep.subr.mxu0 0.0
    %335 = vmatpush1.xpose.msra.mxu0 0.0
    %336 = vmatprep.subr.mxu0 0.0
    %337 = vmatpush1.xpose.msra.mxu0 0.0
    %338 = vmatprep.subr.mxu0 0.0
    %339 = vmatpush1.xpose.msra.mxu0 0.0
    %340 = vmatprep.subr.mxu0 0.0
    %341 = vmatpush1.xpose.msra.mxu0 0.0
    %342 = vmatprep.subr.mxu0 0.0
    %343 = vmatpush1.xpose.msra.mxu0 0.0
    %344 = vmatprep.subr.mxu0 0.0
    %345 = vmatpush1.xpose.msra.mxu0 0.0
    %346 = vmatprep.subr.mxu0 0.0
    %347 = vmatpush1.xpose.msra.mxu0 0.0
    %348 = vmatprep.subr.mxu0 0.0
    %349 = vmatpush1.xpose.msra.mxu0 0.0
    %350 = vmatprep.subr.mxu0 0.0
    %351 = vmatpush1.xpose.msra.mxu0 0.0
    %352 = vmatprep.subr.mxu0 0.0
    %353 = vmatpush1.xpose.msra.mxu0 0.0
    %354 = vmatprep.subr.mxu0 0.0
    %355 = vmatpush1.xpose.msra.mxu0 0.0
    %356 = vmatprep.subr.mxu0 0.0
    %357 = vmatpush1.xpose.msra.mxu0 0.0
    %358 = vmatprep.subr.mxu0 0.0
    %359 = vmatpush1.xpose.msra.mxu0 0.0
    %360 = vmatprep.subr.mxu0 0.0
    %361 = vmatpush1.xpose.msra.mxu0 0.0
    %362 = vmatprep.subr.mxu0 0.0
    %363 = vmatpush1.xpose.msra.mxu0 0.0
    %364 = vmatprep.subr.mxu0 0.0
    %365 = vmatpush1.xpose.msra.mxu0 0.0
    %366 = vmatprep.subr.mxu0 0.0
    %367 = vmatpush1.xpose.msra.mxu0 0.0
    %368 = vmatprep.subr.mxu0 0.0
    %369 = vmatpush1.xpose.msra.mxu0 0.0
    %370 = vmatprep.subr.mxu0 0.0
    %371 = vmatpush1.xpose.msra.mxu0 0.0
    %372 = vmatprep.subr.mxu0 0.0
    %373 = vmatpush1.xpose.msra.mxu0 0.0
    %374 = vmatprep.subr.mxu0 0.0
    %375 = vmatpush1.xpose.msra.mxu0 0.0
    %376 = vmatprep.subr.mxu0 0.0
    %377 = vmatpush1.xpose.msra.mxu0 0.0
    %378 = vmatprep.subr.mxu0 0.0
    %379 = vmatpush1.xpose.msra.mxu0 0.0
    %380 = vmatprep.subr.mxu0 0.0
    %381 = vmatpush1.xpose.msra.mxu0 0.0
    %382 = vmatprep.subr.mxu0 0.0
    %383 = vmatpush1.xpose.msra.mxu0 0.0
    %384 = vmatprep.subr.mxu0 0.0
    %385 = vmatpush1.xpose.msra.mxu0 0.0
    %386 = vmatprep.subr.mxu0 0.0
    %387 = vmatpush1.xpose.msra.mxu0 0.0
    %388 = vmatprep.subr.mxu0 0.0
    %389 = vmatpush1.xpose.msra.mxu0 0.0
    %390 = vmatprep.subr.mxu0 0.0
    %391 = vmatpush1.xpose.msra.mxu0 0.0
    %392 = vmatprep.subr.mxu0 0.0
    %393 = vmatpush1.xpose.msra.mxu0 0.0
    %394 = vmatprep.mubr.f32.mxu0 0.0
    %395 = vmatmul.mubr.f32.gmra.mrb[0].mxu0 %v325
    %v396 = vpop.f32.mrb[0].mxu0
    %v397 = vadd.f32 0.0, %v396
    %v398 = vpop.f32.mrb[0].mxu0
    %399 = vdwg.mxu0
    %v400 = vld [vmem:[%s9] sm:$0x1]
    %vm401 = vcmp.gt.f32.partialorder %v400, 0.0
    %v402 = vsel %vm401, 1, 0
    %v403 = vlaneseq
    %v404 = vshrl.u32 %v403, 7
    %v405 = vsub.s32 0, %v404
    %v406 = vrot.slane %v402, %v405
    %vm407 = vcmp.eq.s32.totalorder %v406, 1
    %v408 = vsel %vm407, -10000.0, %v397
    %v409 = vsel %vm323, %v408, -inf
    %410 = vmax.xlane.f32.xlu0 %v409
    %v411 = vpop.xlane.xlu0 %410
    %v412 = vsub.f32 %v408, %v411
    %v413 = vmul.f32 %v412, 1.442695
    %v414 = vpow.pop %v413
    %v415 = vsel %vm323, %v414, 0.0
    %416 = vadd.xlane.f32.xlu0 %v415
    %v417 = vpop.xlane.xlu0 %416
    %v418 = vrcp.pop %v417
    %v419 = vmul.f32 %v414, %v418
    %420 = vst.msk [vmem:[#allocation2] sm:$0xff] %vm323, %v419
    %v422 = vsel %vm323, %v419, 0
    %424 = vmatprep.subr.mxu0 0.0
    %425 = vmatpush1.msra.mxu0 %v315
    %426 = vmatprep.subr.mxu0 0.0
    %427 = vmatpush1.msra.mxu0 0.0
    %428 = vmatprep.subr.mxu0 0.0
    %429 = vmatpush1.msra.mxu0 0.0
    %430 = vmatprep.subr.mxu0 0.0
    %431 = vmatpush1.msra.mxu0 0.0
    %432 = vmatprep.subr.mxu0 0.0
    %433 = vmatpush1.msra.mxu0 0.0
    %434 = vmatprep.subr.mxu0 0.0
    %435 = vmatpush1.msra.mxu0 0.0
    %436 = vmatprep.subr.mxu0 0.0
    %437 = vmatpush1.msra.mxu0 0.0
    %438 = vmatprep.subr.mxu0 0.0
    %439 = vmatpush1.msra.mxu0 0.0
    %440 = vmatprep.subr.mxu0 0.0
    %441 = vmatpush1.msra.mxu0 0.0
    %442 = vmatprep.subr.mxu0 0.0
    %443 = vmatpush1.msra.mxu0 0.0
    %444 = vmatprep.subr.mxu0 0.0
    %445 = vmatpush1.msra.mxu0 0.0
    %446 = vmatprep.subr.mxu0 0.0
    %447 = vmatpush1.msra.mxu0 0.0
    %448 = vmatprep.subr.mxu0 0.0
    %449 = vmatpush1.msra.mxu0 0.0
    %450 = vmatprep.subr.mxu0 0.0
    %451 = vmatpush1.msra.mxu0 0.0
    %452 = vmatprep.subr.mxu0 0.0
    %453 = vmatpush1.msra.mxu0 0.0
    %454 = vmatprep.subr.mxu0 0.0
    %455 = vmatpush1.msra.mxu0 0.0
    %456 = vmatprep.subr.mxu0 0.0
    %457 = vmatpush1.msra.mxu0 0.0
    %458 = vmatprep.subr.mxu0 0.0
    %459 = vmatpush1.msra.mxu0 0.0
    %460 = vmatprep.subr.mxu0 0.0
    %461 = vmatpush1.msra.mxu0 0.0
    %462 = vmatprep.subr.mxu0 0.0
    %463 = vmatpush1.msra.mxu0 0.0
    %464 = vmatprep.subr.mxu0 0.0
    %465 = vmatpush1.msra.mxu0 0.0
    %466 = vmatprep.subr.mxu0 0.0
    %467 = vmatpush1.msra.mxu0 0.0
    %468 = vmatprep.subr.mxu0 0.0
    %469 = vmatpush1.msra.mxu0 0.0
    %470 = vmatprep.subr.mxu0 0.0
    %471 = vmatpush1.msra.mxu0 0.0
    %472 = vmatprep.subr.mxu0 0.0
    %473 = vmatpush1.msra.mxu0 0.0
    %474 = vmatprep.subr.mxu0 0.0
    %475 = vmatpush1.msra.mxu0 0.0
    %476 = vmatprep.subr.mxu0 0.0
    %477 = vmatpush1.msra.mxu0 0.0
    %478 = vmatprep.subr.mxu0 0.0
    %479 = vmatpush1.msra.mxu0 0.0
    %480 = vmatprep.subr.mxu0 0.0
    %481 = vmatpush1.msra.mxu0 0.0
    %482 = vmatprep.subr.mxu0 0.0
    %483 = vmatpush1.msra.mxu0 0.0
    %484 = vmatprep.subr.mxu0 0.0
    %485 = vmatpush1.msra.mxu0 0.0
    %486 = vmatprep.subr.mxu0 0.0
    %487 = vmatpush1.msra.mxu0 0.0
    %488 = vmatprep.mubr.f32.mxu0 0.0
    %489 = vmatmul.mubr.f32.gmra.mrb[0].mxu0 %v422
    %v490 = vpop.f32.mrb[0].mxu0
    %v491 = vadd.f32 0.0, %v490
    %v492 = vpop.f32.mrb[0].mxu0
    %493 = vdwg.mxu0
    %494 = vst.msk [vmem:[%s10] sm:$0xff] %vm323, %v491
    %v496 = vsel %vm323, %v138, 0
    %v499 = vsel %vm323, %v228, 0
    %501 = vmatprep.subr.mxu0 0.0
    %502 = vmatpush1.xpose.msra.mxu0 %v499
    %503 = vmatprep.subr.mxu0 0.0
    %504 = vmatpush1.xpose.msra.mxu0 0.0
    %505 = vmatprep.subr.mxu0 0.0
    %506 = vmatpush1.xpose.msra.mxu0 0.0
    %507 = vmatprep.subr.mxu0 0.0
    %508 = vmatpush1.xpose.msra.mxu0 0.0
    %509 = vmatprep.subr.mxu0 0.0
    %510 = vmatpush1.xpose.msra.mxu0 0.0
    %511 = vmatprep.subr.mxu0 0.0
    %512 = vmatpush1.xpose.msra.mxu0 0.0
    %513 = vmatprep.subr.mxu0 0.0
    %514 = vmatpush1.xpose.msra.mxu0 0.0
    %515 = vmatprep.subr.mxu0 0.0
    %516 = vmatpush1.xpose.msra.mxu0 0.0
    %517 = vmatprep.subr.mxu0 0.0
    %518 = vmatpush1.xpose.msra.mxu0 0.0
    %519 = vmatprep.subr.mxu0 0.0
    %520 = vmatpush1.xpose.msra.mxu0 0.0
    %521 = vmatprep.subr.mxu0 0.0
    %522 = vmatpush1.xpose.msra.mxu0 0.0
    %523 = vmatprep.subr.mxu0 0.0
    %524 = vmatpush1.xpose.msra.mxu0 0.0
    %525 = vmatprep.subr.mxu0 0.0
    %526 = vmatpush1.xpose.msra.mxu0 0.0
    %527 = vmatprep.subr.mxu0 0.0
    %528 = vmatpush1.xpose.msra.mxu0 0.0
    %529 = vmatprep.subr.mxu0 0.0
    %530 = vmatpush1.xpose.msra.mxu0 0.0
    %531 = vmatprep.subr.mxu0 0.0
    %532 = vmatpush1.xpose.msra.mxu0 0.0
    %533 = vmatprep.subr.mxu0 0.0
    %534 = vmatpush1.xpose.msra.mxu0 0.0
    %535 = vmatprep.subr.mxu0 0.0
    %536 = vmatpush1.xpose.msra.mxu0 0.0
    %537 = vmatprep.subr.mxu0 0.0
    %538 = vmatpush1.xpose.msra.mxu0 0.0
    %539 = vmatprep.subr.mxu0 0.0
    %540 = vmatpush1.xpose.msra.mxu0 0.0
    %541 = vmatprep.subr.mxu0 0.0
    %542 = vmatpush1.xpose.msra.mxu0 0.0
    %543 = vmatprep.subr.mxu0 0.0
    %544 = vmatpush1.xpose.msra.mxu0 0.0
    %545 = vmatprep.subr.mxu0 0.0
    %546 = vmatpush1.xpose.msra.mxu0 0.0
    %547 = vmatprep.subr.mxu0 0.0
    %548 = vmatpush1.xpose.msra.mxu0 0.0
    %549 = vmatprep.subr.mxu0 0.0
    %550 = vmatpush1.xpose.msra.mxu0 0.0
    %551 = vmatprep.subr.mxu0 0.0
    %552 = vmatpush1.xpose.msra.mxu0 0.0
    %553 = vmatprep.subr.mxu0 0.0
    %554 = vmatpush1.xpose.msra.mxu0 0.0
    %555 = vmatprep.subr.mxu0 0.0
    %556 = vmatpush1.xpose.msra.mxu0 0.0
    %557 = vmatprep.subr.mxu0 0.0
    %558 = vmatpush1.xpose.msra.mxu0 0.0
    %559 = vmatprep.subr.mxu0 0.0
    %560 = vmatpush1.xpose.msra.mxu0 0.0
    %561 = vmatprep.subr.mxu0 0.0
    %562 = vmatpush1.xpose.msra.mxu0 0.0
    %563 = vmatprep.subr.mxu0 0.0
    %564 = vmatpush1.xpose.msra.mxu0 0.0
    %565 = vmatprep.mubr.f32.mxu0 0.0
    %566 = vmatmul.mubr.f32.gmra.mrb[0].mxu0 %v496
    %v567 = vpop.f32.mrb[0].mxu0
    %v568 = vadd.f32 0.0, %v567
    %v569 = vpop.f32.mrb[0].mxu0
    %570 = vdwg.mxu0
    %s571 = scalar_lea.vmem %s9, 1
    %v572 = vld [vmem:[%s571] sm:$0x1]
    %vm573 = vcmp.gt.f32.partialorder %v572, 0.0
    %v574 = vsel %vm573, 1, 0
    %v575 = vlaneseq
    %v576 = vshrl.u32 %v575, 7
    %v577 = vsub.s32 0, %v576
    %v578 = vrot.slane %v574, %v577
    %vm579 = vcmp.eq.s32.totalorder %v578, 1
    %v580 = vsel %vm579, -10000.0, %v568
    %v581 = vsel %vm323, %v580, -inf
    %582 = vmax.xlane.f32.xlu0 %v581
    %v583 = vpop.xlane.xlu0 %582
    %v584 = vsub.f32 %v580, %v583
    %v585 = vmul.f32 %v584, 1.442695
    %v586 = vpow.pop %v585
    %v587 = vsel %vm323, %v586, 0.0
    %588 = vadd.xlane.f32.xlu0 %v587
    %v589 = vpop.xlane.xlu0 %588
    %v590 = vrcp.pop %v589
    %v591 = vmul.f32 %v586, %v590
    %s592 = scalar_lea.vmem [#allocation2], 32
    %593 = vst.msk [vmem:[%s592] sm:$0xff] %vm323, %v591
    %v595 = vsel %vm323, %v591, 0
    %597 = vmatprep.subr.mxu0 0.0
    %598 = vmatpush1.msra.mxu0 %v320
    %599 = vmatprep.subr.mxu0 0.0
    %600 = vmatpush1.msra.mxu0 0.0
    %601 = vmatprep.subr.mxu0 0.0
    %602 = vmatpush1.msra.mxu0 0.0
    %603 = vmatprep.subr.mxu0 0.0
    %604 = vmatpush1.msra.mxu0 0.0
    %605 = vmatprep.subr.mxu0 0.0
    %606 = vmatpush1.msra.mxu0 0.0
    %607 = vmatprep.subr.mxu0 0.0
    %608 = vmatpush1.msra.mxu0 0.0
    %609 = vmatprep.subr.mxu0 0.0
    %610 = vmatpush1.msra.mxu0 0.0
    %611 = vmatprep.subr.mxu0 0.0
    %612 = vmatpush1.msra.mxu0 0.0
    %613 = vmatprep.subr.mxu0 0.0
    %614 = vmatpush1.msra.mxu0 0.0
    %615 = vmatprep.subr.mxu0 0.0
    %616 = vmatpush1.msra.mxu0 0.0
    %617 = vmatprep.subr.mxu0 0.0
    %618 = vmatpush1.msra.mxu0 0.0
    %619 = vmatprep.subr.mxu0 0.0
    %620 = vmatpush1.msra.mxu0 0.0
    %621 = vmatprep.subr.mxu0 0.0
    %622 = vmatpush1.msra.mxu0 0.0
    %623 = vmatprep.subr.mxu0 0.0
    %624 = vmatpush1.msra.mxu0 0.0
    %625 = vmatprep.subr.mxu0 0.0
    %626 = vmatpush1.msra.mxu0 0.0
    %627 = vmatprep.subr.mxu0 0.0
    %628 = vmatpush1.msra.mxu0 0.0
    %629 = vmatprep.subr.mxu0 0.0
    %630 = vmatpush1.msra.mxu0 0.0
    %631 = vmatprep.subr.mxu0 0.0
    %632 = vmatpush1.msra.mxu0 0.0
    %633 = vmatprep.subr.mxu0 0.0
    %634 = vmatpush1.msra.mxu0 0.0
    %635 = vmatprep.subr.mxu0 0.0
    %636 = vmatpush1.msra.mxu0 0.0
    %637 = vmatprep.subr.mxu0 0.0
    %638 = vmatpush1.msra.mxu0 0.0
    %639 = vmatprep.subr.mxu0 0.0
    %640 = vmatpush1.msra.mxu0 0.0
    %641 = vmatprep.subr.mxu0 0.0
    %642 = vmatpush1.msra.mxu0 0.0
    %643 = vmatprep.subr.mxu0 0.0
    %644 = vmatpush1.msra.mxu0 0.0
    %645 = vmatprep.subr.mxu0 0.0
    %646 = vmatpush1.msra.mxu0 0.0
    %647 = vmatprep.subr.mxu0 0.0
    %648 = vmatpush1.msra.mxu0 0.0
    %649 = vmatprep.subr.mxu0 0.0
    %650 = vmatpush1.msra.mxu0 0.0
    %651 = vmatprep.subr.mxu0 0.0
    %652 = vmatpush1.msra.mxu0 0.0
    %653 = vmatprep.subr.mxu0 0.0
    %654 = vmatpush1.msra.mxu0 0.0
    %655 = vmatprep.subr.mxu0 0.0
    %656 = vmatpush1.msra.mxu0 0.0
    %657 = vmatprep.subr.mxu0 0.0
    %658 = vmatpush1.msra.mxu0 0.0
    %659 = vmatprep.subr.mxu0 0.0
    %660 = vmatpush1.msra.mxu0 0.0
    %661 = vmatprep.mubr.f32.mxu0 0.0
    %662 = vmatmul.mubr.f32.gmra.mrb[0].mxu0 %v595
    %v663 = vpop.f32.mrb[0].mxu0
    %v664 = vadd.f32 0.0, %v663
    %v665 = vpop.f32.mrb[0].mxu0
    %666 = vdwg.mxu0
    %s667 = scalar_lea.vmem %s10, 32
    %668 = vst.msk [vmem:[%s667] sm:$0xff] %vm323, %v664
    %s669 = scalar_lea.vmem %s3, 32
    %v670 = vld [vmem:[%s669] sm:$0xff]
    %v671 = vld [vmem:[%s669 + $0x8] sm:$0xff]
    %v672 = vld [vmem:[%s669 + $0x10] sm:$0xff]
    %v673 = vld [vmem:[%s669 + $0x18] sm:$0xff]
    %s674 = scalar_lea.vmem %s6, 1
    %v675 = vld [vmem:[%s674] sm:$0x1]
    %v677 = vlaneseq
    %v678 = vshrl.u32 %v677, 7
    %v679 = vsub.s32 0, %v678
    %v680 = vrot.slane %v675, %v679
    %682 = vmatprep.subr.mxu0 0.0
    %683 = vmatpush1.msra.mxu0 %v670
    %684 = vmatprep.subr.mxu0 0.0
    %685 = vmatpush1.msra.mxu0 %v671
    %686 = vmatprep.subr.mxu0 0.0
    %687 = vmatpush1.msra.mxu0 %v672
    %688 = vmatprep.subr.mxu0 0.0
    %689 = vmatpush1.msra.mxu0 %v673
    %690 = vmatprep.subr.mxu0 0.0
    %691 = vmatpush1.msra.mxu0 0.0
    %692 = vmatprep.subr.mxu0 0.0
    %693 = vmatpush1.msra.mxu0 0.0
    %694 = vmatprep.subr.mxu0 0.0
    %695 = vmatpush1.msra.mxu0 0.0
    %696 = vmatprep.subr.mxu0 0.0
    %697 = vmatpush1.msra.mxu0 0.0
    %698 = vmatprep.subr.mxu0 0.0
    %699 = vmatpush1.msra.mxu0 0.0
    %700 = vmatprep.subr.mxu0 0.0
    %701 = vmatpush1.msra.mxu0 0.0
    %702 = vmatprep.subr.mxu0 0.0
    %703 = vmatpush1.msra.mxu0 0.0
    %704 = vmatprep.subr.mxu0 0.0
    %705 = vmatpush1.msra.mxu0 0.0
    %706 = vmatprep.subr.mxu0 0.0
    %707 = vmatpush1.msra.mxu0 0.0
    %708 = vmatprep.subr.mxu0 0.0
    %709 = vmatpush1.msra.mxu0 0.0
    %710 = vmatprep.subr.mxu0 0.0
    %711 = vmatpush1.msra.mxu0 0.0
    %712 = vmatprep.subr.mxu0 0.0
    %713 = vmatpush1.msra.mxu0 0.0
    %714 = vmatprep.subr.mxu0 0.0
    %715 = vmatpush1.msra.mxu0 0.0
    %716 = vmatprep.subr.mxu0 0.0
    %717 = vmatpush1.msra.mxu0 0.0
    %718 = vmatprep.subr.mxu0 0.0
    %719 = vmatpush1.msra.mxu0 0.0
    %720 = vmatprep.subr.mxu0 0.0
    %721 = vmatpush1.msra.mxu0 0.0
    %722 = vmatprep.subr.mxu0 0.0
    %723 = vmatpush1.msra.mxu0 0.0
    %724 = vmatprep.subr.mxu0 0.0
    %725 = vmatpush1.msra.mxu0 0.0
    %726 = vmatprep.subr.mxu0 0.0
    %727 = vmatpush1.msra.mxu0 0.0
    %728 = vmatprep.subr.mxu0 0.0
    %729 = vmatpush1.msra.mxu0 0.0
    %730 = vmatprep.subr.mxu0 0.0
    %731 = vmatpush1.msra.mxu0 0.0
    %732 = vmatprep.subr.mxu0 0.0
    %733 = vmatpush1.msra.mxu0 0.0
    %734 = vmatprep.subr.mxu0 0.0
    %735 = vmatpush1.msra.mxu0 0.0
    %736 = vmatprep.subr.mxu0 0.0
    %737 = vmatpush1.msra.mxu0 0.0
    %738 = vmatprep.subr.mxu0 0.0
    %739 = vmatpush1.msra.mxu0 0.0
    %740 = vmatprep.subr.mxu0 0.0
    %741 = vmatpush1.msra.mxu0 0.0
    %742 = vmatprep.subr.mxu0 0.0
    %743 = vmatpush1.msra.mxu0 0.0
    %744 = vmatprep.subr.mxu0 0.0
    %745 = vmatpush1.msra.mxu0 0.0
    %746 = vmatprep.mubr.f32.mxu0 0.0
    %747 = vmatmul.mubr.f32.gmra.mrb[0].mxu0 %v57
    %v748 = vpop.f32.mrb[0].mxu0
    %v749 = vadd.f32 %v680, %v748
    %v750 = vpop.f32.mrb[0].mxu0
    %751 = vmatprep.mubr.f32.mxu0 0.0
    %752 = vmatmul.mubr.f32.gmra.mrb[0].mxu0 %v60
    %v753 = vpop.f32.mrb[0].mxu0
    %v754 = vadd.f32 %v680, %v753
    %v755 = vpop.f32.mrb[0].mxu0
    %756 = vdwg.mxu0
    %v757 = vmul.f32 %v749, 0.35355338
    %v758 = vmul.f32 %v754, 0.35355338
    %s759 = scalar_lea.vmem %s4, 32
    %v760 = vld [vmem:[%s759] sm:$0xff]
    %v761 = vld [vmem:[%s759 + $0x8] sm:$0xff]
    %v762 = vld [vmem:[%s759 + $0x10] sm:$0xff]
    %v763 = vld [vmem:[%s759 + $0x18] sm:$0xff]
    %s764 = scalar_lea.vmem %s7, 1
    %v765 = vld [vmem:[%s764] sm:$0x1]
    %v767 = vlaneseq
    %v768 = vshrl.u32 %v767, 7
    %v769 = vsub.s32 0, %v768
    %v770 = vrot.slane %v765, %v769
    %772 = vmatprep.subr.mxu0 0.0
    %773 = vmatpush1.msra.mxu0 %v760
    %774 = vmatprep.subr.mxu0 0.0
    %775 = vmatpush1.msra.mxu0 %v761
    %776 = vmatprep.subr.mxu0 0.0
    %777 = vmatpush1.msra.mxu0 %v762
    %778 = vmatprep.subr.mxu0 0.0
    %779 = vmatpush1.msra.mxu0 %v763
    %780 = vmatprep.subr.mxu0 0.0
    %781 = vmatpush1.msra.mxu0 0.0
    %782 = vmatprep.subr.mxu0 0.0
    %783 = vmatpush1.msra.mxu0 0.0
    %784 = vmatprep.subr.mxu0 0.0
    %785 = vmatpush1.msra.mxu0 0.0
    %786 = vmatprep.subr.mxu0 0.0
    %787 = vmatpush1.msra.mxu0 0.0
    %788 = vmatprep.subr.mxu0 0.0
    %789 = vmatpush1.msra.mxu0 0.0
    %790 = vmatprep.subr.mxu0 0.0
    %791 = vmatpush1.msra.mxu0 0.0
    %792 = vmatprep.subr.mxu0 0.0
    %793 = vmatpush1.msra.mxu0 0.0
    %794 = vmatprep.subr.mxu0 0.0
    %795 = vmatpush1.msra.mxu0 0.0
    %796 = vmatprep.subr.mxu0 0.0
    %797 = vmatpush1.msra.mxu0 0.0
    %798 = vmatprep.subr.mxu0 0.0
    %799 = vmatpush1.msra.mxu0 0.0
    %800 = vmatprep.subr.mxu0 0.0
    %801 = vmatpush1.msra.mxu0 0.0
    %802 = vmatprep.subr.mxu0 0.0
    %803 = vmatpush1.msra.mxu0 0.0
    %804 = vmatprep.subr.mxu0 0.0
    %805 = vmatpush1.msra.mxu0 0.0
    %806 = vmatprep.subr.mxu0 0.0
    %807 = vmatpush1.msra.mxu0 0.0
    %808 = vmatprep.subr.mxu0 0.0
    %809 = vmatpush1.msra.mxu0 0.0
    %810 = vmatprep.subr.mxu0 0.0
    %811 = vmatpush1.msra.mxu0 0.0
    %812 = vmatprep.subr.mxu0 0.0
    %813 = vmatpush1.msra.mxu0 0.0
    %814 = vmatprep.subr.mxu0 0.0
    %815 = vmatpush1.msra.mxu0 0.0
    %816 = vmatprep.subr.mxu0 0.0
    %817 = vmatpush1.msra.mxu0 0.0
    %818 = vmatprep.subr.mxu0 0.0
    %819 = vmatpush1.msra.mxu0 0.0
    %820 = vmatprep.subr.mxu0 0.0
    %821 = vmatpush1.msra.mxu0 0.0
    %822 = vmatprep.subr.mxu0 0.0
    %823 = vmatpush1.msra.mxu0 0.0
    %824 = vmatprep.subr.mxu0 0.0
    %825 = vmatpush1.msra.mxu0 0.0
    %826 = vmatprep.subr.mxu0 0.0
    %827 = vmatpush1.msra.mxu0 0.0
    %828 = vmatprep.subr.mxu0 0.0
    %829 = vmatpush1.msra.mxu0 0.0
    %830 = vmatprep.subr.mxu0 0.0
    %831 = vmatpush1.msra.mxu0 0.0
    %832 = vmatprep.subr.mxu0 0.0
    %833 = vmatpush1.msra.mxu0 0.0
    %834 = vmatprep.subr.mxu0 0.0
    %835 = vmatpush1.msra.mxu0 0.0
    %836 = vmatprep.mubr.f32.mxu0 0.0
    %837 = vmatmul.mubr.f32.gmra.mrb[0].mxu0 %v151
    %v838 = vpop.f32.mrb[0].mxu0
    %v839 = vadd.f32 %v770, %v838
    %v840 = vpop.f32.mrb[0].mxu0
    %841 = vmatprep.mubr.f32.mxu0 0.0
    %842 = vmatmul.mubr.f32.gmra.mrb[0].mxu0 %v154
    %v843 = vpop.f32.mrb[0].mxu0
    %v844 = vadd.f32 %v770, %v843
    %v845 = vpop.f32.mrb[0].mxu0
    %846 = vdwg.mxu0
    %s847 = scalar_lea.vmem %s5, 32
    %v848 = vld [vmem:[%s847] sm:$0xff]
    %v849 = vld [vmem:[%s847 + $0x8] sm:$0xff]
    %v850 = vld [vmem:[%s847 + $0x10] sm:$0xff]
    %v851 = vld [vmem:[%s847 + $0x18] sm:$0xff]
    %s852 = scalar_lea.vmem %s8, 1
    %v853 = vld [vmem:[%s852] sm:$0x1]
    %v855 = vlaneseq
    %v856 = vshrl.u32 %v855, 7
    %v857 = vsub.s32 0, %v856
    %v858 = vrot.slane %v853, %v857
    %860 = vmatprep.subr.mxu0 0.0
    %861 = vmatpush1.msra.mxu0 %v848
    %862 = vmatprep.subr.mxu0 0.0
    %863 = vmatpush1.msra.mxu0 %v849
    %864 = vmatprep.subr.mxu0 0.0
    %865 = vmatpush1.msra.mxu0 %v850
    %866 = vmatprep.subr.mxu0 0.0
    %867 = vmatpush1.msra.mxu0 %v851
    %868 = vmatprep.subr.mxu0 0.0
    %869 = vmatpush1.msra.mxu0 0.0
    %870 = vmatprep.subr.mxu0 0.0
    %871 = vmatpush1.msra.mxu0 0.0
    %872 = vmatprep.subr.mxu0 0.0
    %873 = vmatpush1.msra.mxu0 0.0
    %874 = vmatprep.subr.mxu0 0.0
    %875 = vmatpush1.msra.mxu0 0.0
    %876 = vmatprep.subr.mxu0 0.0
    %877 = vmatpush1.msra.mxu0 0.0
    %878 = vmatprep.subr.mxu0 0.0
    %879 = vmatpush1.msra.mxu0 0.0
    %880 = vmatprep.subr.mxu0 0.0
    %881 = vmatpush1.msra.mxu0 0.0
    %882 = vmatprep.subr.mxu0 0.0
    %883 = vmatpush1.msra.mxu0 0.0
    %884 = vmatprep.subr.mxu0 0.0
    %885 = vmatpush1.msra.mxu0 0.0
    %886 = vmatprep.subr.mxu0 0.0
    %887 = vmatpush1.msra.mxu0 0.0
    %888 = vmatprep.subr.mxu0 0.0
    %889 = vmatpush1.msra.mxu0 0.0
    %890 = vmatprep.subr.mxu0 0.0
    %891 = vmatpush1.msra.mxu0 0.0
    %892 = vmatprep.subr.mxu0 0.0
    %893 = vmatpush1.msra.mxu0 0.0
    %894 = vmatprep.subr.mxu0 0.0
    %895 = vmatpush1.msra.mxu0 0.0
    %896 = vmatprep.subr.mxu0 0.0
    %897 = vmatpush1.msra.mxu0 0.0
    %898 = vmatprep.subr.mxu0 0.0
    %899 = vmatpush1.msra.mxu0 0.0
    %900 = vmatprep.subr.mxu0 0.0
    %901 = vmatpush1.msra.mxu0 0.0
    %902 = vmatprep.subr.mxu0 0.0
    %903 = vmatpush1.msra.mxu0 0.0
    %904 = vmatprep.subr.mxu0 0.0
    %905 = vmatpush1.msra.mxu0 0.0
    %906 = vmatprep.subr.mxu0 0.0
    %907 = vmatpush1.msra.mxu0 0.0
    %908 = vmatprep.subr.mxu0 0.0
    %909 = vmatpush1.msra.mxu0 0.0
    %910 = vmatprep.subr.mxu0 0.0
    %911 = vmatpush1.msra.mxu0 0.0
    %912 = vmatprep.subr.mxu0 0.0
    %913 = vmatpush1.msra.mxu0 0.0
    %914 = vmatprep.subr.mxu0 0.0
    %915 = vmatpush1.msra.mxu0 0.0
    %916 = vmatprep.subr.mxu0 0.0
    %917 = vmatpush1.msra.mxu0 0.0
    %918 = vmatprep.subr.mxu0 0.0
    %919 = vmatpush1.msra.mxu0 0.0
    %920 = vmatprep.subr.mxu0 0.0
    %921 = vmatpush1.msra.mxu0 0.0
    %922 = vmatprep.subr.mxu0 0.0
    %923 = vmatpush1.msra.mxu0 0.0
    %924 = vmatprep.mubr.f32.mxu0 0.0
    %925 = vmatmul.mubr.f32.gmra.mrb[0].mxu0 %v243
    %v926 = vpop.f32.mrb[0].mxu0
    %v927 = vadd.f32 %v858, %v926
    %v928 = vpop.f32.mrb[0].mxu0
    %929 = vmatprep.mubr.f32.mxu0 0.0
    %930 = vmatmul.mubr.f32.gmra.mrb[0].mxu0 %v246
    %v931 = vpop.f32.mrb[0].mxu0
    %v932 = vadd.f32 %v858, %v931
    %v933 = vpop.f32.mrb[0].mxu0
    %934 = vdwg.mxu0
    %v936 = vsel %vm323, %v757, 0
    %v939 = vsel %vm323, %v839, 0
    %941 = vmatprep.subr.mxu0 0.0
    %942 = vmatpush1.xpose.msra.mxu0 %v939
    %943 = vmatprep.subr.mxu0 0.0
    %944 = vmatpush1.xpose.msra.mxu0 0.0
    %945 = vmatprep.subr.mxu0 0.0
    %946 = vmatpush1.xpose.msra.mxu0 0.0
    %947 = vmatprep.subr.mxu0 0.0
    %948 = vmatpush1.xpose.msra.mxu0 0.0
    %949 = vmatprep.subr.mxu0 0.0
    %950 = vmatpush1.xpose.msra.mxu0 0.0
    %951 = vmatprep.subr.mxu0 0.0
    %952 = vmatpush1.xpose.msra.mxu0 0.0
    %953 = vmatprep.subr.mxu0 0.0
    %954 = vmatpush1.xpose.msra.mxu0 0.0
    %955 = vmatprep.subr.mxu0 0.0
    %956 = vmatpush1.xpose.msra.mxu0 0.0
    %957 = vmatprep.subr.mxu0 0.0
    %958 = vmatpush1.xpose.msra.mxu0 0.0
    %959 = vmatprep.subr.mxu0 0.0
    %960 = vmatpush1.xpose.msra.mxu0 0.0
    %961 = vmatprep.subr.mxu0 0.0
    %962 = vmatpush1.xpose.msra.mxu0 0.0
    %963 = vmatprep.subr.mxu0 0.0
    %964 = vmatpush1.xpose.msra.mxu0 0.0
    %965 = vmatprep.subr.mxu0 0.0
    %966 = vmatpush1.xpose.msra.mxu0 0.0
    %967 = vmatprep.subr.mxu0 0.0
    %968 = vmatpush1.xpose.msra.mxu0 0.0
    %969 = vmatprep.subr.mxu0 0.0
    %970 = vmatpush1.xpose.msra.mxu0 0.0
    %971 = vmatprep.subr.mxu0 0.0
    %972 = vmatpush1.xpose.msra.mxu0 0.0
    %973 = vmatprep.subr.mxu0 0.0
    %974 = vmatpush1.xpose.msra.mxu0 0.0
    %975 = vmatprep.subr.mxu0 0.0
    %976 = vmatpush1.xpose.msra.mxu0 0.0
    %977 = vmatprep.subr.mxu0 0.0
    %978 = vmatpush1.xpose.msra.mxu0 0.0
    %979 = vmatprep.subr.mxu0 0.0
    %980 = vmatpush1.xpose.msra.mxu0 0.0
    %981 = vmatprep.subr.mxu0 0.0
    %982 = vmatpush1.xpose.msra.mxu0 0.0
    %983 = vmatprep.subr.mxu0 0.0
    %984 = vmatpush1.xpose.msra.mxu0 0.0
    %985 = vmatprep.subr.mxu0 0.0
    %986 = vmatpush1.xpose.msra.mxu0 0.0
    %987 = vmatprep.subr.mxu0 0.0
    %988 = vmatpush1.xpose.msra.mxu0 0.0
    %989 = vmatprep.subr.mxu0 0.0
    %990 = vmatpush1.xpose.msra.mxu0 0.0
    %991 = vmatprep.subr.mxu0 0.0
    %992 = vmatpush1.xpose.msra.mxu0 0.0
    %993 = vmatprep.subr.mxu0 0.0
    %994 = vmatpush1.xpose.msra.mxu0 0.0
    %995 = vmatprep.subr.mxu0 0.0
    %996 = vmatpush1.xpose.msra.mxu0 0.0
    %997 = vmatprep.subr.mxu0 0.0
    %998 = vmatpush1.xpose.msra.mxu0 0.0
    %999 = vmatprep.subr.mxu0 0.0
    %1000 = vmatpush1.xpose.msra.mxu0 0.0
    %1001 = vmatprep.subr.mxu0 0.0
    %1002 = vmatpush1.xpose.msra.mxu0 0.0
    %1003 = vmatprep.subr.mxu0 0.0
    %1004 = vmatpush1.xpose.msra.mxu0 0.0
    %1005 = vmatprep.mubr.f32.mxu0 0.0
    %1006 = vmatmul.mubr.f32.gmra.mrb[0].mxu0 %v936
    %v1007 = vpop.f32.mrb[0].mxu0
    %v1008 = vadd.f32 0.0, %v1007
    %v1009 = vpop.f32.mrb[0].mxu0
    %1010 = vdwg.mxu0
    %v1011 = vld [vmem:[%s9] sm:$0x1]
    %vm1012 = vcmp.gt.f32.partialorder %v1011, 0.0
    %v1013 = vsel %vm1012, 1, 0
    %v1014 = vlaneseq
    %v1015 = vshrl.u32 %v1014, 7
    %v1016 = vsub.s32 0, %v1015
    %v1017 = vrot.slane %v1013, %v1016
    %vm1018 = vcmp.eq.s32.totalorder %v1017, 1
    %v1019 = vsel %vm1018, -10000.0, %v1008
    %v1020 = vsel %vm323, %v1019, -inf
    %1021 = vmax.xlane.f32.xlu0 %v1020
    %v1022 = vpop.xlane.xlu0 %1021
    %v1023 = vsub.f32 %v1019, %v1022
    %v1024 = vmul.f32 %v1023, 1.442695
    %v1025 = vpow.pop %v1024
    %v1026 = vsel %vm323, %v1025, 0.0
    %1027 = vadd.xlane.f32.xlu0 %v1026
    %v1028 = vpop.xlane.xlu0 %1027
    %v1029 = vrcp.pop %v1028
    %v1030 = vmul.f32 %v1025, %v1029
    %s1031 = scalar_lea.vmem [#allocation2], 8
    %1032 = vst.msk [vmem:[%s1031] sm:$0xff] %vm323, %v1030
    %v1034 = vsel %vm323, %v1030, 0
    %1036 = vmatprep.subr.mxu0 0.0
    %1037 = vmatpush1.msra.mxu0 %v927
    %1038 = vmatprep.subr.mxu0 0.0
    %1039 = vmatpush1.msra.mxu0 0.0
    %1040 = vmatprep.subr.mxu0 0.0
    %1041 = vmatpush1.msra.mxu0 0.0
    %1042 = vmatprep.subr.mxu0 0.0
    %1043 = vmatpush1.msra.mxu0 0.0
    %1044 = vmatprep.subr.mxu0 0.0
    %1045 = vmatpush1.msra.mxu0 0.0
    %1046 = vmatprep.subr.mxu0 0.0
    %1047 = vmatpush1.msra.mxu0 0.0
    %1048 = vmatprep.subr.mxu0 0.0
    %1049 = vmatpush1.msra.mxu0 0.0
    %1050 = vmatprep.subr.mxu0 0.0
    %1051 = vmatpush1.msra.mxu0 0.0
    %1052 = vmatprep.subr.mxu0 0.0
    %1053 = vmatpush1.msra.mxu0 0.0
    %1054 = vmatprep.subr.mxu0 0.0
    %1055 = vmatpush1.msra.mxu0 0.0
    %1056 = vmatprep.subr.mxu0 0.0
    %1057 = vmatpush1.msra.mxu0 0.0
    %1058 = vmatprep.subr.mxu0 0.0
    %1059 = vmatpush1.msra.mxu0 0.0
    %1060 = vmatprep.subr.mxu0 0.0
    %1061 = vmatpush1.msra.mxu0 0.0
    %1062 = vmatprep.subr.mxu0 0.0
    %1063 = vmatpush1.msra.mxu0 0.0
    %1064 = vmatprep.subr.mxu0 0.0
    %1065 = vmatpush1.msra.mxu0 0.0
    %1066 = vmatprep.subr.mxu0 0.0
    %1067 = vmatpush1.msra.mxu0 0.0
    %1068 = vmatprep.subr.mxu0 0.0
    %1069 = vmatpush1.msra.mxu0 0.0
    %1070 = vmatprep.subr.mxu0 0.0
    %1071 = vmatpush1.msra.mxu0 0.0
    %1072 = vmatprep.subr.mxu0 0.0
    %1073 = vmatpush1.msra.mxu0 0.0
    %1074 = vmatprep.subr.mxu0 0.0
    %1075 = vmatpush1.msra.mxu0 0.0
    %1076 = vmatprep.subr.mxu0 0.0
    %1077 = vmatpush1.msra.mxu0 0.0
    %1078 = vmatprep.subr.mxu0 0.0
    %1079 = vmatpush1.msra.mxu0 0.0
    %1080 = vmatprep.subr.mxu0 0.0
    %1081 = vmatpush1.msra.mxu0 0.0
    %1082 = vmatprep.subr.mxu0 0.0
    %1083 = vmatpush1.msra.mxu0 0.0
    %1084 = vmatprep.subr.mxu0 0.0
    %1085 = vmatpush1.msra.mxu0 0.0
    %1086 = vmatprep.subr.mxu0 0.0
    %1087 = vmatpush1.msra.mxu0 0.0
    %1088 = vmatprep.subr.mxu0 0.0
    %1089 = vmatpush1.msra.mxu0 0.0
    %1090 = vmatprep.subr.mxu0 0.0
    %1091 = vmatpush1.msra.mxu0 0.0
    %1092 = vmatprep.subr.mxu0 0.0
    %1093 = vmatpush1.msra.mxu0 0.0
    %1094 = vmatprep.subr.mxu0 0.0
    %1095 = vmatpush1.msra.mxu0 0.0
    %1096 = vmatprep.subr.mxu0 0.0
    %1097 = vmatpush1.msra.mxu0 0.0
    %1098 = vmatprep.subr.mxu0 0.0
    %1099 = vmatpush1.msra.mxu0 0.0
    %1100 = vmatprep.mubr.f32.mxu0 0.0
    %1101 = vmatmul.mubr.f32.gmra.mrb[0].mxu0 %v1034
    %v1102 = vpop.f32.mrb[0].mxu0
    %v1103 = vadd.f32 0.0, %v1102
    %v1104 = vpop.f32.mrb[0].mxu0
    %1105 = vdwg.mxu0
    %s1106 = scalar_lea.vmem %s10, 8
    %1107 = vst.msk [vmem:[%s1106] sm:$0xff] %vm323, %v1103
    %v1109 = vsel %vm323, %v758, 0
    %v1112 = vsel %vm323, %v844, 0
    %1114 = vmatprep.subr.mxu0 0.0
    %1115 = vmatpush1.xpose.msra.mxu0 %v1112
    %1116 = vmatprep.subr.mxu0 0.0
    %1117 = vmatpush1.xpose.msra.mxu0 0.0
    %1118 = vmatprep.subr.mxu0 0.0
    %1119 = vmatpush1.xpose.msra.mxu0 0.0
    %1120 = vmatprep.subr.mxu0 0.0
    %1121 = vmatpush1.xpose.msra.mxu0 0.0
    %1122 = vmatprep.subr.mxu0 0.0
    %1123 = vmatpush1.xpose.msra.mxu0 0.0
    %1124 = vmatprep.subr.mxu0 0.0
    %1125 = vmatpush1.xpose.msra.mxu0 0.0
    %1126 = vmatprep.subr.mxu0 0.0
    %1127 = vmatpush1.xpose.msra.mxu0 0.0
    %1128 = vmatprep.subr.mxu0 0.0
    %1129 = vmatpush1.xpose.msra.mxu0 0.0
    %1130 = vmatprep.subr.mxu0 0.0
    %1131 = vmatpush1.xpose.msra.mxu0 0.0
    %1132 = vmatprep.subr.mxu0 0.0
    %1133 = vmatpush1.xpose.msra.mxu0 0.0
    %1134 = vmatprep.subr.mxu0 0.0
    %1135 = vmatpush1.xpose.msra.mxu0 0.0
    %1136 = vmatprep.subr.mxu0 0.0
    %1137 = vmatpush1.xpose.msra.mxu0 0.0
    %1138 = vmatprep.subr.mxu0 0.0
    %1139 = vmatpush1.xpose.msra.mxu0 0.0
    %1140 = vmatprep.subr.mxu0 0.0
    %1141 = vmatpush1.xpose.msra.mxu0 0.0
    %1142 = vmatprep.subr.mxu0 0.0
    %1143 = vmatpush1.xpose.msra.mxu0 0.0
    %1144 = vmatprep.subr.mxu0 0.0
    %1145 = vmatpush1.xpose.msra.mxu0 0.0
    %1146 = vmatprep.subr.mxu0 0.0
    %1147 = vmatpush1.xpose.msra.mxu0 0.0
    %1148 = vmatprep.subr.mxu0 0.0
    %1149 = vmatpush1.xpose.msra.mxu0 0.0
    %1150 = vmatprep.subr.mxu0 0.0
    %1151 = vmatpush1.xpose.msra.mxu0 0.0
    %1152 = vmatprep.subr.mxu0 0.0
    %1153 = vmatpush1.xpose.msra.mxu0 0.0
    %1154 = vmatprep.subr.mxu0 0.0
    %1155 = vmatpush1.xpose.msra.mxu0 0.0
    %1156 = vmatprep.subr.mxu0 0.0
    %1157 = vmatpush1.xpose.msra.mxu0 0.0
    %1158 = vmatprep.subr.mxu0 0.0
    %1159 = vmatpush1.xpose.msra.mxu0 0.0
    %1160 = vmatprep.subr.mxu0 0.0
    %1161 = vmatpush1.xpose.msra.mxu0 0.0
    %1162 = vmatprep.subr.mxu0 0.0
    %1163 = vmatpush1.xpose.msra.mxu0 0.0
    %1164 = vmatprep.subr.mxu0 0.0
    %1165 = vmatpush1.xpose.msra.mxu0 0.0
    %1166 = vmatprep.subr.mxu0 0.0
    %1167 = vmatpush1.xpose.msra.mxu0 0.0
    %1168 = vmatprep.subr.mxu0 0.0
    %1169 = vmatpush1.xpose.msra.mxu0 0.0
    %1170 = vmatprep.subr.mxu0 0.0
    %1171 = vmatpush1.xpose.msra.mxu0 0.0
    %1172 = vmatprep.subr.mxu0 0.0
    %1173 = vmatpush1.xpose.msra.mxu0 0.0
    %1174 = vmatprep.subr.mxu0 0.0
    %1175 = vmatpush1.xpose.msra.mxu0 0.0
    %1176 = vmatprep.subr.mxu0 0.0
    %1177 = vmatpush1.xpose.msra.mxu0 0.0
    %1178 = vmatprep.mubr.f32.mxu0 0.0
    %1179 = vmatmul.mubr.f32.gmra.mrb[0].mxu0 %v1109
    %v1180 = vpop.f32.mrb[0].mxu0
    %v1181 = vadd.f32 0.0, %v1180
    %v1182 = vpop.f32.mrb[0].mxu0
    %1183 = vdwg.mxu0
    %v1184 = vld [vmem:[%s571] sm:$0x1]
    %vm1185 = vcmp.gt.f32.partialorder %v1184, 0.0
    %v1186 = vsel %vm1185, 1, 0
    %v1187 = vlaneseq
    %v1188 = vshrl.u32 %v1187, 7
    %v1189 = vsub.s32 0, %v1188
    %v1190 = vrot.slane %v1186, %v1189
    %vm1191 = vcmp.eq.s32.totalorder %v1190, 1
    %v1192 = vsel %vm1191, -10000.0, %v1181
    %v1193 = vsel %vm323, %v1192, -inf
    %1194 = vmax.xlane.f32.xlu0 %v1193
    %v1195 = vpop.xlane.xlu0 %1194
    %v1196 = vsub.f32 %v1192, %v1195
    %v1197 = vmul.f32 %v1196, 1.442695
    %v1198 = vpow.pop %v1197
    %v1199 = vsel %vm323, %v1198, 0.0
    %1200 = vadd.xlane.f32.xlu0 %v1199
    %v1201 = vpop.xlane.xlu0 %1200
    %v1202 = vrcp.pop %v1201
    %v1203 = vmul.f32 %v1198, %v1202
    %s1204 = scalar_lea.vmem [#allocation2], 40
    %1205 = vst.msk [vmem:[%s1204] sm:$0xff] %vm323, %v1203
    %v1207 = vsel %vm323, %v1203, 0
    %1209 = vmatprep.subr.mxu0 0.0
    %1210 = vmatpush1.msra.mxu0 %v932
    %1211 = vmatprep.subr.mxu0 0.0
    %1212 = vmatpush1.msra.mxu0 0.0
    %1213 = vmatprep.subr.mxu0 0.0
    %1214 = vmatpush1.msra.mxu0 0.0
    %1215 = vmatprep.subr.mxu0 0.0
    %1216 = vmatpush1.msra.mxu0 0.0
    %1217 = vmatprep.subr.mxu0 0.0
    %1218 = vmatpush1.msra.mxu0 0.0
    %1219 = vmatprep.subr.mxu0 0.0
    %1220 = vmatpush1.msra.mxu0 0.0
    %1221 = vmatprep.subr.mxu0 0.0
    %1222 = vmatpush1.msra.mxu0 0.0
    %1223 = vmatprep.subr.mxu0 0.0
    %1224 = vmatpush1.msra.mxu0 0.0
    %1225 = vmatprep.subr.mxu0 0.0
    %1226 = vmatpush1.msra.mxu0 0.0
    %1227 = vmatprep.subr.mxu0 0.0
    %1228 = vmatpush1.msra.mxu0 0.0
    %1229 = vmatprep.subr.mxu0 0.0
    %1230 = vmatpush1.msra.mxu0 0.0
    %1231 = vmatprep.subr.mxu0 0.0
    %1232 = vmatpush1.msra.mxu0 0.0
    %1233 = vmatprep.subr.mxu0 0.0
    %1234 = vmatpush1.msra.mxu0 0.0
    %1235 = vmatprep.subr.mxu0 0.0
    %1236 = vmatpush1.msra.mxu0 0.0
    %1237 = vmatprep.subr.mxu0 0.0
    %1238 = vmatpush1.msra.mxu0 0.0
    %1239 = vmatprep.subr.mxu0 0.0
    %1240 = vmatpush1.msra.mxu0 0.0
    %1241 = vmatprep.subr.mxu0 0.0
    %1242 = vmatpush1.msra.mxu0 0.0
    %1243 = vmatprep.subr.mxu0 0.0
    %1244 = vmatpush1.msra.mxu0 0.0
    %1245 = vmatprep.subr.mxu0 0.0
    %1246 = vmatpush1.msra.mxu0 0.0
    %1247 = vmatprep.subr.mxu0 0.0
    %1248 = vmatpush1.msra.mxu0 0.0
    %1249 = vmatprep.subr.mxu0 0.0
    %1250 = vmatpush1.msra.mxu0 0.0
    %1251 = vmatprep.subr.mxu0 0.0
    %1252 = vmatpush1.msra.mxu0 0.0
    %1253 = vmatprep.subr.mxu0 0.0
    %1254 = vmatpush1.msra.mxu0 0.0
    %1255 = vmatprep.subr.mxu0 0.0
    %1256 = vmatpush1.msra.mxu0 0.0
    %1257 = vmatprep.subr.mxu0 0.0
    %1258 = vmatpush1.msra.mxu0 0.0
    %1259 = vmatprep.subr.mxu0 0.0
    %1260 = vmatpush1.msra.mxu0 0.0
    %1261 = vmatprep.subr.mxu0 0.0
    %1262 = vmatpush1.msra.mxu0 0.0
    %1263 = vmatprep.subr.mxu0 0.0
    %1264 = vmatpush1.msra.mxu0 0.0
    %1265 = vmatprep.subr.mxu0 0.0
    %1266 = vmatpush1.msra.mxu0 0.0
    %1267 = vmatprep.subr.mxu0 0.0
    %1268 = vmatpush1.msra.mxu0 0.0
    %1269 = vmatprep.subr.mxu0 0.0
    %1270 = vmatpush1.msra.mxu0 0.0
    %1271 = vmatprep.subr.mxu0 0.0
    %1272 = vmatpush1.msra.mxu0 0.0
    %1273 = vmatprep.mubr.f32.mxu0 0.0
    %1274 = vmatmul.mubr.f32.gmra.mrb[0].mxu0 %v1207
    %v1275 = vpop.f32.mrb[0].mxu0
    %v1276 = vadd.f32 0.0, %v1275
    %v1277 = vpop.f32.mrb[0].mxu0
    %1278 = vdwg.mxu0
    %s1279 = scalar_lea.vmem %s10, 40
    %1280 = vst.msk [vmem:[%s1279] sm:$0xff] %vm323, %v1276
    %s1281 = scalar_lea.vmem %s3, 64
    %v1282 = vld [vmem:[%s1281] sm:$0xff]
    %v1283 = vld [vmem:[%s1281 + $0x8] sm:$0xff]
    %v1284 = vld [vmem:[%s1281 + $0x10] sm:$0xff]
    %v1285 = vld [vmem:[%s1281 + $0x18] sm:$0xff]
    %s1286 = scalar_lea.vmem %s6, 2
    %v1287 = vld [vmem:[%s1286] sm:$0x1]
    %v1289 = vlaneseq
    %v1290 = vshrl.u32 %v1289, 7
    %v1291 = vsub.s32 0, %v1290
    %v1292 = vrot.slane %v1287, %v1291
    %1294 = vmatprep.subr.mxu0 0.0
    %1295 = vmatpush1.msra.mxu0 %v1282
    %1296 = vmatprep.subr.mxu0 0.0
    %1297 = vmatpush1.msra.mxu0 %v1283
    %1298 = vmatprep.subr.mxu0 0.0
    %1299 = vmatpush1.msra.mxu0 %v1284
    %1300 = vmatprep.subr.mxu0 0.0
    %1301 = vmatpush1.msra.mxu0 %v1285
    %1302 = vmatprep.subr.mxu0 0.0
    %1303 = vmatpush1.msra.mxu0 0.0
    %1304 = vmatprep.subr.mxu0 0.0
    %1305 = vmatpush1.msra.mxu0 0.0
    %1306 = vmatprep.subr.mxu0 0.0
    %1307 = vmatpush1.msra.mxu0 0.0
    %1308 = vmatprep.subr.mxu0 0.0
    %1309 = vmatpush1.msra.mxu0 0.0
    %1310 = vmatprep.subr.mxu0 0.0
    %1311 = vmatpush1.msra.mxu0 0.0
    %1312 = vmatprep.subr.mxu0 0.0
    %1313 = vmatpush1.msra.mxu0 0.0
    %1314 = vmatprep.subr.mxu0 0.0
    %1315 = vmatpush1.msra.mxu0 0.0
    %1316 = vmatprep.subr.mxu0 0.0
    %1317 = vmatpush1.msra.mxu0 0.0
    %1318 = vmatprep.subr.mxu0 0.0
    %1319 = vmatpush1.msra.mxu0 0.0
    %1320 = vmatprep.subr.mxu0 0.0
    %1321 = vmatpush1.msra.mxu0 0.0
    %1322 = vmatprep.subr.mxu0 0.0
    %1323 = vmatpush1.msra.mxu0 0.0
    %1324 = vmatprep.subr.mxu0 0.0
    %1325 = vmatpush1.msra.mxu0 0.0
    %1326 = vmatprep.subr.mxu0 0.0
    %1327 = vmatpush1.msra.mxu0 0.0
    %1328 = vmatprep.subr.mxu0 0.0
    %1329 = vmatpush1.msra.mxu0 0.0
    %1330 = vmatprep.subr.mxu0 0.0
    %1331 = vmatpush1.msra.mxu0 0.0
    %1332 = vmatprep.subr.mxu0 0.0
    %1333 = vmatpush1.msra.mxu0 0.0
    %1334 = vmatprep.subr.mxu0 0.0
    %1335 = vmatpush1.msra.mxu0 0.0
    %1336 = vmatprep.subr.mxu0 0.0
    %1337 = vmatpush1.msra.mxu0 0.0
    %1338 = vmatprep.subr.mxu0 0.0
    %1339 = vmatpush1.msra.mxu0 0.0
    %1340 = vmatprep.subr.mxu0 0.0
    %1341 = vmatpush1.msra.mxu0 0.0
    %1342 = vmatprep.subr.mxu0 0.0
    %1343 = vmatpush1.msra.mxu0 0.0
    %1344 = vmatprep.subr.mxu0 0.0
    %1345 = vmatpush1.msra.mxu0 0.0
    %1346 = vmatprep.subr.mxu0 0.0
    %1347 = vmatpush1.msra.mxu0 0.0
    %1348 = vmatprep.subr.mxu0 0.0
    %1349 = vmatpush1.msra.mxu0 0.0
    %1350 = vmatprep.subr.mxu0 0.0
    %1351 = vmatpush1.msra.mxu0 0.0
    %1352 = vmatprep.subr.mxu0 0.0
    %1353 = vmatpush1.msra.mxu0 0.0
    %1354 = vmatprep.subr.mxu0 0.0
    %1355 = vmatpush1.msra.mxu0 0.0
    %1356 = vmatprep.subr.mxu0 0.0
    %1357 = vmatpush1.msra.mxu0 0.0
    %1358 = vmatprep.mubr.f32.mxu0 0.0
    %1359 = vmatmul.mubr.f32.gmra.mrb[0].mxu0 %v57
    %v1360 = vpop.f32.mrb[0].mxu0
    %v1361 = vadd.f32 %v1292, %v1360
    %v1362 = vpop.f32.mrb[0].mxu0
    %1363 = vmatprep.mubr.f32.mxu0 0.0
    %1364 = vmatmul.mubr.f32.gmra.mrb[0].mxu0 %v60
    %v1365 = vpop.f32.mrb[0].mxu0
    %v1366 = vadd.f32 %v1292, %v1365
    %v1367 = vpop.f32.mrb[0].mxu0
    %1368 = vdwg.mxu0
    %v1369 = vmul.f32 %v1361, 0.35355338
    %v1370 = vmul.f32 %v1366, 0.35355338
    %s1371 = scalar_lea.vmem %s4, 64
    %v1372 = vld [vmem:[%s1371] sm:$0xff]
    %v1373 = vld [vmem:[%s1371 + $0x8] sm:$0xff]
    %v1374 = vld [vmem:[%s1371 + $0x10] sm:$0xff]
    %v1375 = vld [vmem:[%s1371 + $0x18] sm:$0xff]
    %s1376 = scalar_lea.vmem %s7, 2
    %v1377 = vld [vmem:[%s1376] sm:$0x1]
    %v1379 = vlaneseq
    %v1380 = vshrl.u32 %v1379, 7
    %v1381 = vsub.s32 0, %v1380
    %v1382 = vrot.slane %v1377, %v1381
    %1384 = vmatprep.subr.mxu0 0.0
    %1385 = vmatpush1.msra.mxu0 %v1372
    %1386 = vmatprep.subr.mxu0 0.0
    %1387 = vmatpush1.msra.mxu0 %v1373
    %1388 = vmatprep.subr.mxu0 0.0
    %1389 = vmatpush1.msra.mxu0 %v1374
    %1390 = vmatprep.subr.mxu0 0.0
    %1391 = vmatpush1.msra.mxu0 %v1375
    %1392 = vmatprep.subr.mxu0 0.0
    %1393 = vmatpush1.msra.mxu0 0.0
    %1394 = vmatprep.subr.mxu0 0.0
    %1395 = vmatpush1.msra.mxu0 0.0
    %1396 = vmatprep.subr.mxu0 0.0
    %1397 = vmatpush1.msra.mxu0 0.0
    %1398 = vmatprep.subr.mxu0 0.0
    %1399 = vmatpush1.msra.mxu0 0.0
    %1400 = vmatprep.subr.mxu0 0.0
    %1401 = vmatpush1.msra.mxu0 0.0
    %1402 = vmatprep.subr.mxu0 0.0
    %1403 = vmatpush1.msra.mxu0 0.0
    %1404 = vmatprep.subr.mxu0 0.0
    %1405 = vmatpush1.msra.mxu0 0.0
    %1406 = vmatprep.subr.mxu0 0.0
    %1407 = vmatpush1.msra.mxu0 0.0
    %1408 = vmatprep.subr.mxu0 0.0
    %1409 = vmatpush1.msra.mxu0 0.0
    %1410 = vmatprep.subr.mxu0 0.0
    %1411 = vmatpush1.msra.mxu0 0.0
    %1412 = vmatprep.subr.mxu0 0.0
    %1413 = vmatpush1.msra.mxu0 0.0
    %1414 = vmatprep.subr.mxu0 0.0
    %1415 = vmatpush1.msra.mxu0 0.0
    %1416 = vmatprep.subr.mxu0 0.0
    %1417 = vmatpush1.msra.mxu0 0.0
    %1418 = vmatprep.subr.mxu0 0.0
    %1419 = vmatpush1.msra.mxu0 0.0
    %1420 = vmatprep.subr.mxu0 0.0
    %1421 = vmatpush1.msra.mxu0 0.0
    %1422 = vmatprep.subr.mxu0 0.0
    %1423 = vmatpush1.msra.mxu0 0.0
    %1424 = vmatprep.subr.mxu0 0.0
    %1425 = vmatpush1.msra.mxu0 0.0
    %1426 = vmatprep.subr.mxu0 0.0
    %1427 = vmatpush1.msra.mxu0 0.0
    %1428 = vmatprep.subr.mxu0 0.0
    %1429 = vmatpush1.msra.mxu0 0.0
    %1430 = vmatprep.subr.mxu0 0.0
    %1431 = vmatpush1.msra.mxu0 0.0
    %1432 = vmatprep.subr.mxu0 0.0
    %1433 = vmatpush1.msra.mxu0 0.0
    %1434 = vmatprep.subr.mxu0 0.0
    %1435 = vmatpush1.msra.mxu0 0.0
    %1436 = vmatprep.subr.mxu0 0.0
    %1437 = vmatpush1.msra.mxu0 0.0
    %1438 = vmatprep.subr.mxu0 0.0
    %1439 = vmatpush1.msra.mxu0 0.0
    %1440 = vmatprep.subr.mxu0 0.0
    %1441 = vmatpush1.msra.mxu0 0.0
    %1442 = vmatprep.subr.mxu0 0.0
    %1443 = vmatpush1.msra.mxu0 0.0
    %1444 = vmatprep.subr.mxu0 0.0
    %1445 = vmatpush1.msra.mxu0 0.0
    %1446 = vmatprep.subr.mxu0 0.0
    %1447 = vmatpush1.msra.mxu0 0.0
    %1448 = vmatprep.mubr.f32.mxu0 0.0
    %1449 = vmatmul.mubr.f32.gmra.mrb[0].mxu0 %v151
    %v1450 = vpop.f32.mrb[0].mxu0
    %v1451 = vadd.f32 %v1382, %v1450
    %v1452 = vpop.f32.mrb[0].mxu0
    %1453 = vmatprep.mubr.f32.mxu0 0.0
    %1454 = vmatmul.mubr.f32.gmra.mrb[0].mxu0 %v154
    %v1455 = vpop.f32.mrb[0].mxu0
    %v1456 = vadd.f32 %v1382, %v1455
    %v1457 = vpop.f32.mrb[0].mxu0
    %1458 = vdwg.mxu0
    %s1459 = scalar_lea.vmem %s5, 64
    %v1460 = vld [vmem:[%s1459] sm:$0xff]
    %v1461 = vld [vmem:[%s1459 + $0x8] sm:$0xff]
    %v1462 = vld [vmem:[%s1459 + $0x10] sm:$0xff]
    %v1463 = vld [vmem:[%s1459 + $0x18] sm:$0xff]
    %s1464 = scalar_lea.vmem %s8, 2
    %v1465 = vld [vmem:[%s1464] sm:$0x1]
    %v1467 = vlaneseq
    %v1468 = vshrl.u32 %v1467, 7
    %v1469 = vsub.s32 0, %v1468
    %v1470 = vrot.slane %v1465, %v1469
    %1472 = vmatprep.subr.mxu0 0.0
    %1473 = vmatpush1.msra.mxu0 %v1460
    %1474 = vmatprep.subr.mxu0 0.0
    %1475 = vmatpush1.msra.mxu0 %v1461
    %1476 = vmatprep.subr.mxu0 0.0
    %1477 = vmatpush1.msra.mxu0 %v1462
    %1478 = vmatprep.subr.mxu0 0.0
    %1479 = vmatpush1.msra.mxu0 %v1463
    %1480 = vmatprep.subr.mxu0 0.0
    %1481 = vmatpush1.msra.mxu0 0.0
    %1482 = vmatprep.subr.mxu0 0.0
    %1483 = vmatpush1.msra.mxu0 0.0
    %1484 = vmatprep.subr.mxu0 0.0
    %1485 = vmatpush1.msra.mxu0 0.0
    %1486 = vmatprep.subr.mxu0 0.0
    %1487 = vmatpush1.msra.mxu0 0.0
    %1488 = vmatprep.subr.mxu0 0.0
    %1489 = vmatpush1.msra.mxu0 0.0
    %1490 = vmatprep.subr.mxu0 0.0
    %1491 = vmatpush1.msra.mxu0 0.0
    %1492 = vmatprep.subr.mxu0 0.0
    %1493 = vmatpush1.msra.mxu0 0.0
    %1494 = vmatprep.subr.mxu0 0.0
    %1495 = vmatpush1.msra.mxu0 0.0
    %1496 = vmatprep.subr.mxu0 0.0
    %1497 = vmatpush1.msra.mxu0 0.0
    %1498 = vmatprep.subr.mxu0 0.0
    %1499 = vmatpush1.msra.mxu0 0.0
    %1500 = vmatprep.subr.mxu0 0.0
    %1501 = vmatpush1.msra.mxu0 0.0
    %1502 = vmatprep.subr.mxu0 0.0
    %1503 = vmatpush1.msra.mxu0 0.0
    %1504 = vmatprep.subr.mxu0 0.0
    %1505 = vmatpush1.msra.mxu0 0.0
    %1506 = vmatprep.subr.mxu0 0.0
    %1507 = vmatpush1.msra.mxu0 0.0
    %1508 = vmatprep.subr.mxu0 0.0
    %1509 = vmatpush1.msra.mxu0 0.0
    %1510 = vmatprep.subr.mxu0 0.0
    %1511 = vmatpush1.msra.mxu0 0.0
    %1512 = vmatprep.subr.mxu0 0.0
    %1513 = vmatpush1.msra.mxu0 0.0
    %1514 = vmatprep.subr.mxu0 0.0
    %1515 = vmatpush1.msra.mxu0 0.0
    %1516 = vmatprep.subr.mxu0 0.0
    %1517 = vmatpush1.msra.mxu0 0.0
    %1518 = vmatprep.subr.mxu0 0.0
    %1519 = vmatpush1.msra.mxu0 0.0
    %1520 = vmatprep.subr.mxu0 0.0
    %1521 = vmatpush1.msra.mxu0 0.0
    %1522 = vmatprep.subr.mxu0 0.0
    %1523 = vmatpush1.msra.mxu0 0.0
    %1524 = vmatprep.subr.mxu0 0.0
    %1525 = vmatpush1.msra.mxu0 0.0
    %1526 = vmatprep.subr.mxu0 0.0
    %1527 = vmatpush1.msra.mxu0 0.0
    %1528 = vmatprep.subr.mxu0 0.0
    %1529 = vmatpush1.msra.mxu0 0.0
    %1530 = vmatprep.subr.mxu0 0.0
    %1531 = vmatpush1.msra.mxu0 0.0
    %1532 = vmatprep.subr.mxu0 0.0
    %1533 = vmatpush1.msra.mxu0 0.0
    %1534 = vmatprep.subr.mxu0 0.0
    %1535 = vmatpush1.msra.mxu0 0.0
    %1536 = vmatprep.mubr.f32.mxu0 0.0
    %1537 = vmatmul.mubr.f32.gmra.mrb[0].mxu0 %v243
    %v1538 = vpop.f32.mrb[0].mxu0
    %v1539 = vadd.f32 %v1470, %v1538
    %v1540 = vpop.f32.mrb[0].mxu0
    %1541 = vmatprep.mubr.f32.mxu0 0.0
    %1542 = vmatmul.mubr.f32.gmra.mrb[0].mxu0 %v246
    %v1543 = vpop.f32.mrb[0].mxu0
    %v1544 = vadd.f32 %v1470, %v1543
    %v1545 = vpop.f32.mrb[0].mxu0
    %1546 = vdwg.mxu0
    %v1548 = vsel %vm323, %v1369, 0
    %v1551 = vsel %vm323, %v1451, 0
    %1553 = vmatprep.subr.mxu0 0.0
    %1554 = vmatpush1.xpose.msra.mxu0 %v1551
    %1555 = vmatprep.subr.mxu0 0.0
    %1556 = vmatpush1.xpose.msra.mxu0 0.0
    %1557 = vmatprep.subr.mxu0 0.0
    %1558 = vmatpush1.xpose.msra.mxu0 0.0
    %1559 = vmatprep.subr.mxu0 0.0
    %1560 = vmatpush1.xpose.msra.mxu0 0.0
    %1561 = vmatprep.subr.mxu0 0.0
    %1562 = vmatpush1.xpose.msra.mxu0 0.0
    %1563 = vmatprep.subr.mxu0 0.0
    %1564 = vmatpush1.xpose.msra.mxu0 0.0
    %1565 = vmatprep.subr.mxu0 0.0
    %1566 = vmatpush1.xpose.msra.mxu0 0.0
    %1567 = vmatprep.subr.mxu0 0.0
    %1568 = vmatpush1.xpose.msra.mxu0 0.0
    %1569 = vmatprep.subr.mxu0 0.0
    %1570 = vmatpush1.xpose.msra.mxu0 0.0
    %1571 = vmatprep.subr.mxu0 0.0
    %1572 = vmatpush1.xpose.msra.mxu0 0.0
    %1573 = vmatprep.subr.mxu0 0.0
    %1574 = vmatpush1.xpose.msra.mxu0 0.0
    %1575 = vmatprep.subr.mxu0 0.0
    %1576 = vmatpush1.xpose.msra.mxu0 0.0
    %1577 = vmatprep.subr.mxu0 0.0
    %1578 = vmatpush1.xpose.msra.mxu0 0.0
    %1579 = vmatprep.subr.mxu0 0.0
    %1580 = vmatpush1.xpose.msra.mxu0 0.0
    %1581 = vmatprep.subr.mxu0 0.0
    %1582 = vmatpush1.xpose.msra.mxu0 0.0
    %1583 = vmatprep.subr.mxu0 0.0
    %1584 = vmatpush1.xpose.msra.mxu0 0.0
    %1585 = vmatprep.subr.mxu0 0.0
    %1586 = vmatpush1.xpose.msra.mxu0 0.0
    %1587 = vmatprep.subr.mxu0 0.0
    %1588 = vmatpush1.xpose.msra.mxu0 0.0
    %1589 = vmatprep.subr.mxu0 0.0
    %1590 = vmatpush1.xpose.msra.mxu0 0.0
    %1591 = vmatprep.subr.mxu0 0.0
    %1592 = vmatpush1.xpose.msra.mxu0 0.0
    %1593 = vmatprep.subr.mxu0 0.0
    %1594 = vmatpush1.xpose.msra.mxu0 0.0
    %1595 = vmatprep.subr.mxu0 0.0
    %1596 = vmatpush1.xpose.msra.mxu0 0.0
    %1597 = vmatprep.subr.mxu0 0.0
    %1598 = vmatpush1.xpose.msra.mxu0 0.0
    %1599 = vmatprep.subr.mxu0 0.0
    %1600 = vmatpush1.xpose.msra.mxu0 0.0
    %1601 = vmatprep.subr.mxu0 0.0
    %1602 = vmatpush1.xpose.msra.mxu0 0.0
    %1603 = vmatprep.subr.mxu0 0.0
    %1604 = vmatpush1.xpose.msra.mxu0 0.0
    %1605 = vmatprep.subr.mxu0 0.0
    %1606 = vmatpush1.xpose.msra.mxu0 0.0
    %1607 = vmatprep.subr.mxu0 0.0
    %1608 = vmatpush1.xpose.msra.mxu0 0.0
    %1609 = vmatprep.subr.mxu0 0.0
    %1610 = vmatpush1.xpose.msra.mxu0 0.0
    %1611 = vmatprep.subr.mxu0 0.0
    %1612 = vmatpush1.xpose.msra.mxu0 0.0
    %1613 = vmatprep.subr.mxu0 0.0
    %1614 = vmatpush1.xpose.msra.mxu0 0.0
    %1615 = vmatprep.subr.mxu0 0.0
    %1616 = vmatpush1.xpose.msra.mxu0 0.0
    %1617 = vmatprep.mubr.f32.mxu0 0.0
    %1618 = vmatmul.mubr.f32.gmra.mrb[0].mxu0 %v1548
    %v1619 = vpop.f32.mrb[0].mxu0
    %v1620 = vadd.f32 0.0, %v1619
    %v1621 = vpop.f32.mrb[0].mxu0
    %1622 = vdwg.mxu0
    %v1623 = vld [vmem:[%s9] sm:$0x1]
    %vm1624 = vcmp.gt.f32.partialorder %v1623, 0.0
    %v1625 = vsel %vm1624, 1, 0
    %v1626 = vlaneseq
    %v1627 = vshrl.u32 %v1626, 7
    %v1628 = vsub.s32 0, %v1627
    %v1629 = vrot.slane %v1625, %v1628
    %vm1630 = vcmp.eq.s32.totalorder %v1629, 1
    %v1631 = vsel %vm1630, -10000.0, %v1620
    %v1632 = vsel %vm323, %v1631, -inf
    %1633 = vmax.xlane.f32.xlu0 %v1632
    %v1634 = vpop.xlane.xlu0 %1633
    %v1635 = vsub.f32 %v1631, %v1634
    %v1636 = vmul.f32 %v1635, 1.442695
    %v1637 = vpow.pop %v1636
    %v1638 = vsel %vm323, %v1637, 0.0
    %1639 = vadd.xlane.f32.xlu0 %v1638
    %v1640 = vpop.xlane.xlu0 %1639
    %v1641 = vrcp.pop %v1640
    %v1642 = vmul.f32 %v1637, %v1641
    %s1643 = scalar_lea.vmem [#allocation2], 16
    %1644 = vst.msk [vmem:[%s1643] sm:$0xff] %vm323, %v1642
    %v1646 = vsel %vm323, %v1642, 0
    %1648 = vmatprep.subr.mxu0 0.0
    %1649 = vmatpush1.msra.mxu0 %v1539
    %1650 = vmatprep.subr.mxu0 0.0
    %1651 = vmatpush1.msra.mxu0 0.0
    %1652 = vmatprep.subr.mxu0 0.0
    %1653 = vmatpush1.msra.mxu0 0.0
    %1654 = vmatprep.subr.mxu0 0.0
    %1655 = vmatpush1.msra.mxu0 0.0
    %1656 = vmatprep.subr.mxu0 0.0
    %1657 = vmatpush1.msra.mxu0 0.0
    %1658 = vmatprep.subr.mxu0 0.0
    %1659 = vmatpush1.msra.mxu0 0.0
    %1660 = vmatprep.subr.mxu0 0.0
    %1661 = vmatpush1.msra.mxu0 0.0
    %1662 = vmatprep.subr.mxu0 0.0
    %1663 = vmatpush1.msra.mxu0 0.0
    %1664 = vmatprep.subr.mxu0 0.0
    %1665 = vmatpush1.msra.mxu0 0.0
    %1666 = vmatprep.subr.mxu0 0.0
    %1667 = vmatpush1.msra.mxu0 0.0
    %1668 = vmatprep.subr.mxu0 0.0
    %1669 = vmatpush1.msra.mxu0 0.0
    %1670 = vmatprep.subr.mxu0 0.0
    %1671 = vmatpush1.msra.mxu0 0.0
    %1672 = vmatprep.subr.mxu0 0.0
    %1673 = vmatpush1.msra.mxu0 0.0
    %1674 = vmatprep.subr.mxu0 0.0
    %1675 = vmatpush1.msra.mxu0 0.0
    %1676 = vmatprep.subr.mxu0 0.0
    %1677 = vmatpush1.msra.mxu0 0.0
    %1678 = vmatprep.subr.mxu0 0.0
    %1679 = vmatpush1.msra.mxu0 0.0
    %1680 = vmatprep.subr.mxu0 0.0
    %1681 = vmatpush1.msra.mxu0 0.0
    %1682 = vmatprep.subr.mxu0 0.0
    %1683 = vmatpush1.msra.mxu0 0.0
    %1684 = vmatprep.subr.mxu0 0.0
    %1685 = vmatpush1.msra.mxu0 0.0
    %1686 = vmatprep.subr.mxu0 0.0
    %1687 = vmatpush1.msra.mxu0 0.0
    %1688 = vmatprep.subr.mxu0 0.0
    %1689 = vmatpush1.msra.mxu0 0.0
    %1690 = vmatprep.subr.mxu0 0.0
    %1691 = vmatpush1.msra.mxu0 0.0
    %1692 = vmatprep.subr.mxu0 0.0
    %1693 = vmatpush1.msra.mxu0 0.0
    %1694 = vmatprep.subr.mxu0 0.0
    %1695 = vmatpush1.msra.mxu0 0.0
    %1696 = vmatprep.subr.mxu0 0.0
    %1697 = vmatpush1.msra.mxu0 0.0
    %1698 = vmatprep.subr.mxu0 0.0
    %1699 = vmatpush1.msra.mxu0 0.0
    %1700 = vmatprep.subr.mxu0 0.0
    %1701 = vmatpush1.msra.mxu0 0.0
    %1702 = vmatprep.subr.mxu0 0.0
    %1703 = vmatpush1.msra.mxu0 0.0
    %1704 = vmatprep.subr.mxu0 0.0
    %1705 = vmatpush1.msra.mxu0 0.0
    %1706 = vmatprep.subr.mxu0 0.0
    %1707 = vmatpush1.msra.mxu0 0.0
    %1708 = vmatprep.subr.mxu0 0.0
    %1709 = vmatpush1.msra.mxu0 0.0
    %1710 = vmatprep.subr.mxu0 0.0
    %1711 = vmatpush1.msra.mxu0 0.0
    %1712 = vmatprep.mubr.f32.mxu0 0.0
    %1713 = vmatmul.mubr.f32.gmra.mrb[0].mxu0 %v1646
    %v1714 = vpop.f32.mrb[0].mxu0
    %v1715 = vadd.f32 0.0, %v1714
    %v1716 = vpop.f32.mrb[0].mxu0
    %1717 = vdwg.mxu0
    %s1718 = scalar_lea.vmem %s10, 16
    %1719 = vst.msk [vmem:[%s1718] sm:$0xff] %vm323, %v1715
    %v1721 = vsel %vm323, %v1370, 0
    %v1724 = vsel %vm323, %v1456, 0
    %1726 = vmatprep.subr.mxu0 0.0
    %1727 = vmatpush1.xpose.msra.mxu0 %v1724
    %1728 = vmatprep.subr.mxu0 0.0
    %1729 = vmatpush1.xpose.msra.mxu0 0.0
    %1730 = vmatprep.subr.mxu0 0.0
    %1731 = vmatpush1.xpose.msra.mxu0 0.0
    %1732 = vmatprep.subr.mxu0 0.0
    %1733 = vmatpush1.xpose.msra.mxu0 0.0
    %1734 = vmatprep.subr.mxu0 0.0
    %1735 = vmatpush1.xpose.msra.mxu0 0.0
    %1736 = vmatprep.subr.mxu0 0.0
    %1737 = vmatpush1.xpose.msra.mxu0 0.0
    %1738 = vmatprep.subr.mxu0 0.0
    %1739 = vmatpush1.xpose.msra.mxu0 0.0
    %1740 = vmatprep.subr.mxu0 0.0
    %1741 = vmatpush1.xpose.msra.mxu0 0.0
    %1742 = vmatprep.subr.mxu0 0.0
    %1743 = vmatpush1.xpose.msra.mxu0 0.0
    %1744 = vmatprep.subr.mxu0 0.0
    %1745 = vmatpush1.xpose.msra.mxu0 0.0
    %1746 = vmatprep.subr.mxu0 0.0
    %1747 = vmatpush1.xpose.msra.mxu0 0.0
    %1748 = vmatprep.subr.mxu0 0.0
    %1749 = vmatpush1.xpose.msra.mxu0 0.0
    %1750 = vmatprep.subr.mxu0 0.0
    %1751 = vmatpush1.xpose.msra.mxu0 0.0
    %1752 = vmatprep.subr.mxu0 0.0
    %1753 = vmatpush1.xpose.msra.mxu0 0.0
    %1754 = vmatprep.subr.mxu0 0.0
    %1755 = vmatpush1.xpose.msra.mxu0 0.0
    %1756 = vmatprep.subr.mxu0 0.0
    %1757 = vmatpush1.xpose.msra.mxu0 0.0
    %1758 = vmatprep.subr.mxu0 0.0
    %1759 = vmatpush1.xpose.msra.mxu0 0.0
    %1760 = vmatprep.subr.mxu0 0.0
    %1761 = vmatpush1.xpose.msra.mxu0 0.0
    %1762 = vmatprep.subr.mxu0 0.0
    %1763 = vmatpush1.xpose.msra.mxu0 0.0
    %1764 = vmatprep.subr.mxu0 0.0
    %1765 = vmatpush1.xpose.msra.mxu0 0.0
    %1766 = vmatprep.subr.mxu0 0.0
    %1767 = vmatpush1.xpose.msra.mxu0 0.0
    %1768 = vmatprep.subr.mxu0 0.0
    %1769 = vmatpush1.xpose.msra.mxu0 0.0
    %1770 = vmatprep.subr.mxu0 0.0
    %1771 = vmatpush1.xpose.msra.mxu0 0.0
    %1772 = vmatprep.subr.mxu0 0.0
    %1773 = vmatpush1.xpose.msra.mxu0 0.0
    %1774 = vmatprep.subr.mxu0 0.0
    %1775 = vmatpush1.xpose.msra.mxu0 0.0
    %1776 = vmatprep.subr.mxu0 0.0
    %1777 = vmatpush1.xpose.msra.mxu0 0.0
    %1778 = vmatprep.subr.mxu0 0.0
    %1779 = vmatpush1.xpose.msra.mxu0 0.0
    %1780 = vmatprep.subr.mxu0 0.0
    %1781 = vmatpush1.xpose.msra.mxu0 0.0
    %1782 = vmatprep.subr.mxu0 0.0
    %1783 = vmatpush1.xpose.msra.mxu0 0.0
    %1784 = vmatprep.subr.mxu0 0.0
    %1785 = vmatpush1.xpose.msra.mxu0 0.0
    %1786 = vmatprep.subr.mxu0 0.0
    %1787 = vmatpush1.xpose.msra.mxu0 0.0
    %1788 = vmatprep.subr.mxu0 0.0
    %1789 = vmatpush1.xpose.msra.mxu0 0.0
    %1790 = vmatprep.mubr.f32.mxu0 0.0
    %1791 = vmatmul.mubr.f32.gmra.mrb[0].mxu0 %v1721
    %v1792 = vpop.f32.mrb[0].mxu0
    %v1793 = vadd.f32 0.0, %v1792
    %v1794 = vpop.f32.mrb[0].mxu0
    %1795 = vdwg.mxu0
    %v1796 = vld [vmem:[%s571] sm:$0x1]
    %vm1797 = vcmp.gt.f32.partialorder %v1796, 0.0
    %v1798 = vsel %vm1797, 1, 0
    %v1799 = vlaneseq
    %v1800 = vshrl.u32 %v1799, 7
    %v1801 = vsub.s32 0, %v1800
    %v1802 = vrot.slane %v1798, %v1801
    %vm1803 = vcmp.eq.s32.totalorder %v1802, 1
    %v1804 = vsel %vm1803, -10000.0, %v1793
    %v1805 = vsel %vm323, %v1804, -inf
    %1806 = vmax.xlane.f32.xlu0 %v1805
    %v1807 = vpop.xlane.xlu0 %1806
    %v1808 = vsub.f32 %v1804, %v1807
    %v1809 = vmul.f32 %v1808, 1.442695
    %v1810 = vpow.pop %v1809
    %v1811 = vsel %vm323, %v1810, 0.0
    %1812 = vadd.xlane.f32.xlu0 %v1811
    %v1813 = vpop.xlane.xlu0 %1812
    %v1814 = vrcp.pop %v1813
    %v1815 = vmul.f32 %v1810, %v1814
    %s1816 = scalar_lea.vmem [#allocation2], 48
    %1817 = vst.msk [vmem:[%s1816] sm:$0xff] %vm323, %v1815
    %v1819 = vsel %vm323, %v1815, 0
    %1821 = vmatprep.subr.mxu0 0.0
    %1822 = vmatpush1.msra.mxu0 %v1544
    %1823 = vmatprep.subr.mxu0 0.0
    %1824 = vmatpush1.msra.mxu0 0.0
    %1825 = vmatprep.subr.mxu0 0.0
    %1826 = vmatpush1.msra.mxu0 0.0
    %1827 = vmatprep.subr.mxu0 0.0
    %1828 = vmatpush1.msra.mxu0 0.0
    %1829 = vmatprep.subr.mxu0 0.0
    %1830 = vmatpush1.msra.mxu0 0.0
    %1831 = vmatprep.subr.mxu0 0.0
    %1832 = vmatpush1.msra.mxu0 0.0
    %1833 = vmatprep.subr.mxu0 0.0
    %1834 = vmatpush1.msra.mxu0 0.0
    %1835 = vmatprep.subr.mxu0 0.0
    %1836 = vmatpush1.msra.mxu0 0.0
    %1837 = vmatprep.subr.mxu0 0.0
    %1838 = vmatpush1.msra.mxu0 0.0
    %1839 = vmatprep.subr.mxu0 0.0
    %1840 = vmatpush1.msra.mxu0 0.0
    %1841 = vmatprep.subr.mxu0 0.0
    %1842 = vmatpush1.msra.mxu0 0.0
    %1843 = vmatprep.subr.mxu0 0.0
    %1844 = vmatpush1.msra.mxu0 0.0
    %1845 = vmatprep.subr.mxu0 0.0
    %1846 = vmatpush1.msra.mxu0 0.0
    %1847 = vmatprep.subr.mxu0 0.0
    %1848 = vmatpush1.msra.mxu0 0.0
    %1849 = vmatprep.subr.mxu0 0.0
    %1850 = vmatpush1.msra.mxu0 0.0
    %1851 = vmatprep.subr.mxu0 0.0
    %1852 = vmatpush1.msra.mxu0 0.0
    %1853 = vmatprep.subr.mxu0 0.0
    %1854 = vmatpush1.msra.mxu0 0.0
    %1855 = vmatprep.subr.mxu0 0.0
    %1856 = vmatpush1.msra.mxu0 0.0
    %1857 = vmatprep.subr.mxu0 0.0
    %1858 = vmatpush1.msra.mxu0 0.0
    %1859 = vmatprep.subr.mxu0 0.0
    %1860 = vmatpush1.msra.mxu0 0.0
    %1861 = vmatprep.subr.mxu0 0.0
    %1862 = vmatpush1.msra.mxu0 0.0
    %1863 = vmatprep.subr.mxu0 0.0
    %1864 = vmatpush1.msra.mxu0 0.0
    %1865 = vmatprep.subr.mxu0 0.0
    %1866 = vmatpush1.msra.mxu0 0.0
    %1867 = vmatprep.subr.mxu0 0.0
    %1868 = vmatpush1.msra.mxu0 0.0
    %1869 = vmatprep.subr.mxu0 0.0
    %1870 = vmatpush1.msra.mxu0 0.0
    %1871 = vmatprep.subr.mxu0 0.0
    %1872 = vmatpush1.msra.mxu0 0.0
    %1873 = vmatprep.subr.mxu0 0.0
    %1874 = vmatpush1.msra.mxu0 0.0
    %1875 = vmatprep.subr.mxu0 0.0
    %1876 = vmatpush1.msra.mxu0 0.0
    %1877 = vmatprep.subr.mxu0 0.0
    %1878 = vmatpush1.msra.mxu0 0.0
    %1879 = vmatprep.subr.mxu0 0.0
    %1880 = vmatpush1.msra.mxu0 0.0
    %1881 = vmatprep.subr.mxu0 0.0
    %1882 = vmatpush1.msra.mxu0 0.0
    %1883 = vmatprep.subr.mxu0 0.0
    %1884 = vmatpush1.msra.mxu0 0.0
    %1885 = vmatprep.mubr.f32.mxu0 0.0
    %1886 = vmatmul.mubr.f32.gmra.mrb[0].mxu0 %v1819
    %v1887 = vpop.f32.mrb[0].mxu0
    %v1888 = vadd.f32 0.0, %v1887
    %v1889 = vpop.f32.mrb[0].mxu0
    %1890 = vdwg.mxu0
    %s1891 = scalar_lea.vmem %s10, 48
    %1892 = vst.msk [vmem:[%s1891] sm:$0xff] %vm323, %v1888
    %s1893 = scalar_lea.vmem %s3, 96
    %v1894 = vld [vmem:[%s1893] sm:$0xff]
    %v1895 = vld [vmem:[%s1893 + $0x8] sm:$0xff]
    %v1896 = vld [vmem:[%s1893 + $0x10] sm:$0xff]
    %v1897 = vld [vmem:[%s1893 + $0x18] sm:$0xff]
    %s1898 = scalar_lea.vmem %s6, 3
    %v1899 = vld [vmem:[%s1898] sm:$0x1]
    %v1901 = vlaneseq
    %v1902 = vshrl.u32 %v1901, 7
    %v1903 = vsub.s32 0, %v1902
    %v1904 = vrot.slane %v1899, %v1903
    %1906 = vmatprep.subr.mxu0 0.0
    %1907 = vmatpush1.msra.mxu0 %v1894
    %1908 = vmatprep.subr.mxu0 0.0
    %1909 = vmatpush1.msra.mxu0 %v1895
    %1910 = vmatprep.subr.mxu0 0.0
    %1911 = vmatpush1.msra.mxu0 %v1896
    %1912 = vmatprep.subr.mxu0 0.0
    %1913 = vmatpush1.msra.mxu0 %v1897
    %1914 = vmatprep.subr.mxu0 0.0
    %1915 = vmatpush1.msra.mxu0 0.0
    %1916 = vmatprep.subr.mxu0 0.0
    %1917 = vmatpush1.msra.mxu0 0.0
    %1918 = vmatprep.subr.mxu0 0.0
    %1919 = vmatpush1.msra.mxu0 0.0
    %1920 = vmatprep.subr.mxu0 0.0
    %1921 = vmatpush1.msra.mxu0 0.0
    %1922 = vmatprep.subr.mxu0 0.0
    %1923 = vmatpush1.msra.mxu0 0.0
    %1924 = vmatprep.subr.mxu0 0.0
    %1925 = vmatpush1.msra.mxu0 0.0
    %1926 = vmatprep.subr.mxu0 0.0
    %1927 = vmatpush1.msra.mxu0 0.0
    %1928 = vmatprep.subr.mxu0 0.0
    %1929 = vmatpush1.msra.mxu0 0.0
    %1930 = vmatprep.subr.mxu0 0.0
    %1931 = vmatpush1.msra.mxu0 0.0
    %1932 = vmatprep.subr.mxu0 0.0
    %1933 = vmatpush1.msra.mxu0 0.0
    %1934 = vmatprep.subr.mxu0 0.0
    %1935 = vmatpush1.msra.mxu0 0.0
    %1936 = vmatprep.subr.mxu0 0.0
    %1937 = vmatpush1.msra.mxu0 0.0
    %1938 = vmatprep.subr.mxu0 0.0
    %1939 = vmatpush1.msra.mxu0 0.0
    %1940 = vmatprep.subr.mxu0 0.0
    %1941 = vmatpush1.msra.mxu0 0.0
    %1942 = vmatprep.subr.mxu0 0.0
    %1943 = vmatpush1.msra.mxu0 0.0
    %1944 = vmatprep.subr.mxu0 0.0
    %1945 = vmatpush1.msra.mxu0 0.0
    %1946 = vmatprep.subr.mxu0 0.0
    %1947 = vmatpush1.msra.mxu0 0.0
    %1948 = vmatprep.subr.mxu0 0.0
    %1949 = vmatpush1.msra.mxu0 0.0
    %1950 = vmatprep.subr.mxu0 0.0
    %1951 = vmatpush1.msra.mxu0 0.0
    %1952 = vmatprep.subr.mxu0 0.0
    %1953 = vmatpush1.msra.mxu0 0.0
    %1954 = vmatprep.subr.mxu0 0.0
    %1955 = vmatpush1.msra.mxu0 0.0
    %1956 = vmatprep.subr.mxu0 0.0
    %1957 = vmatpush1.msra.mxu0 0.0
    %1958 = vmatprep.subr.mxu0 0.0
    %1959 = vmatpush1.msra.mxu0 0.0
    %1960 = vmatprep.subr.mxu0 0.0
    %1961 = vmatpush1.msra.mxu0 0.0
    %1962 = vmatprep.subr.mxu0 0.0
    %1963 = vmatpush1.msra.mxu0 0.0
    %1964 = vmatprep.subr.mxu0 0.0
    %1965 = vmatpush1.msra.mxu0 0.0
    %1966 = vmatprep.subr.mxu0 0.0
    %1967 = vmatpush1.msra.mxu0 0.0
    %1968 = vmatprep.subr.mxu0 0.0
    %1969 = vmatpush1.msra.mxu0 0.0
    %1970 = vmatprep.mubr.f32.mxu0 0.0
    %1971 = vmatmul.mubr.f32.gmra.mrb[0].mxu0 %v57
    %v1972 = vpop.f32.mrb[0].mxu0
    %v1973 = vadd.f32 %v1904, %v1972
    %v1974 = vpop.f32.mrb[0].mxu0
    %1975 = vmatprep.mubr.f32.mxu0 0.0
    %1976 = vmatmul.mubr.f32.gmra.mrb[0].mxu0 %v60
    %v1977 = vpop.f32.mrb[0].mxu0
    %v1978 = vadd.f32 %v1904, %v1977
    %v1979 = vpop.f32.mrb[0].mxu0
    %1980 = vdwg.mxu0
    %v1981 = vmul.f32 %v1973, 0.35355338
    %v1982 = vmul.f32 %v1978, 0.35355338
    %s1983 = scalar_lea.vmem %s4, 96
    %v1984 = vld [vmem:[%s1983] sm:$0xff]
    %v1985 = vld [vmem:[%s1983 + $0x8] sm:$0xff]
    %v1986 = vld [vmem:[%s1983 + $0x10] sm:$0xff]
    %v1987 = vld [vmem:[%s1983 + $0x18] sm:$0xff]
    %s1988 = scalar_lea.vmem %s7, 3
    %v1989 = vld [vmem:[%s1988] sm:$0x1]
    %v1991 = vlaneseq
    %v1992 = vshrl.u32 %v1991, 7
    %v1993 = vsub.s32 0, %v1992
    %v1994 = vrot.slane %v1989, %v1993
    %1996 = vmatprep.subr.mxu0 0.0
    %1997 = vmatpush1.msra.mxu0 %v1984
    %1998 = vmatprep.subr.mxu0 0.0
    %1999 = vmatpush1.msra.mxu0 %v1985
    %2000 = vmatprep.subr.mxu0 0.0
    %2001 = vmatpush1.msra.mxu0 %v1986
    %2002 = vmatprep.subr.mxu0 0.0
    %2003 = vmatpush1.msra.mxu0 %v1987
    %2004 = vmatprep.subr.mxu0 0.0
    %2005 = vmatpush1.msra.mxu0 0.0
    %2006 = vmatprep.subr.mxu0 0.0
    %2007 = vmatpush1.msra.mxu0 0.0
    %2008 = vmatprep.subr.mxu0 0.0
    %2009 = vmatpush1.msra.mxu0 0.0
    %2010 = vmatprep.subr.mxu0 0.0
    %2011 = vmatpush1.msra.mxu0 0.0
    %2012 = vmatprep.subr.mxu0 0.0
    %2013 = vmatpush1.msra.mxu0 0.0
    %2014 = vmatprep.subr.mxu0 0.0
    %2015 = vmatpush1.msra.mxu0 0.0
    %2016 = vmatprep.subr.mxu0 0.0
    %2017 = vmatpush1.msra.mxu0 0.0
    %2018 = vmatprep.subr.mxu0 0.0
    %2019 = vmatpush1.msra.mxu0 0.0
    %2020 = vmatprep.subr.mxu0 0.0
    %2021 = vmatpush1.msra.mxu0 0.0
    %2022 = vmatprep.subr.mxu0 0.0
    %2023 = vmatpush1.msra.mxu0 0.0
    %2024 = vmatprep.subr.mxu0 0.0
    %2025 = vmatpush1.msra.mxu0 0.0
    %2026 = vmatprep.subr.mxu0 0.0
    %2027 = vmatpush1.msra.mxu0 0.0
    %2028 = vmatprep.subr.mxu0 0.0
    %2029 = vmatpush1.msra.mxu0 0.0
    %2030 = vmatprep.subr.mxu0 0.0
    %2031 = vmatpush1.msra.mxu0 0.0
    %2032 = vmatprep.subr.mxu0 0.0
    %2033 = vmatpush1.msra.mxu0 0.0
    %2034 = vmatprep.subr.mxu0 0.0
    %2035 = vmatpush1.msra.mxu0 0.0
    %2036 = vmatprep.subr.mxu0 0.0
    %2037 = vmatpush1.msra.mxu0 0.0
    %2038 = vmatprep.subr.mxu0 0.0
    %2039 = vmatpush1.msra.mxu0 0.0
    %2040 = vmatprep.subr.mxu0 0.0
    %2041 = vmatpush1.msra.mxu0 0.0
    %2042 = vmatprep.subr.mxu0 0.0
    %2043 = vmatpush1.msra.mxu0 0.0
    %2044 = vmatprep.subr.mxu0 0.0
    %2045 = vmatpush1.msra.mxu0 0.0
    %2046 = vmatprep.subr.mxu0 0.0
    %2047 = vmatpush1.msra.mxu0 0.0
    %2048 = vmatprep.subr.mxu0 0.0
    %2049 = vmatpush1.msra.mxu0 0.0
    %2050 = vmatprep.subr.mxu0 0.0
    %2051 = vmatpush1.msra.mxu0 0.0
    %2052 = vmatprep.subr.mxu0 0.0
    %2053 = vmatpush1.msra.mxu0 0.0
    %2054 = vmatprep.subr.mxu0 0.0
    %2055 = vmatpush1.msra.mxu0 0.0
    %2056 = vmatprep.subr.mxu0 0.0
    %2057 = vmatpush1.msra.mxu0 0.0
    %2058 = vmatprep.subr.mxu0 0.0
    %2059 = vmatpush1.msra.mxu0 0.0
    %2060 = vmatprep.mubr.f32.mxu0 0.0
    %2061 = vmatmul.mubr.f32.gmra.mrb[0].mxu0 %v151
    %v2062 = vpop.f32.mrb[0].mxu0
    %v2063 = vadd.f32 %v1994, %v2062
    %v2064 = vpop.f32.mrb[0].mxu0
    %2065 = vmatprep.mubr.f32.mxu0 0.0
    %2066 = vmatmul.mubr.f32.gmra.mrb[0].mxu0 %v154
    %v2067 = vpop.f32.mrb[0].mxu0
    %v2068 = vadd.f32 %v1994, %v2067
    %v2069 = vpop.f32.mrb[0].mxu0
    %2070 = vdwg.mxu0
    %s2071 = scalar_lea.vmem %s5, 96
    %v2072 = vld [vmem:[%s2071] sm:$0xff]
    %v2073 = vld [vmem:[%s2071 + $0x8] sm:$0xff]
    %v2074 = vld [vmem:[%s2071 + $0x10] sm:$0xff]
    %v2075 = vld [vmem:[%s2071 + $0x18] sm:$0xff]
    %s2076 = scalar_lea.vmem %s8, 3
    %v2077 = vld [vmem:[%s2076] sm:$0x1]
    %v2079 = vlaneseq
    %v2080 = vshrl.u32 %v2079, 7
    %v2081 = vsub.s32 0, %v2080
    %v2082 = vrot.slane %v2077, %v2081
    %2084 = vmatprep.subr.mxu0 0.0
    %2085 = vmatpush1.msra.mxu0 %v2072
    %2086 = vmatprep.subr.mxu0 0.0
    %2087 = vmatpush1.msra.mxu0 %v2073
    %2088 = vmatprep.subr.mxu0 0.0
    %2089 = vmatpush1.msra.mxu0 %v2074
    %2090 = vmatprep.subr.mxu0 0.0
    %2091 = vmatpush1.msra.mxu0 %v2075
    %2092 = vmatprep.subr.mxu0 0.0
    %2093 = vmatpush1.msra.mxu0 0.0
    %2094 = vmatprep.subr.mxu0 0.0
    %2095 = vmatpush1.msra.mxu0 0.0
    %2096 = vmatprep.subr.mxu0 0.0
    %2097 = vmatpush1.msra.mxu0 0.0
    %2098 = vmatprep.subr.mxu0 0.0
    %2099 = vmatpush1.msra.mxu0 0.0
    %2100 = vmatprep.subr.mxu0 0.0
    %2101 = vmatpush1.msra.mxu0 0.0
    %2102 = vmatprep.subr.mxu0 0.0
    %2103 = vmatpush1.msra.mxu0 0.0
    %2104 = vmatprep.subr.mxu0 0.0
    %2105 = vmatpush1.msra.mxu0 0.0
    %2106 = vmatprep.subr.mxu0 0.0
    %2107 = vmatpush1.msra.mxu0 0.0
    %2108 = vmatprep.subr.mxu0 0.0
    %2109 = vmatpush1.msra.mxu0 0.0
    %2110 = vmatprep.subr.mxu0 0.0
    %2111 = vmatpush1.msra.mxu0 0.0
    %2112 = vmatprep.subr.mxu0 0.0
    %2113 = vmatpush1.msra.mxu0 0.0
    %2114 = vmatprep.subr.mxu0 0.0
    %2115 = vmatpush1.msra.mxu0 0.0
    %2116 = vmatprep.subr.mxu0 0.0
    %2117 = vmatpush1.msra.mxu0 0.0
    %2118 = vmatprep.subr.mxu0 0.0
    %2119 = vmatpush1.msra.mxu0 0.0
    %2120 = vmatprep.subr.mxu0 0.0
    %2121 = vmatpush1.msra.mxu0 0.0
    %2122 = vmatprep.subr.mxu0 0.0
    %2123 = vmatpush1.msra.mxu0 0.0
    %2124 = vmatprep.subr.mxu0 0.0
    %2125 = vmatpush1.msra.mxu0 0.0
    %2126 = vmatprep.subr.mxu0 0.0
    %2127 = vmatpush1.msra.mxu0 0.0
    %2128 = vmatprep.subr.mxu0 0.0
    %2129 = vmatpush1.msra.mxu0 0.0
    %2130 = vmatprep.subr.mxu0 0.0
    %2131 = vmatpush1.msra.mxu0 0.0
    %2132 = vmatprep.subr.mxu0 0.0
    %2133 = vmatpush1.msra.mxu0 0.0
    %2134 = vmatprep.subr.mxu0 0.0
    %2135 = vmatpush1.msra.mxu0 0.0
    %2136 = vmatprep.subr.mxu0 0.0
    %2137 = vmatpush1.msra.mxu0 0.0
    %2138 = vmatprep.subr.mxu0 0.0
    %2139 = vmatpush1.msra.mxu0 0.0
    %2140 = vmatprep.subr.mxu0 0.0
    %2141 = vmatpush1.msra.mxu0 0.0
    %2142 = vmatprep.subr.mxu0 0.0
    %2143 = vmatpush1.msra.mxu0 0.0
    %2144 = vmatprep.subr.mxu0 0.0
    %2145 = vmatpush1.msra.mxu0 0.0
    %2146 = vmatprep.subr.mxu0 0.0
    %2147 = vmatpush1.msra.mxu0 0.0
    %2148 = vmatprep.mubr.f32.mxu0 0.0
    %2149 = vmatmul.mubr.f32.gmra.mrb[0].mxu0 %v243
    %v2150 = vpop.f32.mrb[0].mxu0
    %v2151 = vadd.f32 %v2082, %v2150
    %v2152 = vpop.f32.mrb[0].mxu0
    %2153 = vmatprep.mubr.f32.mxu0 0.0
    %2154 = vmatmul.mubr.f32.gmra.mrb[0].mxu0 %v246
    %v2155 = vpop.f32.mrb[0].mxu0
    %v2156 = vadd.f32 %v2082, %v2155
    %v2157 = vpop.f32.mrb[0].mxu0
    %2158 = vdwg.mxu0
    %v2160 = vsel %vm323, %v1981, 0
    %v2163 = vsel %vm323, %v2063, 0
    %2165 = vmatprep.subr.mxu0 0.0
    %2166 = vmatpush1.xpose.msra.mxu0 %v2163
    %2167 = vmatprep.subr.mxu0 0.0
    %2168 = vmatpush1.xpose.msra.mxu0 0.0
    %2169 = vmatprep.subr.mxu0 0.0
    %2170 = vmatpush1.xpose.msra.mxu0 0.0
    %2171 = vmatprep.subr.mxu0 0.0
    %2172 = vmatpush1.xpose.msra.mxu0 0.0
    %2173 = vmatprep.subr.mxu0 0.0
    %2174 = vmatpush1.xpose.msra.mxu0 0.0
    %2175 = vmatprep.subr.mxu0 0.0
    %2176 = vmatpush1.xpose.msra.mxu0 0.0
    %2177 = vmatprep.subr.mxu0 0.0
    %2178 = vmatpush1.xpose.msra.mxu0 0.0
    %2179 = vmatprep.subr.mxu0 0.0
    %2180 = vmatpush1.xpose.msra.mxu0 0.0
    %2181 = vmatprep.subr.mxu0 0.0
    %2182 = vmatpush1.xpose.msra.mxu0 0.0
    %2183 = vmatprep.subr.mxu0 0.0
    %2184 = vmatpush1.xpose.msra.mxu0 0.0
    %2185 = vmatprep.subr.mxu0 0.0
    %2186 = vmatpush1.xpose.msra.mxu0 0.0
    %2187 = vmatprep.subr.mxu0 0.0
    %2188 = vmatpush1.xpose.msra.mxu0 0.0
    %2189 = vmatprep.subr.mxu0 0.0
    %2190 = vmatpush1.xpose.msra.mxu0 0.0
    %2191 = vmatprep.subr.mxu0 0.0
    %2192 = vmatpush1.xpose.msra.mxu0 0.0
    %2193 = vmatprep.subr.mxu0 0.0
    %2194 = vmatpush1.xpose.msra.mxu0 0.0
    %2195 = vmatprep.subr.mxu0 0.0
    %2196 = vmatpush1.xpose.msra.mxu0 0.0
    %2197 = vmatprep.subr.mxu0 0.0
    %2198 = vmatpush1.xpose.msra.mxu0 0.0
    %2199 = vmatprep.subr.mxu0 0.0
    %2200 = vmatpush1.xpose.msra.mxu0 0.0
    %2201 = vmatprep.subr.mxu0 0.0
    %2202 = vmatpush1.xpose.msra.mxu0 0.0
    %2203 = vmatprep.subr.mxu0 0.0
    %2204 = vmatpush1.xpose.msra.mxu0 0.0
    %2205 = vmatprep.subr.mxu0 0.0
    %2206 = vmatpush1.xpose.msra.mxu0 0.0
    %2207 = vmatprep.subr.mxu0 0.0
    %2208 = vmatpush1.xpose.msra.mxu0 0.0
    %2209 = vmatprep.subr.mxu0 0.0
    %2210 = vmatpush1.xpose.msra.mxu0 0.0
    %2211 = vmatprep.subr.mxu0 0.0
    %2212 = vmatpush1.xpose.msra.mxu0 0.0
    %2213 = vmatprep.subr.mxu0 0.0
    %2214 = vmatpush1.xpose.msra.mxu0 0.0
    %2215 = vmatprep.subr.mxu0 0.0
    %2216 = vmatpush1.xpose.msra.mxu0 0.0
    %2217 = vmatprep.subr.mxu0 0.0
    %2218 = vmatpush1.xpose.msra.mxu0 0.0
    %2219 = vmatprep.subr.mxu0 0.0
    %2220 = vmatpush1.xpose.msra.mxu0 0.0
    %2221 = vmatprep.subr.mxu0 0.0
    %2222 = vmatpush1.xpose.msra.mxu0 0.0
    %2223 = vmatprep.subr.mxu0 0.0
    %2224 = vmatpush1.xpose.msra.mxu0 0.0
    %2225 = vmatprep.subr.mxu0 0.0
    %2226 = vmatpush1.xpose.msra.mxu0 0.0
    %2227 = vmatprep.subr.mxu0 0.0
    %2228 = vmatpush1.xpose.msra.mxu0 0.0
    %2229 = vmatprep.mubr.f32.mxu0 0.0
    %2230 = vmatmul.mubr.f32.gmra.mrb[0].mxu0 %v2160
    %v2231 = vpop.f32.mrb[0].mxu0
    %v2232 = vadd.f32 0.0, %v2231
    %v2233 = vpop.f32.mrb[0].mxu0
    %2234 = vdwg.mxu0
    %v2235 = vld [vmem:[%s9] sm:$0x1]
    %vm2236 = vcmp.gt.f32.partialorder %v2235, 0.0
    %v2237 = vsel %vm2236, 1, 0
    %v2238 = vlaneseq
    %v2239 = vshrl.u32 %v2238, 7
    %v2240 = vsub.s32 0, %v2239
    %v2241 = vrot.slane %v2237, %v2240
    %vm2242 = vcmp.eq.s32.totalorder %v2241, 1
    %v2243 = vsel %vm2242, -10000.0, %v2232
    %v2244 = vsel %vm323, %v2243, -inf
    %2245 = vmax.xlane.f32.xlu0 %v2244
    %v2246 = vpop.xlane.xlu0 %2245
    %v2247 = vsub.f32 %v2243, %v2246
    %v2248 = vmul.f32 %v2247, 1.442695
    %v2249 = vpow.pop %v2248
    %v2250 = vsel %vm323, %v2249, 0.0
    %2251 = vadd.xlane.f32.xlu0 %v2250
    %v2252 = vpop.xlane.xlu0 %2251
    %v2253 = vrcp.pop %v2252
    %v2254 = vmul.f32 %v2249, %v2253
    %s2255 = scalar_lea.vmem [#allocation2], 24
    %2256 = vst.msk [vmem:[%s2255] sm:$0xff] %vm323, %v2254
    %v2258 = vsel %vm323, %v2254, 0
    %2260 = vmatprep.subr.mxu0 0.0
    %2261 = vmatpush1.msra.mxu0 %v2151
    %2262 = vmatprep.subr.mxu0 0.0
    %2263 = vmatpush1.msra.mxu0 0.0
    %2264 = vmatprep.subr.mxu0 0.0
    %2265 = vmatpush1.msra.mxu0 0.0
    %2266 = vmatprep.subr.mxu0 0.0
    %2267 = vmatpush1.msra.mxu0 0.0
    %2268 = vmatprep.subr.mxu0 0.0
    %2269 = vmatpush1.msra.mxu0 0.0
    %2270 = vmatprep.subr.mxu0 0.0
    %2271 = vmatpush1.msra.mxu0 0.0
    %2272 = vmatprep.subr.mxu0 0.0
    %2273 = vmatpush1.msra.mxu0 0.0
    %2274 = vmatprep.subr.mxu0 0.0
    %2275 = vmatpush1.msra.mxu0 0.0
    %2276 = vmatprep.subr.mxu0 0.0
    %2277 = vmatpush1.msra.mxu0 0.0
    %2278 = vmatprep.subr.mxu0 0.0
    %2279 = vmatpush1.msra.mxu0 0.0
    %2280 = vmatprep.subr.mxu0 0.0
    %2281 = vmatpush1.msra.mxu0 0.0
    %2282 = vmatprep.subr.mxu0 0.0
    %2283 = vmatpush1.msra.mxu0 0.0
    %2284 = vmatprep.subr.mxu0 0.0
    %2285 = vmatpush1.msra.mxu0 0.0
    %2286 = vmatprep.subr.mxu0 0.0
    %2287 = vmatpush1.msra.mxu0 0.0
    %2288 = vmatprep.subr.mxu0 0.0
    %2289 = vmatpush1.msra.mxu0 0.0
    %2290 = vmatprep.subr.mxu0 0.0
    %2291 = vmatpush1.msra.mxu0 0.0
    %2292 = vmatprep.subr.mxu0 0.0
    %2293 = vmatpush1.msra.mxu0 0.0
    %2294 = vmatprep.subr.mxu0 0.0
    %2295 = vmatpush1.msra.mxu0 0.0
    %2296 = vmatprep.subr.mxu0 0.0
    %2297 = vmatpush1.msra.mxu0 0.0
    %2298 = vmatprep.subr.mxu0 0.0
    %2299 = vmatpush1.msra.mxu0 0.0
    %2300 = vmatprep.subr.mxu0 0.0
    %2301 = vmatpush1.msra.mxu0 0.0
    %2302 = vmatprep.subr.mxu0 0.0
    %2303 = vmatpush1.msra.mxu0 0.0
    %2304 = vmatprep.subr.mxu0 0.0
    %2305 = vmatpush1.msra.mxu0 0.0
    %2306 = vmatprep.subr.mxu0 0.0
    %2307 = vmatpush1.msra.mxu0 0.0
    %2308 = vmatprep.subr.mxu0 0.0
    %2309 = vmatpush1.msra.mxu0 0.0
    %2310 = vmatprep.subr.mxu0 0.0
    %2311 = vmatpush1.msra.mxu0 0.0
    %2312 = vmatprep.subr.mxu0 0.0
    %2313 = vmatpush1.msra.mxu0 0.0
    %2314 = vmatprep.subr.mxu0 0.0
    %2315 = vmatpush1.msra.mxu0 0.0
    %2316 = vmatprep.subr.mxu0 0.0
    %2317 = vmatpush1.msra.mxu0 0.0
    %2318 = vmatprep.subr.mxu0 0.0
    %2319 = vmatpush1.msra.mxu0 0.0
    %2320 = vmatprep.subr.mxu0 0.0
    %2321 = vmatpush1.msra.mxu0 0.0
    %2322 = vmatprep.subr.mxu0 0.0
    %2323 = vmatpush1.msra.mxu0 0.0
    %2324 = vmatprep.mubr.f32.mxu0 0.0
    %2325 = vmatmul.mubr.f32.gmra.mrb[0].mxu0 %v2258
    %v2326 = vpop.f32.mrb[0].mxu0
    %v2327 = vadd.f32 0.0, %v2326
    %v2328 = vpop.f32.mrb[0].mxu0
    %2329 = vdwg.mxu0
    %s2330 = scalar_lea.vmem %s10, 24
    %2331 = vst.msk [vmem:[%s2330] sm:$0xff] %vm323, %v2327
    %v2333 = vsel %vm323, %v1982, 0
    %v2336 = vsel %vm323, %v2068, 0
    %2338 = vmatprep.subr.mxu0 0.0
    %2339 = vmatpush1.xpose.msra.mxu0 %v2336
    %2340 = vmatprep.subr.mxu0 0.0
    %2341 = vmatpush1.xpose.msra.mxu0 0.0
    %2342 = vmatprep.subr.mxu0 0.0
    %2343 = vmatpush1.xpose.msra.mxu0 0.0
    %2344 = vmatprep.subr.mxu0 0.0
    %2345 = vmatpush1.xpose.msra.mxu0 0.0
    %2346 = vmatprep.subr.mxu0 0.0
    %2347 = vmatpush1.xpose.msra.mxu0 0.0
    %2348 = vmatprep.subr.mxu0 0.0
    %2349 = vmatpush1.xpose.msra.mxu0 0.0
    %2350 = vmatprep.subr.mxu0 0.0
    %2351 = vmatpush1.xpose.msra.mxu0 0.0
    %2352 = vmatprep.subr.mxu0 0.0
    %2353 = vmatpush1.xpose.msra.mxu0 0.0
    %2354 = vmatprep.subr.mxu0 0.0
    %2355 = vmatpush1.xpose.msra.mxu0 0.0
    %2356 = vmatprep.subr.mxu0 0.0
    %2357 = vmatpush1.xpose.msra.mxu0 0.0
    %2358 = vmatprep.subr.mxu0 0.0
    %2359 = vmatpush1.xpose.msra.mxu0 0.0
    %2360 = vmatprep.subr.mxu0 0.0
    %2361 = vmatpush1.xpose.msra.mxu0 0.0
    %2362 = vmatprep.subr.mxu0 0.0
    %2363 = vmatpush1.xpose.msra.mxu0 0.0
    %2364 = vmatprep.subr.mxu0 0.0
    %2365 = vmatpush1.xpose.msra.mxu0 0.0
    %2366 = vmatprep.subr.mxu0 0.0
    %2367 = vmatpush1.xpose.msra.mxu0 0.0
    %2368 = vmatprep.subr.mxu0 0.0
    %2369 = vmatpush1.xpose.msra.mxu0 0.0
    %2370 = vmatprep.subr.mxu0 0.0
    %2371 = vmatpush1.xpose.msra.mxu0 0.0
    %2372 = vmatprep.subr.mxu0 0.0
    %2373 = vmatpush1.xpose.msra.mxu0 0.0
    %2374 = vmatprep.subr.mxu0 0.0
    %2375 = vmatpush1.xpose.msra.mxu0 0.0
    %2376 = vmatprep.subr.mxu0 0.0
    %2377 = vmatpush1.xpose.msra.mxu0 0.0
    %2378 = vmatprep.subr.mxu0 0.0
    %2379 = vmatpush1.xpose.msra.mxu0 0.0
    %2380 = vmatprep.subr.mxu0 0.0
    %2381 = vmatpush1.xpose.msra.mxu0 0.0
    %2382 = vmatprep.subr.mxu0 0.0
    %2383 = vmatpush1.xpose.msra.mxu0 0.0
    %2384 = vmatprep.subr.mxu0 0.0
    %2385 = vmatpush1.xpose.msra.mxu0 0.0
    %2386 = vmatprep.subr.mxu0 0.0
    %2387 = vmatpush1.xpose.msra.mxu0 0.0
    %2388 = vmatprep.subr.mxu0 0.0
    %2389 = vmatpush1.xpose.msra.mxu0 0.0
    %2390 = vmatprep.subr.mxu0 0.0
    %2391 = vmatpush1.xpose.msra.mxu0 0.0
    %2392 = vmatprep.subr.mxu0 0.0
    %2393 = vmatpush1.xpose.msra.mxu0 0.0
    %2394 = vmatprep.subr.mxu0 0.0
    %2395 = vmatpush1.xpose.msra.mxu0 0.0
    %2396 = vmatprep.subr.mxu0 0.0
    %2397 = vmatpush1.xpose.msra.mxu0 0.0
    %2398 = vmatprep.subr.mxu0 0.0
    %2399 = vmatpush1.xpose.msra.mxu0 0.0
    %2400 = vmatprep.subr.mxu0 0.0
    %2401 = vmatpush1.xpose.msra.mxu0 0.0
    %2402 = vmatprep.mubr.f32.mxu0 0.0
    %2403 = vmatmul.mubr.f32.gmra.mrb[0].mxu0 %v2333
    %v2404 = vpop.f32.mrb[0].mxu0
    %v2405 = vadd.f32 0.0, %v2404
    %v2406 = vpop.f32.mrb[0].mxu0
    %2407 = vdwg.mxu0
    %v2408 = vld [vmem:[%s571] sm:$0x1]
    %vm2409 = vcmp.gt.f32.partialorder %v2408, 0.0
    %v2410 = vsel %vm2409, 1, 0
    %v2411 = vlaneseq
    %v2412 = vshrl.u32 %v2411, 7
    %v2413 = vsub.s32 0, %v2412
    %v2414 = vrot.slane %v2410, %v2413
    %vm2415 = vcmp.eq.s32.totalorder %v2414, 1
    %v2416 = vsel %vm2415, -10000.0, %v2405
    %v2417 = vsel %vm323, %v2416, -inf
    %2418 = vmax.xlane.f32.xlu0 %v2417
    %v2419 = vpop.xlane.xlu0 %2418
    %v2420 = vsub.f32 %v2416, %v2419
    %v2421 = vmul.f32 %v2420, 1.442695
    %v2422 = vpow.pop %v2421
    %v2423 = vsel %vm323, %v2422, 0.0
    %2424 = vadd.xlane.f32.xlu0 %v2423
    %v2425 = vpop.xlane.xlu0 %2424
    %v2426 = vrcp.pop %v2425
    %v2427 = vmul.f32 %v2422, %v2426
    %s2428 = scalar_lea.vmem [#allocation2], 56
    %2429 = vst.msk [vmem:[%s2428] sm:$0xff] %vm323, %v2427
    %v2431 = vsel %vm323, %v2427, 0
    %2433 = vmatprep.subr.mxu0 0.0
    %2434 = vmatpush1.msra.mxu0 %v2156
    %2435 = vmatprep.subr.mxu0 0.0
    %2436 = vmatpush1.msra.mxu0 0.0
    %2437 = vmatprep.subr.mxu0 0.0
    %2438 = vmatpush1.msra.mxu0 0.0
    %2439 = vmatprep.subr.mxu0 0.0
    %2440 = vmatpush1.msra.mxu0 0.0
    %2441 = vmatprep.subr.mxu0 0.0
    %2442 = vmatpush1.msra.mxu0 0.0
    %2443 = vmatprep.subr.mxu0 0.0
    %2444 = vmatpush1.msra.mxu0 0.0
    %2445 = vmatprep.subr.mxu0 0.0
    %2446 = vmatpush1.msra.mxu0 0.0
    %2447 = vmatprep.subr.mxu0 0.0
    %2448 = vmatpush1.msra.mxu0 0.0
    %2449 = vmatprep.subr.mxu0 0.0
    %2450 = vmatpush1.msra.mxu0 0.0
    %2451 = vmatprep.subr.mxu0 0.0
    %2452 = vmatpush1.msra.mxu0 0.0
    %2453 = vmatprep.subr.mxu0 0.0
    %2454 = vmatpush1.msra.mxu0 0.0
    %2455 = vmatprep.subr.mxu0 0.0
    %2456 = vmatpush1.msra.mxu0 0.0
    %2457 = vmatprep.subr.mxu0 0.0
    %2458 = vmatpush1.msra.mxu0 0.0
    %2459 = vmatprep.subr.mxu0 0.0
    %2460 = vmatpush1.msra.mxu0 0.0
    %2461 = vmatprep.subr.mxu0 0.0
    %2462 = vmatpush1.msra.mxu0 0.0
    %2463 = vmatprep.subr.mxu0 0.0
    %2464 = vmatpush1.msra.mxu0 0.0
    %2465 = vmatprep.subr.mxu0 0.0
    %2466 = vmatpush1.msra.mxu0 0.0
    %2467 = vmatprep.subr.mxu0 0.0
    %2468 = vmatpush1.msra.mxu0 0.0
    %2469 = vmatprep.subr.mxu0 0.0
    %2470 = vmatpush1.msra.mxu0 0.0
    %2471 = vmatprep.subr.mxu0 0.0
    %2472 = vmatpush1.msra.mxu0 0.0
    %2473 = vmatprep.subr.mxu0 0.0
    %2474 = vmatpush1.msra.mxu0 0.0
    %2475 = vmatprep.subr.mxu0 0.0
    %2476 = vmatpush1.msra.mxu0 0.0
    %2477 = vmatprep.subr.mxu0 0.0
    %2478 = vmatpush1.msra.mxu0 0.0
    %2479 = vmatprep.subr.mxu0 0.0
    %2480 = vmatpush1.msra.mxu0 0.0
    %2481 = vmatprep.subr.mxu0 0.0
    %2482 = vmatpush1.msra.mxu0 0.0
    %2483 = vmatprep.subr.mxu0 0.0
    %2484 = vmatpush1.msra.mxu0 0.0
    %2485 = vmatprep.subr.mxu0 0.0
    %2486 = vmatpush1.msra.mxu0 0.0
    %2487 = vmatprep.subr.mxu0 0.0
    %2488 = vmatpush1.msra.mxu0 0.0
    %2489 = vmatprep.subr.mxu0 0.0
    %2490 = vmatpush1.msra.mxu0 0.0
    %2491 = vmatprep.subr.mxu0 0.0
    %2492 = vmatpush1.msra.mxu0 0.0
    %2493 = vmatprep.subr.mxu0 0.0
    %2494 = vmatpush1.msra.mxu0 0.0
    %2495 = vmatprep.subr.mxu0 0.0
    %2496 = vmatpush1.msra.mxu0 0.0
    %2497 = vmatprep.mubr.f32.mxu0 0.0
    %2498 = vmatmul.mubr.f32.gmra.mrb[0].mxu0 %v2431
    %v2499 = vpop.f32.mrb[0].mxu0
    %v2500 = vadd.f32 0.0, %v2499
    %v2501 = vpop.f32.mrb[0].mxu0
    %2502 = vdwg.mxu0
    %s2503 = scalar_lea.vmem %s10, 56
    %2504 = vst.msk [vmem:[%s2503] sm:$0xff] %vm323, %v2500
    // Predicated region
    $region42: #{_mha_forward.1} parent=1 // pred_check
      _
    $region43: #{_mha_forward.1} parent=1 // pred_check_branch
      %2506 = sbr.rel (0) target = $region45
    $region44: #{_mha_forward.1} parent=1 // pred_region
      _
    $region45: #{_mha_forward.1} parent=1 // pred_fallthru
      _
    // Predicated region
    $region46: #{_mha_forward.1} parent=1 // pred_check
      _
    $region47: #{_mha_forward.1} parent=1 // pred_check_branch
      %2508 = sbr.rel (0) target = $region49
    $region48: #{_mha_forward.1} parent=1 // pred_region
      %s2510 = ssub.s32 1024, 1024
      %2511 = vsyncadd [#allocation3], %s2510
      %s2512 = sshll.u32 [#allocation2], 4
      %s2513 = int_to_ptr.vmem [resolvable:$true] %s2512
      %2518 = dma.vmem_to_hbm [thread:$0]  %s2513, 1024, %s11, [#allocation3], 128, 128, 8
    $region49: #{_mha_forward.1} parent=1 // pred_fallthru
      _
    // Predicated region
    $region50: #{_mha_forward.1} parent=1 // pred_check
      _
    $region51: #{_mha_forward.1} parent=1 // pred_check_branch
      %2520 = sbr.rel (0) target = $region53
    $region52: #{_mha_forward.1} parent=1 // pred_region
      _
    $region53: #{_mha_forward.1} parent=1 // pred_fallthru
      _
    // Predicated region
    $region54: #{_mha_forward.1} parent=1 // pred_check
      _
    $region55: #{_mha_forward.1} parent=1 // pred_check_branch
      %2522 = sbr.rel (0) target = $region57
    $region56: #{_mha_forward.1} parent=1 // pred_region
      %2523 = dma.done [#allocation3], 1024
    $region57: #{_mha_forward.1} parent=1 // pred_fallthru
      _
    %2524 = vsyncpa [#allocation3], 1

</llo_original>
